<compile_context>
chip_gen: v5e
topology: v5e:2x2
jax: 0.10.0
libtpu: 0.0.40
codegen_flags: <defaults>
</compile_context>

<pallas_src>
import functools

import jax
import jax.numpy as jnp
from jax import lax
from jax.experimental import pallas as pl
from jax.experimental.pallas import tpu as pltpu


# ----------------------------------------------------------------------------
# Kernel 1: ConvTranspose2d(k=2,s=2) + channel-concat + Conv3x3 + BN1 stats
# ----------------------------------------------------------------------------
def _k1_deconv_conv1(x1s_ref, x2p_ref, wt2_ref, w1a_ref, w1b_ref, mask_ref,
                     y1_ref, st_ref, up_ref, xb_ref, *, F, H, W):
    f32 = jnp.float32
    bf16 = jnp.bfloat16
    H2, W2 = 2 * H, 2 * W
    Hp, Wp = H2 + 2, W2 + 2
    S = Hp * Wp
    Mg = Wp + 1                      # margin so every conv tap slice stays in bounds
    head = Mg + Wp                   # left margin + top padding row
    interior_end = head + H2 * Wp    # interior rows occupy [head, interior_end)

    # --- ConvTranspose2d: two dense matmuls produce the width-interleaved,
    #     width-padded content of the even-parity / odd-parity output rows.
    x1s = x1s_ref[0]                                                      # (2*Cin, H*Wp) bf16
    b0 = jnp.dot(wt2_ref[0], x1s, preferred_element_type=f32).astype(bf16)  # rows 2i   (F, H*Wp)
    b1 = jnp.dot(wt2_ref[1], x1s, preferred_element_type=f32).astype(bf16)  # rows 2i+1 (F, H*Wp)

    # --- Build the padded flat input planes in VMEM scratch.
    # Zero the regions not covered by interior stores (margins + top/bottom pad
    # rows); interior rows (incl. their side padding columns) are fully written.
    zhead = jnp.zeros((F, head), bf16)
    ztail = jnp.zeros((F, Mg + Wp), bf16)
    up_ref[:, 0:head] = zhead
    up_ref[:, interior_end:] = ztail
    xb_ref[:, 0:head] = zhead
    xb_ref[:, interior_end:] = ztail

    # x2 channels: one contiguous store (x2 arrives width-padded and flattened,
    # which is exactly the interior of the padded flat layout).
    xb_ref[:, head:interior_end] = x2p_ref[0]

    # Deconv channels: interleave even/odd row planes into the padded layout.
    # TODO(synk): at production H use a fori_loop / strided-ds store to keep the
    # unrolled trace length bounded.
    for i in range(H):
        up_ref[:, head + (2 * i) * Wp: head + (2 * i + 1) * Wp] = b0[:, i * Wp:(i + 1) * Wp]
        up_ref[:, head + (2 * i + 1) * Wp: head + (2 * i + 2) * Wp] = b1[:, i * Wp:(i + 1) * Wp]

    # --- conv1 (3x3, pad=1): 9 taps x 2 input planes as accumulating matmuls on
    #     lane-shifted views of the padded flat grid (no 9x im2col slab).
    acc = jnp.zeros((F, S), f32)
    for kh in range(3):
        for kw in range(3):
            t = kh * 3 + kw
            o = (kh - 1) * Wp + (kw - 1)
            acc = acc + jnp.dot(w1a_ref[t], up_ref[:, Mg + o: Mg + o + S],
                                preferred_element_type=f32)
            acc = acc + jnp.dot(w1b_ref[t], xb_ref[:, Mg + o: Mg + o + S],
                                preferred_element_type=f32)

    y = acc * mask_ref[...]                       # zero the halo positions
    ybf = y.astype(bf16)
    y1_ref[0] = ybf                               # bf16 activation to HBM

    # --- BN1 partial statistics, from the values that were actually stored.
    yf = ybf.astype(f32)
    st_ref[0] = jnp.concatenate(
        [jnp.sum(yf, axis=1, keepdims=True),
         jnp.sum(yf * yf, axis=1, keepdims=True)], axis=1)   # (F, 2)


# ----------------------------------------------------------------------------
# Kernel 2: BN1-apply + ReLU + Conv3x3 + BN2 stats
# ----------------------------------------------------------------------------
def _k2_bnrelu_conv2(y1_ref, sc_ref, sh_ref, w2t_ref, mask_ref,
                     y2_ref, st_ref, zpad_ref, *, F, H2, W2):
    f32 = jnp.float32
    bf16 = jnp.bfloat16
    Wp = W2 + 2
    S = (H2 + 2) * Wp
    Mg = Wp + 1
    mask = mask_ref[...]

    # BN (batch stats folded into scale/shift) + ReLU in f32, re-mask so the
    # padded border stays exactly zero for the next conv.
    z = jnp.maximum(y1_ref[0].astype(f32) * sc_ref[...] + sh_ref[...], 0.0) * mask

    zmg = jnp.zeros((F, Mg), bf16)
    zpad_ref[:, 0:Mg] = zmg
    zpad_ref[:, Mg + S:] = zmg
    zpad_ref[:, Mg:Mg + S] = z.astype(bf16)

    acc = jnp.zeros((F, S), f32)
    for kh in range(3):
        for kw in range(3):
            o = (kh - 1) * Wp + (kw - 1)
            acc = acc + jnp.dot(w2t_ref[kh * 3 + kw], zpad_ref[:, Mg + o: Mg + o + S],
                                preferred_element_type=f32)

    y = acc * mask
    ybf = y.astype(bf16)
    y2_ref[0] = ybf
    yf = ybf.astype(f32)
    st_ref[0] = jnp.concatenate(
        [jnp.sum(yf, axis=1, keepdims=True),
         jnp.sum(yf * yf, axis=1, keepdims=True)], axis=1)   # (F, 2)


# ----------------------------------------------------------------------------
# Kernel 3: BN2-apply + ReLU + de-pad to the final (flattened) NCHW output
# ----------------------------------------------------------------------------
def _k3_bnrelu_unpad(y2_ref, sc_ref, sh_ref, o_ref, *, F, H2, W2):
    del F
    f32 = jnp.float32
    Wp = W2 + 2
    z = jnp.maximum(y2_ref[0].astype(f32) * sc_ref[...] + sh_ref[...], 0.0)   # (F, S)
    # Per-row stores: no full-width concat value, bounded live ranges.
    for r in range(H2):
        src = (r + 1) * Wp + 1
        o_ref[0, :, r * W2:(r + 1) * W2] = z[:, src:src + W2]


# ----------------------------------------------------------------------------
# Wrapper (weight / input re-layout and per-channel BN scalars only)
# ----------------------------------------------------------------------------
def _bn_affine(stats, count, gamma, beta, eps):
    # stats: (N, F, 2) per-image [sum, sum_sq]; training-mode (biased) variance.
    s = jnp.sum(stats[:, :, 0], axis=0)
    q = jnp.sum(stats[:, :, 1], axis=0)
    mean = s / count
    var = jnp.maximum(q / count - mean * mean, 0.0)
    inv = lax.rsqrt(var + eps)
    scale = gamma * inv
    shift = beta - mean * scale
    return (scale.astype(jnp.float32).reshape(-1, 1),
            shift.astype(jnp.float32).reshape(-1, 1))


def unet_up_forward(x1, x2, params, eps=1e-5):
    N, Cin, H, W = x1.shape
    F = params["wt"].shape[1]
    H2, W2 = 2 * H, 2 * W
    Hp, Wp = H2 + 2, W2 + 2
    S = Hp * Wp
    Mg = Wp + 1
    bf16 = jnp.bfloat16

    # ---- input re-layout (tiny XLA ops on the small / read-once inputs) ----
    # x1: zero-stuff along W (with the 1-col zero border) so the in-kernel
    # deconv is two dense (F, 2*Cin) x (2*Cin, H*Wp) matmuls already in the
    # width-padded layout.  Channel index = dw*Cin + c.
    x1b = x1.astype(bf16)
    x1s = jnp.zeros((N, 2, Cin, H, Wp), bf16)
    x1s = x1s.at[:, 0, :, :, 1:1 + W2:2].set(x1b)      # dw=0 -> padded col 2j+1
    x1s = x1s.at[:, 1, :, :, 2:2 + W2:2].set(x1b)      # dw=1 -> padded col 2j+2
    x1s = x1s.reshape(N, 2 * Cin, H * Wp)

    # x2: add the 1-col zero border and flatten; its rows then land in the
    # padded flat layout with a single contiguous in-kernel store.
    x2p = jnp.pad(x2.astype(bf16), ((0, 0), (0, 0), (0, 0), (1, 1))).reshape(N, F, H2 * Wp)

    # ---- weight re-layout (tiny, one-time) ----
    # ConvTranspose2d weight (Cin, F, 2, 2) -> (2, F, 2*Cin): [dh, f, dw*Cin + c]
    wt2 = jnp.transpose(params["wt"], (2, 1, 3, 0)).reshape(2, F, 2 * Cin).astype(bf16)
    # Conv1 weight (F, 2F, 3, 3) split into the deconv-input and x2-input halves,
    # each as per-tap matrices (9, F, F).  Conv2 weight -> (9, F, F).
    w1a = jnp.transpose(params["w1"][:, :F], (2, 3, 0, 1)).reshape(9, F, F).astype(bf16)
    w1b = jnp.transpose(params["w1"][:, F:], (2, 3, 0, 1)).reshape(9, F, F).astype(bf16)
    w2t = jnp.transpose(params["w2"], (2, 3, 0, 1)).reshape(9, F, F).astype(bf16)

    # Interior mask in padded-flat coordinates.
    mask = jnp.zeros((Hp, Wp), jnp.float32).at[1:1 + H2, 1:1 + W2].set(1.0).reshape(1, S)

    cparams = pltpu.CompilerParams(
        dimension_semantics=("parallel",),
        vmem_limit_bytes=48 * 1024 * 1024,   # safe below v7x's 64 MiB physical VMEM
    )

    # TODO(synk): at production feature-map sizes add row-band spatial tiling
    # (second parallel grid axis, 1-row halo) so per-step blocks fit v7x's
    # 64 MiB VMEM; v5e/v6e can then run ~2x larger bands with a higher
    # vmem_limit_bytes.  At these sizes one image per grid step fits easily.
    y1, st1 = pl.pallas_call(
        functools.partial(_k1_deconv_conv1, F=F, H=H, W=W),
        grid=(N,),
        in_specs=[
            pl.BlockSpec((1, 2 * Cin, H * Wp), lambda n: (n, 0, 0)),
            pl.BlockSpec((1, F, H2 * Wp), lambda n: (n, 0, 0)),
            pl.BlockSpec((2, F, 2 * Cin), lambda n: (0, 0, 0)),
            pl.BlockSpec((9, F, F), lambda n: (0, 0, 0)),
            pl.BlockSpec((9, F, F), lambda n: (0, 0, 0)),
            pl.BlockSpec((1, S), lambda n: (0, 0)),
        ],
        out_specs=(
            pl.BlockSpec((1, F, S), lambda n: (n, 0, 0)),
            pl.BlockSpec((1, F, 2), lambda n: (n, 0, 0)),
        ),
        out_shape=(
            jax.ShapeDtypeStruct((N, F, S), bf16),
            jax.ShapeDtypeStruct((N, F, 2), jnp.float32),
        ),
        scratch_shapes=[
            pltpu.VMEM((F, S + 2 * Mg), bf16),   # deconv ("up") plane, padded
            pltpu.VMEM((F, S + 2 * Mg), bf16),   # x2 plane, padded
        ],
        compiler_params=cparams,
    )(x1s, x2p, wt2, w1a, w1b, mask)

    count = float(N * H2 * W2)
    sc1, sh1 = _bn_affine(st1, count, params["gamma"], params["beta"], eps)

    y2, st2 = pl.pallas_call(
        functools.partial(_k2_bnrelu_conv2, F=F, H2=H2, W2=W2),
        grid=(N,),
        in_specs=[
            pl.BlockSpec((1, F, S), lambda n: (n, 0, 0)),
            pl.BlockSpec((F, 1), lambda n: (0, 0)),
            pl.BlockSpec((F, 1), lambda n: (0, 0)),
            pl.BlockSpec((9, F, F), lambda n: (0, 0, 0)),
            pl.BlockSpec((1, S), lambda n: (0, 0)),
        ],
        out_specs=(
            pl.BlockSpec((1, F, S), lambda n: (n, 0, 0)),
            pl.BlockSpec((1, F, 2), lambda n: (n, 0, 0)),
        ),
        out_shape=(
            jax.ShapeDtypeStruct((N, F, S), bf16),
            jax.ShapeDtypeStruct((N, F, 2), jnp.float32),
        ),
        scratch_shapes=[pltpu.VMEM((F, S + 2 * Mg), bf16)],
        compiler_params=cparams,
    )(y1, sc1, sh1, w2t, mask)

    sc2, sh2 = _bn_affine(st2, count, params["gamma"], params["beta"], eps)

    out = pl.pallas_call(
        functools.partial(_k3_bnrelu_unpad, F=F, H2=H2, W2=W2),
        grid=(N,),
        in_specs=[
            pl.BlockSpec((1, F, S), lambda n: (n, 0, 0)),
            pl.BlockSpec((F, 1), lambda n: (0, 0)),
            pl.BlockSpec((F, 1), lambda n: (0, 0)),
        ],
        out_specs=pl.BlockSpec((1, F, H2 * W2), lambda n: (n, 0, 0)),
        out_shape=jax.ShapeDtypeStruct((N, F, H2 * W2), jnp.float32),
        compiler_params=cparams,
    )(y2, sc2, sh2)

    # TODO(synk): BatchNorm running-stat (momentum) updates are a stateful
    # training side effect and are not reproduced; the returned output matches.
    return out.reshape(N, F, H2, W2)              # contiguous reshape, free


# ----------------------------------------------------------------------------
# Pure-JAX reference (f32) used as a loose sanity check.
# ----------------------------------------------------------------------------
def _reference(x1, x2, params, eps=1e-5):
    N, Cin, H, W = x1.shape
    F = params["wt"].shape[1]
    # ConvTranspose2d k=2,s=2: out[n,f,2i+a,2j+b] = sum_c x1[n,c,i,j] * wt[c,f,a,b]
    up = jnp.einsum("ncij,cfab->nfiajb", x1, params["wt"]).reshape(N, F, 2 * H, 2 * W)
    xin = jnp.concatenate([up, x2], axis=1)

    def conv3(x, w):
        return lax.conv_general_dilated(x, w, (1, 1), ((1, 1), (1, 1)),
                                        dimension_numbers=("NCHW", "OIHW", "NCHW"))

    def bn_relu(x, gamma, beta):
        mean = x.mean(axis=(0, 2, 3), keepdims=True)
        var = x.var(axis=(0, 2, 3), keepdims=True)
        xn = (x - mean) * lax.rsqrt(var + eps)
        return jnp.maximum(xn * gamma.reshape(1, -1, 1, 1) + beta.reshape(1, -1, 1, 1), 0.0)

    h = bn_relu(conv3(xin, params["w1"]), params["gamma"], params["beta"])
    return bn_relu(conv3(h, params["w2"]), params["gamma"], params["beta"])


if __name__ == "__main__":
    key = jax.random.PRNGKey(0)
    ka, kb, kc, kd, ke = jax.random.split(key, 5)

    N, Cin, F, H, W = 2, 8, 4, 8, 8               # x1: (2,8,8,8)  x2: (2,4,16,16)
    x1 = jax.random.normal(ka, (N, Cin, H, W), jnp.float32)
    x2 = jax.random.normal(kb, (N, F, 2 * H, 2 * W), jnp.float32)

    params = {
        # nn.ConvTranspose2d weight layout: (in_channels, out_channels, 2, 2)
        "wt": 0.1 * jax.random.normal(kc, (Cin, F, 2, 2), jnp.float32),
        # nn.Conv2d weight layouts (out, in, 3, 3)
        "w1": 0.1 * jax.random.normal(kd, (F, 2 * F, 3, 3), jnp.float32),
        "w2": 0.1 * jax.random.normal(ke, (F, F, 3, 3), jnp.float32),
        # BatchNorm2d default init (single module shared by both applications)
        "gamma": jnp.ones((F,), jnp.float32),
        "beta": jnp.zeros((F,), jnp.float32),
    }

    out = jax.jit(unet_up_forward)(x1, x2, params)
    jax.block_until_ready(out)
    assert out.shape == (N, F, 2 * H, 2 * W)

    # Loose tolerance: kernel runs conv operands / stored activations in bf16.
    ref = _reference(x1, x2, params)
    ok = bool(jnp.all(jnp.abs(out - ref) <= 0.25 + 0.2 * jnp.abs(ref)))
    assert ok, "kernel output deviates from the f32 reference beyond bf16 tolerance"

    print("KERNEL_OK")
</pallas_src>

<mosaic_0001>
module attributes {stable_mosaic.version = 11 : i64} {
  func.func @_k2_bnrelu_conv2(%arg0: i32, %arg1: memref<1x4x324xbf16, #tpu.memory_space<vmem>>, %arg2: memref<4x1xf32, #tpu.memory_space<vmem>>, %arg3: memref<4x1xf32, #tpu.memory_space<vmem>>, %arg4: memref<9x4x4xbf16, #tpu.memory_space<vmem>>, %arg5: memref<1x324xf32, #tpu.memory_space<vmem>>, %arg6: memref<1x4x324xbf16, #tpu.memory_space<vmem>>, %arg7: memref<1x4x2xf32, #tpu.memory_space<vmem>>, %arg8: memref<4x362xbf16, #tpu.memory_space<vmem>>) attributes {dimension_semantics = [#tpu.dimension_semantics<parallel>], iteration_bounds = array<i64: 2>, scalar_prefetch = 0 : i64, scratch_operands = 1 : i64, tpu.core_type = #tpu.core_type<tc>, window_params = [{transform_indices = @transform_0, window_bounds = array<i64: 1, 4, 324>}, {pipeline_mode = #tpu.pipeline_mode<synchronous>, transform_indices = @transform_1, window_bounds = array<i64: 4, 1>}, {pipeline_mode = #tpu.pipeline_mode<synchronous>, transform_indices = @transform_2, window_bounds = array<i64: 4, 1>}, {pipeline_mode = #tpu.pipeline_mode<synchronous>, transform_indices = @transform_3, window_bounds = array<i64: 9, 4, 4>}, {pipeline_mode = #tpu.pipeline_mode<synchronous>, transform_indices = @transform_4, window_bounds = array<i64: 1, 324>}, {transform_indices = @transform_5, window_bounds = array<i64: 1, 4, 324>}, {transform_indices = @transform_6, window_bounds = array<i64: 1, 4, 2>}]} {
    %c0 = arith.constant 0 : index
    %c0_0 = arith.constant 0 : index
    %0 = vector.load %arg5[%c0, %c0_0] : memref<1x324xf32, #tpu.memory_space<vmem>>, vector<1x324xf32>
    %c0_1 = arith.constant 0 : index
    %c0_2 = arith.constant 0 : index
    %c0_3 = arith.constant 0 : index
    %1 = vector.load %arg1[%c0_1, %c0_2, %c0_3] : memref<1x4x324xbf16, #tpu.memory_space<vmem>>, vector<1x4x324xbf16>
    %2 = vector.shape_cast %1 : vector<1x4x324xbf16> to vector<4x324xbf16>
    %3 = arith.extf %2 : vector<4x324xbf16> to vector<4x324xf32>
    %c0_4 = arith.constant 0 : index
    %c0_5 = arith.constant 0 : index
    %4 = vector.load %arg2[%c0_4, %c0_5] : memref<4x1xf32, #tpu.memory_space<vmem>>, vector<4x1xf32>
    %5 = vector.broadcast %4 : vector<4x1xf32> to vector<4x324xf32>
    %6 = arith.mulf %3, %5 : vector<4x324xf32>
    %c0_6 = arith.constant 0 : index
    %c0_7 = arith.constant 0 : index
    %7 = vector.load %arg3[%c0_6, %c0_7] : memref<4x1xf32, #tpu.memory_space<vmem>>, vector<4x1xf32>
    %8 = vector.broadcast %7 : vector<4x1xf32> to vector<4x324xf32>
    %9 = arith.addf %6, %8 : vector<4x324xf32>
    %cst = arith.constant 0.000000e+00 : f32
    %10 = vector.broadcast %cst : f32 to vector<4x324xf32>
    %11 = arith.maximumf %9, %10 : vector<4x324xf32>
    %12 = vector.broadcast %0 : vector<1x324xf32> to vector<4x324xf32>
    %13 = arith.mulf %11, %12 : vector<4x324xf32>
    %cst_8 = arith.constant 0.000000e+00 : bf16
    %14 = vector.broadcast %cst_8 : bf16 to vector<4x19xbf16>
    %c0_9 = arith.constant 0 : index
    %c0_10 = arith.constant 0 : index
    %15 = vector.load %arg8[%c0_9, %c0_10] : memref<4x362xbf16, #tpu.memory_space<vmem>>, vector<4x19xbf16>
    tpu.vector_store %arg8[%c0_9, %c0_10], %14 {strides = array<i32>} : memref<4x362xbf16, #tpu.memory_space<vmem>>, vector<4x19xbf16>,
    %c0_11 = arith.constant 0 : index
    %c343 = arith.constant 343 : index
    %16 = vector.load %arg8[%c0_11, %c343] : memref<4x362xbf16, #tpu.memory_space<vmem>>, vector<4x19xbf16>
    tpu.vector_store %arg8[%c0_11, %c343], %14 {strides = array<i32>} : memref<4x362xbf16, #tpu.memory_space<vmem>>, vector<4x19xbf16>,
    %17 = arith.truncf %13 : vector<4x324xf32> to vector<4x324xbf16>
    %c0_12 = arith.constant 0 : index
    %c19 = arith.constant 19 : index
    %18 = vector.load %arg8[%c0_12, %c19] : memref<4x362xbf16, #tpu.memory_space<vmem>>, vector<4x324xbf16>
    tpu.vector_store %arg8[%c0_12, %c19], %17 {strides = array<i32>} : memref<4x362xbf16, #tpu.memory_space<vmem>>, vector<4x324xbf16>,
    %cst_13 = arith.constant 0.000000e+00 : f32
    %19 = vector.broadcast %cst_13 : f32 to vector<4x324xf32>
    %c0_14 = arith.constant 0 : index
    %c0_15 = arith.constant 0 : index
    %c0_16 = arith.constant 0 : index
    %20 = vector.load %arg4[%c0_14, %c0_15, %c0_16] : memref<9x4x4xbf16, #tpu.memory_space<vmem>>, vector<1x4x4xbf16>
    %21 = vector.shape_cast %20 : vector<1x4x4xbf16> to vector<4x4xbf16>
    %c0_17 = arith.constant 0 : index
    %c0_18 = arith.constant 0 : index
    %22 = vector.load %arg8[%c0_17, %c0_18] : memref<4x362xbf16, #tpu.memory_space<vmem>>, vector<4x324xbf16>
    %cst_19 = arith.constant dense<0.000000e+00> : vector<4x324xf32>
    %23 = tpu.matmul %21, %22, %cst_19 {dimension_numbers = #tpu.dot_dimension_numbers<[1], [0], [0], [1], [0, 0, 1, 1], [], []>} : vector<4x4xbf16>, vector<4x324xbf16>, vector<4x324xf32> -> vector<4x324xf32>
    %24 = arith.addf %19, %23 : vector<4x324xf32>
    %c1 = arith.constant 1 : index
    %c0_20 = arith.constant 0 : index
    %c0_21 = arith.constant 0 : index
    %25 = vector.load %arg4[%c1, %c0_20, %c0_21] : memref<9x4x4xbf16, #tpu.memory_space<vmem>>, vector<1x4x4xbf16>
    %26 = vector.shape_cast %25 : vector<1x4x4xbf16> to vector<4x4xbf16>
    %c0_22 = arith.constant 0 : index
    %c1_23 = arith.constant 1 : index
    %27 = vector.load %arg8[%c0_22, %c1_23] : memref<4x362xbf16, #tpu.memory_space<vmem>>, vector<4x324xbf16>
    %cst_24 = arith.constant dense<0.000000e+00> : vector<4x324xf32>
    %28 = tpu.matmul %26, %27, %cst_24 {dimension_numbers = #tpu.dot_dimension_numbers<[1], [0], [0], [1], [0, 0, 1, 1], [], []>} : vector<4x4xbf16>, vector<4x324xbf16>, vector<4x324xf32> -> vector<4x324xf32>
    %29 = arith.addf %24, %28 : vector<4x324xf32>
    %c2 = arith.constant 2 : index
    %c0_25 = arith.constant 0 : index
    %c0_26 = arith.constant 0 : index
    %30 = vector.load %arg4[%c2, %c0_25, %c0_26] : memref<9x4x4xbf16, #tpu.memory_space<vmem>>, vector<1x4x4xbf16>
    %31 = vector.shape_cast %30 : vector<1x4x4xbf16> to vector<4x4xbf16>
    %c0_27 = arith.constant 0 : index
    %c2_28 = arith.constant 2 : index
    %32 = vector.load %arg8[%c0_27, %c2_28] : memref<4x362xbf16, #tpu.memory_space<vmem>>, vector<4x324xbf16>
    %cst_29 = arith.constant dense<0.000000e+00> : vector<4x324xf32>
    %33 = tpu.matmul %31, %32, %cst_29 {dimension_numbers = #tpu.dot_dimension_numbers<[1], [0], [0], [1], [0, 0, 1, 1], [], []>} : vector<4x4xbf16>, vector<4x324xbf16>, vector<4x324xf32> -> vector<4x324xf32>
    %34 = arith.addf %29, %33 : vector<4x324xf32>
    %c3 = arith.constant 3 : index
    %c0_30 = arith.constant 0 : index
    %c0_31 = arith.constant 0 : index
    %35 = vector.load %arg4[%c3, %c0_30, %c0_31] : memref<9x4x4xbf16, #tpu.memory_space<vmem>>, vector<1x4x4xbf16>
    %36 = vector.shape_cast %35 : vector<1x4x4xbf16> to vector<4x4xbf16>
    %c0_32 = arith.constant 0 : index
    %c18 = arith.constant 18 : index
    %37 = vector.load %arg8[%c0_32, %c18] : memref<4x362xbf16, #tpu.memory_space<vmem>>, vector<4x324xbf16>
    %cst_33 = arith.constant dense<0.000000e+00> : vector<4x324xf32>
    %38 = tpu.matmul %36, %37, %cst_33 {dimension_numbers = #tpu.dot_dimension_numbers<[1], [0], [0], [1], [0, 0, 1, 1], [], []>} : vector<4x4xbf16>, vector<4x324xbf16>, vector<4x324xf32> -> vector<4x324xf32>
    %39 = arith.addf %34, %38 : vector<4x324xf32>
    %c4 = arith.constant 4 : index
    %c0_34 = arith.constant 0 : index
    %c0_35 = arith.constant 0 : index
    %40 = vector.load %arg4[%c4, %c0_34, %c0_35] : memref<9x4x4xbf16, #tpu.memory_space<vmem>>, vector<1x4x4xbf16>
    %41 = vector.shape_cast %40 : vector<1x4x4xbf16> to vector<4x4xbf16>
    %c0_36 = arith.constant 0 : index
    %c19_37 = arith.constant 19 : index
    %42 = vector.load %arg8[%c0_36, %c19_37] : memref<4x362xbf16, #tpu.memory_space<vmem>>, vector<4x324xbf16>
    %cst_38 = arith.constant dense<0.000000e+00> : vector<4x324xf32>
    %43 = tpu.matmul %41, %42, %cst_38 {dimension_numbers = #tpu.dot_dimension_numbers<[1], [0], [0], [1], [0, 0, 1, 1], [], []>} : vector<4x4xbf16>, vector<4x324xbf16>, vector<4x324xf32> -> vector<4x324xf32>
    %44 = arith.addf %39, %43 : vector<4x324xf32>
    %c5 = arith.constant 5 : index
    %c0_39 = arith.constant 0 : index
    %c0_40 = arith.constant 0 : index
    %45 = vector.load %arg4[%c5, %c0_39, %c0_40] : memref<9x4x4xbf16, #tpu.memory_space<vmem>>, vector<1x4x4xbf16>
    %46 = vector.shape_cast %45 : vector<1x4x4xbf16> to vector<4x4xbf16>
    %c0_41 = arith.constant 0 : index
    %c20 = arith.constant 20 : index
    %47 = vector.load %arg8[%c0_41, %c20] : memref<4x362xbf16, #tpu.memory_space<vmem>>, vector<4x324xbf16>
    %cst_42 = arith.constant dense<0.000000e+00> : vector<4x324xf32>
    %48 = tpu.matmul %46, %47, %cst_42 {dimension_numbers = #tpu.dot_dimension_numbers<[1], [0], [0], [1], [0, 0, 1, 1], [], []>} : vector<4x4xbf16>, vector<4x324xbf16>, vector<4x324xf32> -> vector<4x324xf32>
    %49 = arith.addf %44, %48 : vector<4x324xf32>
    %c6 = arith.constant 6 : index
    %c0_43 = arith.constant 0 : index
    %c0_44 = arith.constant 0 : index
    %50 = vector.load %arg4[%c6, %c0_43, %c0_44] : memref<9x4x4xbf16, #tpu.memory_space<vmem>>, vector<1x4x4xbf16>
    %51 = vector.shape_cast %50 : vector<1x4x4xbf16> to vector<4x4xbf16>
    %c0_45 = arith.constant 0 : index
    %c36 = arith.constant 36 : index
    %52 = vector.load %arg8[%c0_45, %c36] : memref<4x362xbf16, #tpu.memory_space<vmem>>, vector<4x324xbf16>
    %cst_46 = arith.constant dense<0.000000e+00> : vector<4x324xf32>
    %53 = tpu.matmul %51, %52, %cst_46 {dimension_numbers = #tpu.dot_dimension_numbers<[1], [0], [0], [1], [0, 0, 1, 1], [], []>} : vector<4x4xbf16>, vector<4x324xbf16>, vector<4x324xf32> -> vector<4x324xf32>
    %54 = arith.addf %49, %53 : vector<4x324xf32>
    %c7 = arith.constant 7 : index
    %c0_47 = arith.constant 0 : index
    %c0_48 = arith.constant 0 : index
    %55 = vector.load %arg4[%c7, %c0_47, %c0_48] : memref<9x4x4xbf16, #tpu.memory_space<vmem>>, vector<1x4x4xbf16>
    %56 = vector.shape_cast %55 : vector<1x4x4xbf16> to vector<4x4xbf16>
    %c0_49 = arith.constant 0 : index
    %c37 = arith.constant 37 : index
    %57 = vector.load %arg8[%c0_49, %c37] : memref<4x362xbf16, #tpu.memory_space<vmem>>, vector<4x324xbf16>
    %cst_50 = arith.constant dense<0.000000e+00> : vector<4x324xf32>
    %58 = tpu.matmul %56, %57, %cst_50 {dimension_numbers = #tpu.dot_dimension_numbers<[1], [0], [0], [1], [0, 0, 1, 1], [], []>} : vector<4x4xbf16>, vector<4x324xbf16>, vector<4x324xf32> -> vector<4x324xf32>
    %59 = arith.addf %54, %58 : vector<4x324xf32>
    %c8 = arith.constant 8 : index
    %c0_51 = arith.constant 0 : index
    %c0_52 = arith.constant 0 : index
    %60 = vector.load %arg4[%c8, %c0_51, %c0_52] : memref<9x4x4xbf16, #tpu.memory_space<vmem>>, vector<1x4x4xbf16>
    %61 = vector.shape_cast %60 : vector<1x4x4xbf16> to vector<4x4xbf16>
    %c0_53 = arith.constant 0 : index
    %c38 = arith.constant 38 : index
    %62 = vector.load %arg8[%c0_53, %c38] : memref<4x362xbf16, #tpu.memory_space<vmem>>, vector<4x324xbf16>
    %cst_54 = arith.constant dense<0.000000e+00> : vector<4x324xf32>
    %63 = tpu.matmul %61, %62, %cst_54 {dimension_numbers = #tpu.dot_dimension_numbers<[1], [0], [0], [1], [0, 0, 1, 1], [], []>} : vector<4x4xbf16>, vector<4x324xbf16>, vector<4x324xf32> -> vector<4x324xf32>
    %64 = arith.addf %59, %63 : vector<4x324xf32>
    %65 = vector.broadcast %0 : vector<1x324xf32> to vector<4x324xf32>
    %66 = arith.mulf %64, %65 : vector<4x324xf32>
    %67 = arith.truncf %66 : vector<4x324xf32> to vector<4x324xbf16>
    %c0_55 = arith.constant 0 : index
    %c0_56 = arith.constant 0 : index
    %c0_57 = arith.constant 0 : index
    %68 = vector.load %arg6[%c0_55, %c0_56, %c0_57] : memref<1x4x324xbf16, #tpu.memory_space<vmem>>, vector<1x4x324xbf16>
    %69 = vector.shape_cast %68 : vector<1x4x324xbf16> to vector<4x324xbf16>
    %70 = vector.shape_cast %67 : vector<4x324xbf16> to vector<1x4x324xbf16>
    tpu.vector_store %arg6[%c0_55, %c0_56, %c0_57], %70 {strides = array<i32>} : memref<1x4x324xbf16, #tpu.memory_space<vmem>>, vector<1x4x324xbf16>,
    %71 = arith.extf %67 : vector<4x324xbf16> to vector<4x324xf32>
    %cst_58 = arith.constant dense<0.000000e+00> : vector<4xf32>
    %72 = vector.multi_reduction <add>, %71, %cst_58 [1] : vector<4x324xf32> to vector<4xf32>
    %73 = vector.shape_cast %72 : vector<4xf32> to vector<4x1xf32>
    %74 = arith.mulf %71, %71 : vector<4x324xf32>
    %cst_59 = arith.constant dense<0.000000e+00> : vector<4xf32>
    %75 = vector.multi_reduction <add>, %74, %cst_59 [1] : vector<4x324xf32> to vector<4xf32>
    %76 = vector.shape_cast %75 : vector<4xf32> to vector<4x1xf32>
    %77 = tpu.concatenate %73, %76 in 1 : vector<4x1xf32>, vector<4x1xf32> -> vector<4x2xf32>
    %c0_60 = arith.constant 0 : index
    %c0_61 = arith.constant 0 : index
    %c0_62 = arith.constant 0 : index
    %78 = vector.load %arg7[%c0_60, %c0_61, %c0_62] : memref<1x4x2xf32, #tpu.memory_space<vmem>>, vector<1x4x2xf32>
    %79 = vector.shape_cast %78 : vector<1x4x2xf32> to vector<4x2xf32>
    %80 = vector.shape_cast %77 : vector<4x2xf32> to vector<1x4x2xf32>
    tpu.vector_store %arg7[%c0_60, %c0_61, %c0_62], %80 {strides = array<i32>} : memref<1x4x2xf32, #tpu.memory_space<vmem>>, vector<1x4x2xf32>,
    return
  }
  func.func @transform_0(%arg0: i32) -> (i32, i32, i32) {
    %c0_i32 = arith.constant 0 : i32
    %c0_i32_0 = arith.constant 0 : i32
    %c0_i32_1 = arith.constant 0 : i32
    return %arg0, %c0_i32, %c0_i32_0 : i32, i32, i32
  }
  func.func @transform_1(%arg0: i32) -> (i32, i32) {
    %c0_i32 = arith.constant 0 : i32
    %c0_i32_0 = arith.constant 0 : i32
    %c0_i32_1 = arith.constant 0 : i32
    return %c0_i32, %c0_i32_0 : i32, i32
  }
  func.func @transform_2(%arg0: i32) -> (i32, i32) {
    %c0_i32 = arith.constant 0 : i32
    %c0_i32_0 = arith.constant 0 : i32
    %c0_i32_1 = arith.constant 0 : i32
    return %c0_i32, %c0_i32_0 : i32, i32
  }
  func.func @transform_3(%arg0: i32) -> (i32, i32, i32) {
    %c0_i32 = arith.constant 0 : i32
    %c0_i32_0 = arith.constant 0 : i32
    %c0_i32_1 = arith.constant 0 : i32
    %c0_i32_2 = arith.constant 0 : i32
    return %c0_i32, %c0_i32_0, %c0_i32_1 : i32, i32, i32
  }
  func.func @transform_4(%arg0: i32) -> (i32, i32) {
    %c0_i32 = arith.constant 0 : i32
    %c0_i32_0 = arith.constant 0 : i32
    %c0_i32_1 = arith.constant 0 : i32
    return %c0_i32, %c0_i32_0 : i32, i32
  }
  func.func @transform_5(%arg0: i32) -> (i32, i32, i32) {
    %c0_i32 = arith.constant 0 : i32
    %c0_i32_0 = arith.constant 0 : i32
    %c0_i32_1 = arith.constant 0 : i32
    return %arg0, %c0_i32, %c0_i32_0 : i32, i32, i32
  }
  func.func @transform_6(%arg0: i32) -> (i32, i32, i32) {
    %c0_i32 = arith.constant 0 : i32
    %c0_i32_0 = arith.constant 0 : i32
    %c0_i32_1 = arith.constant 0 : i32
    return %arg0, %c0_i32, %c0_i32_0 : i32, i32, i32
  }
}

module attributes {stable_mosaic.version = 11 : i64} {
  func.func @_k3_bnrelu_unpad(%arg0: i32, %arg1: memref<1x4x324xbf16, #tpu.memory_space<vmem>>, %arg2: memref<4x1xf32, #tpu.memory_space<vmem>>, %arg3: memref<4x1xf32, #tpu.memory_space<vmem>>, %arg4: memref<1x4x256xf32, #tpu.memory_space<vmem>>) attributes {dimension_semantics = [#tpu.dimension_semantics<parallel>], iteration_bounds = array<i64: 2>, scalar_prefetch = 0 : i64, scratch_operands = 0 : i64, tpu.core_type = #tpu.core_type<tc>, window_params = [{transform_indices = @transform_0, window_bounds = array<i64: 1, 4, 324>}, {pipeline_mode = #tpu.pipeline_mode<synchronous>, transform_indices = @transform_1, window_bounds = array<i64: 4, 1>}, {pipeline_mode = #tpu.pipeline_mode<synchronous>, transform_indices = @transform_2, window_bounds = array<i64: 4, 1>}, {transform_indices = @transform_3, window_bounds = array<i64: 1, 4, 256>}]} {
    %c0 = arith.constant 0 : index
    %c0_0 = arith.constant 0 : index
    %c0_1 = arith.constant 0 : index
    %0 = vector.load %arg1[%c0, %c0_0, %c0_1] : memref<1x4x324xbf16, #tpu.memory_space<vmem>>, vector<1x4x324xbf16>
    %1 = vector.shape_cast %0 : vector<1x4x324xbf16> to vector<4x324xbf16>
    %2 = arith.extf %1 : vector<4x324xbf16> to vector<4x324xf32>
    %c0_2 = arith.constant 0 : index
    %c0_3 = arith.constant 0 : index
    %3 = vector.load %arg2[%c0_2, %c0_3] : memref<4x1xf32, #tpu.memory_space<vmem>>, vector<4x1xf32>
    %4 = vector.broadcast %3 : vector<4x1xf32> to vector<4x324xf32>
    %5 = arith.mulf %2, %4 : vector<4x324xf32>
    %c0_4 = arith.constant 0 : index
    %c0_5 = arith.constant 0 : index
    %6 = vector.load %arg3[%c0_4, %c0_5] : memref<4x1xf32, #tpu.memory_space<vmem>>, vector<4x1xf32>
    %7 = vector.broadcast %6 : vector<4x1xf32> to vector<4x324xf32>
    %8 = arith.addf %5, %7 : vector<4x324xf32>
    %cst = arith.constant 0.000000e+00 : f32
    %9 = vector.broadcast %cst : f32 to vector<4x324xf32>
    %10 = arith.maximumf %8, %9 : vector<4x324xf32>
    %11 = vector.extract_strided_slice %10 {offsets = [0, 19], sizes = [4, 16], strides = [1, 1]} : vector<4x324xf32> to vector<4x16xf32>
    %c0_6 = arith.constant 0 : index
    %c0_7 = arith.constant 0 : index
    %c0_8 = arith.constant 0 : index
    %12 = vector.load %arg4[%c0_6, %c0_7, %c0_8] : memref<1x4x256xf32, #tpu.memory_space<vmem>>, vector<1x4x16xf32>
    %13 = vector.shape_cast %12 : vector<1x4x16xf32> to vector<4x16xf32>
    %14 = vector.shape_cast %11 : vector<4x16xf32> to vector<1x4x16xf32>
    tpu.vector_store %arg4[%c0_6, %c0_7, %c0_8], %14 {strides = array<i32>} : memref<1x4x256xf32, #tpu.memory_space<vmem>>, vector<1x4x16xf32>,
    %15 = vector.extract_strided_slice %10 {offsets = [0, 37], sizes = [4, 16], strides = [1, 1]} : vector<4x324xf32> to vector<4x16xf32>
    %c0_9 = arith.constant 0 : index
    %c0_10 = arith.constant 0 : index
    %c16 = arith.constant 16 : index
    %16 = vector.load %arg4[%c0_9, %c0_10, %c16] : memref<1x4x256xf32, #tpu.memory_space<vmem>>, vector<1x4x16xf32>
    %17 = vector.shape_cast %16 : vector<1x4x16xf32> to vector<4x16xf32>
    %18 = vector.shape_cast %15 : vector<4x16xf32> to vector<1x4x16xf32>
    tpu.vector_store %arg4[%c0_9, %c0_10, %c16], %18 {strides = array<i32>} : memref<1x4x256xf32, #tpu.memory_space<vmem>>, vector<1x4x16xf32>,
    %19 = vector.extract_strided_slice %10 {offsets = [0, 55], sizes = [4, 16], strides = [1, 1]} : vector<4x324xf32> to vector<4x16xf32>
    %c0_11 = arith.constant 0 : index
    %c0_12 = arith.constant 0 : index
    %c32 = arith.constant 32 : index
    %20 = vector.load %arg4[%c0_11, %c0_12, %c32] : memref<1x4x256xf32, #tpu.memory_space<vmem>>, vector<1x4x16xf32>
    %21 = vector.shape_cast %20 : vector<1x4x16xf32> to vector<4x16xf32>
    %22 = vector.shape_cast %19 : vector<4x16xf32> to vector<1x4x16xf32>
    tpu.vector_store %arg4[%c0_11, %c0_12, %c32], %22 {strides = array<i32>} : memref<1x4x256xf32, #tpu.memory_space<vmem>>, vector<1x4x16xf32>,
    %23 = vector.extract_strided_slice %10 {offsets = [0, 73], sizes = [4, 16], strides = [1, 1]} : vector<4x324xf32> to vector<4x16xf32>
    %c0_13 = arith.constant 0 : index
    %c0_14 = arith.constant 0 : index
    %c48 = arith.constant 48 : index
    %24 = vector.load %arg4[%c0_13, %c0_14, %c48] : memref<1x4x256xf32, #tpu.memory_space<vmem>>, vector<1x4x16xf32>
    %25 = vector.shape_cast %24 : vector<1x4x16xf32> to vector<4x16xf32>
    %26 = vector.shape_cast %23 : vector<4x16xf32> to vector<1x4x16xf32>
    tpu.vector_store %arg4[%c0_13, %c0_14, %c48], %26 {strides = array<i32>} : memref<1x4x256xf32, #tpu.memory_space<vmem>>, vector<1x4x16xf32>,
    %27 = vector.extract_strided_slice %10 {offsets = [0, 91], sizes = [4, 16], strides = [1, 1]} : vector<4x324xf32> to vector<4x16xf32>
    %c0_15 = arith.constant 0 : index
    %c0_16 = arith.constant 0 : index
    %c64 = arith.constant 64 : index
    %28 = vector.load %arg4[%c0_15, %c0_16, %c64] : memref<1x4x256xf32, #tpu.memory_space<vmem>>, vector<1x4x16xf32>
    %29 = vector.shape_cast %28 : vector<1x4x16xf32> to vector<4x16xf32>
    %30 = vector.shape_cast %27 : vector<4x16xf32> to vector<1x4x16xf32>
    tpu.vector_store %arg4[%c0_15, %c0_16, %c64], %30 {strides = array<i32>} : memref<1x4x256xf32, #tpu.memory_space<vmem>>, vector<1x4x16xf32>,
    %31 = vector.extract_strided_slice %10 {offsets = [0, 109], sizes = [4, 16], strides = [1, 1]} : vector<4x324xf32> to vector<4x16xf32>
    %c0_17 = arith.constant 0 : index
    %c0_18 = arith.constant 0 : index
    %c80 = arith.constant 80 : index
    %32 = vector.load %arg4[%c0_17, %c0_18, %c80] : memref<1x4x256xf32, #tpu.memory_space<vmem>>, vector<1x4x16xf32>
    %33 = vector.shape_cast %32 : vector<1x4x16xf32> to vector<4x16xf32>
    %34 = vector.shape_cast %31 : vector<4x16xf32> to vector<1x4x16xf32>
    tpu.vector_store %arg4[%c0_17, %c0_18, %c80], %34 {strides = array<i32>} : memref<1x4x256xf32, #tpu.memory_space<vmem>>, vector<1x4x16xf32>,
    %35 = vector.extract_strided_slice %10 {offsets = [0, 127], sizes = [4, 16], strides = [1, 1]} : vector<4x324xf32> to vector<4x16xf32>
    %c0_19 = arith.constant 0 : index
    %c0_20 = arith.constant 0 : index
    %c96 = arith.constant 96 : index
    %36 = vector.load %arg4[%c0_19, %c0_20, %c96] : memref<1x4x256xf32, #tpu.memory_space<vmem>>, vector<1x4x16xf32>
    %37 = vector.shape_cast %36 : vector<1x4x16xf32> to vector<4x16xf32>
    %38 = vector.shape_cast %35 : vector<4x16xf32> to vector<1x4x16xf32>
    tpu.vector_store %arg4[%c0_19, %c0_20, %c96], %38 {strides = array<i32>} : memref<1x4x256xf32, #tpu.memory_space<vmem>>, vector<1x4x16xf32>,
    %39 = vector.extract_strided_slice %10 {offsets = [0, 145], sizes = [4, 16], strides = [1, 1]} : vector<4x324xf32> to vector<4x16xf32>
    %c0_21 = arith.constant 0 : index
    %c0_22 = arith.constant 0 : index
    %c112 = arith.constant 112 : index
    %40 = vector.load %arg4[%c0_21, %c0_22, %c112] : memref<1x4x256xf32, #tpu.memory_space<vmem>>, vector<1x4x16xf32>
    %41 = vector.shape_cast %40 : vector<1x4x16xf32> to vector<4x16xf32>
    %42 = vector.shape_cast %39 : vector<4x16xf32> to vector<1x4x16xf32>
    tpu.vector_store %arg4[%c0_21, %c0_22, %c112], %42 {strides = array<i32>} : memref<1x4x256xf32, #tpu.memory_space<vmem>>, vector<1x4x16xf32>,
    %43 = vector.extract_strided_slice %10 {offsets = [0, 163], sizes = [4, 16], strides = [1, 1]} : vector<4x324xf32> to vector<4x16xf32>
    %c0_23 = arith.constant 0 : index
    %c0_24 = arith.constant 0 : index
    %c128 = arith.constant 128 : index
    %44 = vector.load %arg4[%c0_23, %c0_24, %c128] : memref<1x4x256xf32, #tpu.memory_space<vmem>>, vector<1x4x16xf32>
    %45 = vector.shape_cast %44 : vector<1x4x16xf32> to vector<4x16xf32>
    %46 = vector.shape_cast %43 : vector<4x16xf32> to vector<1x4x16xf32>
    tpu.vector_store %arg4[%c0_23, %c0_24, %c128], %46 {strides = array<i32>} : memref<1x4x256xf32, #tpu.memory_space<vmem>>, vector<1x4x16xf32>,
    %47 = vector.extract_strided_slice %10 {offsets = [0, 181], sizes = [4, 16], strides = [1, 1]} : vector<4x324xf32> to vector<4x16xf32>
    %c0_25 = arith.constant 0 : index
    %c0_26 = arith.constant 0 : index
    %c144 = arith.constant 144 : index
    %48 = vector.load %arg4[%c0_25, %c0_26, %c144] : memref<1x4x256xf32, #tpu.memory_space<vmem>>, vector<1x4x16xf32>
    %49 = vector.shape_cast %48 : vector<1x4x16xf32> to vector<4x16xf32>
    %50 = vector.shape_cast %47 : vector<4x16xf32> to vector<1x4x16xf32>
    tpu.vector_store %arg4[%c0_25, %c0_26, %c144], %50 {strides = array<i32>} : memref<1x4x256xf32, #tpu.memory_space<vmem>>, vector<1x4x16xf32>,
    %51 = vector.extract_strided_slice %10 {offsets = [0, 199], sizes = [4, 16], strides = [1, 1]} : vector<4x324xf32> to vector<4x16xf32>
    %c0_27 = arith.constant 0 : index
    %c0_28 = arith.constant 0 : index
    %c160 = arith.constant 160 : index
    %52 = vector.load %arg4[%c0_27, %c0_28, %c160] : memref<1x4x256xf32, #tpu.memory_space<vmem>>, vector<1x4x16xf32>
    %53 = vector.shape_cast %52 : vector<1x4x16xf32> to vector<4x16xf32>
    %54 = vector.shape_cast %51 : vector<4x16xf32> to vector<1x4x16xf32>
    tpu.vector_store %arg4[%c0_27, %c0_28, %c160], %54 {strides = array<i32>} : memref<1x4x256xf32, #tpu.memory_space<vmem>>, vector<1x4x16xf32>,
    %55 = vector.extract_strided_slice %10 {offsets = [0, 217], sizes = [4, 16], strides = [1, 1]} : vector<4x324xf32> to vector<4x16xf32>
    %c0_29 = arith.constant 0 : index
    %c0_30 = arith.constant 0 : index
    %c176 = arith.constant 176 : index
    %56 = vector.load %arg4[%c0_29, %c0_30, %c176] : memref<1x4x256xf32, #tpu.memory_space<vmem>>, vector<1x4x16xf32>
    %57 = vector.shape_cast %56 : vector<1x4x16xf32> to vector<4x16xf32>
    %58 = vector.shape_cast %55 : vector<4x16xf32> to vector<1x4x16xf32>
    tpu.vector_store %arg4[%c0_29, %c0_30, %c176], %58 {strides = array<i32>} : memref<1x4x256xf32, #tpu.memory_space<vmem>>, vector<1x4x16xf32>,
    %59 = vector.extract_strided_slice %10 {offsets = [0, 235], sizes = [4, 16], strides = [1, 1]} : vector<4x324xf32> to vector<4x16xf32>
    %c0_31 = arith.constant 0 : index
    %c0_32 = arith.constant 0 : index
    %c192 = arith.constant 192 : index
    %60 = vector.load %arg4[%c0_31, %c0_32, %c192] : memref<1x4x256xf32, #tpu.memory_space<vmem>>, vector<1x4x16xf32>
    %61 = vector.shape_cast %60 : vector<1x4x16xf32> to vector<4x16xf32>
    %62 = vector.shape_cast %59 : vector<4x16xf32> to vector<1x4x16xf32>
    tpu.vector_store %arg4[%c0_31, %c0_32, %c192], %62 {strides = array<i32>} : memref<1x4x256xf32, #tpu.memory_space<vmem>>, vector<1x4x16xf32>,
    %63 = vector.extract_strided_slice %10 {offsets = [0, 253], sizes = [4, 16], strides = [1, 1]} : vector<4x324xf32> to vector<4x16xf32>
    %c0_33 = arith.constant 0 : index
    %c0_34 = arith.constant 0 : index
    %c208 = arith.constant 208 : index
    %64 = vector.load %arg4[%c0_33, %c0_34, %c208] : memref<1x4x256xf32, #tpu.memory_space<vmem>>, vector<1x4x16xf32>
    %65 = vector.shape_cast %64 : vector<1x4x16xf32> to vector<4x16xf32>
    %66 = vector.shape_cast %63 : vector<4x16xf32> to vector<1x4x16xf32>
    tpu.vector_store %arg4[%c0_33, %c0_34, %c208], %66 {strides = array<i32>} : memref<1x4x256xf32, #tpu.memory_space<vmem>>, vector<1x4x16xf32>,
    %67 = vector.extract_strided_slice %10 {offsets = [0, 271], sizes = [4, 16], strides = [1, 1]} : vector<4x324xf32> to vector<4x16xf32>
    %c0_35 = arith.constant 0 : index
    %c0_36 = arith.constant 0 : index
    %c224 = arith.constant 224 : index
    %68 = vector.load %arg4[%c0_35, %c0_36, %c224] : memref<1x4x256xf32, #tpu.memory_space<vmem>>, vector<1x4x16xf32>
    %69 = vector.shape_cast %68 : vector<1x4x16xf32> to vector<4x16xf32>
    %70 = vector.shape_cast %67 : vector<4x16xf32> to vector<1x4x16xf32>
    tpu.vector_store %arg4[%c0_35, %c0_36, %c224], %70 {strides = array<i32>} : memref<1x4x256xf32, #tpu.memory_space<vmem>>, vector<1x4x16xf32>,
    %71 = vector.extract_strided_slice %10 {offsets = [0, 289], sizes = [4, 16], strides = [1, 1]} : vector<4x324xf32> to vector<4x16xf32>
    %c0_37 = arith.constant 0 : index
    %c0_38 = arith.constant 0 : index
    %c240 = arith.constant 240 : index
    %72 = vector.load %arg4[%c0_37, %c0_38, %c240] : memref<1x4x256xf32, #tpu.memory_space<vmem>>, vector<1x4x16xf32>
    %73 = vector.shape_cast %72 : vector<1x4x16xf32> to vector<4x16xf32>
    %74 = vector.shape_cast %71 : vector<4x16xf32> to vector<1x4x16xf32>
    tpu.vector_store %arg4[%c0_37, %c0_38, %c240], %74 {strides = array<i32>} : memref<1x4x256xf32, #tpu.memory_space<vmem>>, vector<1x4x16xf32>,
    return
  }
  func.func @transform_0(%arg0: i32) -> (i32, i32, i32) {
    %c0_i32 = arith.constant 0 : i32
    %c0_i32_0 = arith.constant 0 : i32
    %c0_i32_1 = arith.constant 0 : i32
    return %arg0, %c0_i32, %c0_i32_0 : i32, i32, i32
  }
  func.func @transform_1(%arg0: i32) -> (i32, i32) {
    %c0_i32 = arith.constant 0 : i32
    %c0_i32_0 = arith.constant 0 : i32
    %c0_i32_1 = arith.constant 0 : i32
    return %c0_i32, %c0_i32_0 : i32, i32
  }
  func.func @transform_2(%arg0: i32) -> (i32, i32) {
    %c0_i32 = arith.constant 0 : i32
    %c0_i32_0 = arith.constant 0 : i32
    %c0_i32_1 = arith.constant 0 : i32
    return %c0_i32, %c0_i32_0 : i32, i32
  }
  func.func @transform_3(%arg0: i32) -> (i32, i32, i32) {
    %c0_i32 = arith.constant 0 : i32
    %c0_i32_0 = arith.constant 0 : i32
    %c0_i32_1 = arith.constant 0 : i32
    return %arg0, %c0_i32, %c0_i32_0 : i32, i32, i32
  }
}

module attributes {stable_mosaic.version = 11 : i64} {
  func.func @_k1_deconv_conv1(%arg0: i32, %arg1: memref<1x16x144xbf16, #tpu.memory_space<vmem>>, %arg2: memref<1x4x288xbf16, #tpu.memory_space<vmem>>, %arg3: memref<2x4x16xbf16, #tpu.memory_space<vmem>>, %arg4: memref<9x4x4xbf16, #tpu.memory_space<vmem>>, %arg5: memref<9x4x4xbf16, #tpu.memory_space<vmem>>, %arg6: memref<1x324xf32, #tpu.memory_space<vmem>>, %arg7: memref<1x4x324xbf16, #tpu.memory_space<vmem>>, %arg8: memref<1x4x2xf32, #tpu.memory_space<vmem>>, %arg9: memref<4x362xbf16, #tpu.memory_space<vmem>>, %arg10: memref<4x362xbf16, #tpu.memory_space<vmem>>) attributes {dimension_semantics = [#tpu.dimension_semantics<parallel>], iteration_bounds = array<i64: 2>, scalar_prefetch = 0 : i64, scratch_operands = 2 : i64, tpu.core_type = #tpu.core_type<tc>, window_params = [{transform_indices = @transform_0, window_bounds = array<i64: 1, 16, 144>}, {transform_indices = @transform_1, window_bounds = array<i64: 1, 4, 288>}, {pipeline_mode = #tpu.pipeline_mode<synchronous>, transform_indices = @transform_2, window_bounds = array<i64: 2, 4, 16>}, {pipeline_mode = #tpu.pipeline_mode<synchronous>, transform_indices = @transform_3, window_bounds = array<i64: 9, 4, 4>}, {pipeline_mode = #tpu.pipeline_mode<synchronous>, transform_indices = @transform_4, window_bounds = array<i64: 9, 4, 4>}, {pipeline_mode = #tpu.pipeline_mode<synchronous>, transform_indices = @transform_5, window_bounds = array<i64: 1, 324>}, {transform_indices = @transform_6, window_bounds = array<i64: 1, 4, 324>}, {transform_indices = @transform_7, window_bounds = array<i64: 1, 4, 2>}]} {
    %c0 = arith.constant 0 : index
    %c0_0 = arith.constant 0 : index
    %c0_1 = arith.constant 0 : index
    %0 = vector.load %arg1[%c0, %c0_0, %c0_1] : memref<1x16x144xbf16, #tpu.memory_space<vmem>>, vector<1x16x144xbf16>
    %1 = vector.shape_cast %0 : vector<1x16x144xbf16> to vector<16x144xbf16>
    %c0_2 = arith.constant 0 : index
    %c0_3 = arith.constant 0 : index
    %c0_4 = arith.constant 0 : index
    %2 = vector.load %arg3[%c0_2, %c0_3, %c0_4] : memref<2x4x16xbf16, #tpu.memory_space<vmem>>, vector<1x4x16xbf16>
    %3 = vector.shape_cast %2 : vector<1x4x16xbf16> to vector<4x16xbf16>
    %cst = arith.constant dense<0.000000e+00> : vector<4x144xf32>
    %4 = tpu.matmul %3, %1, %cst {dimension_numbers = #tpu.dot_dimension_numbers<[1], [0], [0], [1], [0, 0, 1, 1], [], []>} : vector<4x16xbf16>, vector<16x144xbf16>, vector<4x144xf32> -> vector<4x144xf32>
    %5 = arith.truncf %4 : vector<4x144xf32> to vector<4x144xbf16>
    %c1 = arith.constant 1 : index
    %c0_5 = arith.constant 0 : index
    %c0_6 = arith.constant 0 : index
    %6 = vector.load %arg3[%c1, %c0_5, %c0_6] : memref<2x4x16xbf16, #tpu.memory_space<vmem>>, vector<1x4x16xbf16>
    %7 = vector.shape_cast %6 : vector<1x4x16xbf16> to vector<4x16xbf16>
    %cst_7 = arith.constant dense<0.000000e+00> : vector<4x144xf32>
    %8 = tpu.matmul %7, %1, %cst_7 {dimension_numbers = #tpu.dot_dimension_numbers<[1], [0], [0], [1], [0, 0, 1, 1], [], []>} : vector<4x16xbf16>, vector<16x144xbf16>, vector<4x144xf32> -> vector<4x144xf32>
    %9 = arith.truncf %8 : vector<4x144xf32> to vector<4x144xbf16>
    %cst_8 = arith.constant 0.000000e+00 : bf16
    %10 = vector.broadcast %cst_8 : bf16 to vector<4x37xbf16>
    %cst_9 = arith.constant 0.000000e+00 : bf16
    %11 = vector.broadcast %cst_9 : bf16 to vector<4x37xbf16>
    %c0_10 = arith.constant 0 : index
    %c0_11 = arith.constant 0 : index
    %12 = vector.load %arg9[%c0_10, %c0_11] : memref<4x362xbf16, #tpu.memory_space<vmem>>, vector<4x37xbf16>
    tpu.vector_store %arg9[%c0_10, %c0_11], %10 {strides = array<i32>} : memref<4x362xbf16, #tpu.memory_space<vmem>>, vector<4x37xbf16>,
    %c0_12 = arith.constant 0 : index
    %c325 = arith.constant 325 : index
    %13 = vector.load %arg9[%c0_12, %c325] : memref<4x362xbf16, #tpu.memory_space<vmem>>, vector<4x37xbf16>
    tpu.vector_store %arg9[%c0_12, %c325], %11 {strides = array<i32>} : memref<4x362xbf16, #tpu.memory_space<vmem>>, vector<4x37xbf16>,
    %c0_13 = arith.constant 0 : index
    %c0_14 = arith.constant 0 : index
    %14 = vector.load %arg10[%c0_13, %c0_14] : memref<4x362xbf16, #tpu.memory_space<vmem>>, vector<4x37xbf16>
    tpu.vector_store %arg10[%c0_13, %c0_14], %10 {strides = array<i32>} : memref<4x362xbf16, #tpu.memory_space<vmem>>, vector<4x37xbf16>,
    %c0_15 = arith.constant 0 : index
    %c325_16 = arith.constant 325 : index
    %15 = vector.load %arg10[%c0_15, %c325_16] : memref<4x362xbf16, #tpu.memory_space<vmem>>, vector<4x37xbf16>
    tpu.vector_store %arg10[%c0_15, %c325_16], %11 {strides = array<i32>} : memref<4x362xbf16, #tpu.memory_space<vmem>>, vector<4x37xbf16>,
    %c0_17 = arith.constant 0 : index
    %c0_18 = arith.constant 0 : index
    %c0_19 = arith.constant 0 : index
    %16 = vector.load %arg2[%c0_17, %c0_18, %c0_19] : memref<1x4x288xbf16, #tpu.memory_space<vmem>>, vector<1x4x288xbf16>
    %17 = vector.shape_cast %16 : vector<1x4x288xbf16> to vector<4x288xbf16>
    %c0_20 = arith.constant 0 : index
    %c37 = arith.constant 37 : index
    %18 = vector.load %arg10[%c0_20, %c37] : memref<4x362xbf16, #tpu.memory_space<vmem>>, vector<4x288xbf16>
    tpu.vector_store %arg10[%c0_20, %c37], %17 {strides = array<i32>} : memref<4x362xbf16, #tpu.memory_space<vmem>>, vector<4x288xbf16>,
    %19 = vector.extract_strided_slice %5 {offsets = [0, 0], sizes = [4, 18], strides = [1, 1]} : vector<4x144xbf16> to vector<4x18xbf16>
    %c0_21 = arith.constant 0 : index
    %c37_22 = arith.constant 37 : index
    %20 = vector.load %arg9[%c0_21, %c37_22] : memref<4x362xbf16, #tpu.memory_space<vmem>>, vector<4x18xbf16>
    tpu.vector_store %arg9[%c0_21, %c37_22], %19 {strides = array<i32>} : memref<4x362xbf16, #tpu.memory_space<vmem>>, vector<4x18xbf16>,
    %21 = vector.extract_strided_slice %9 {offsets = [0, 0], sizes = [4, 18], strides = [1, 1]} : vector<4x144xbf16> to vector<4x18xbf16>
    %c0_23 = arith.constant 0 : index
    %c55 = arith.constant 55 : index
    %22 = vector.load %arg9[%c0_23, %c55] : memref<4x362xbf16, #tpu.memory_space<vmem>>, vector<4x18xbf16>
    tpu.vector_store %arg9[%c0_23, %c55], %21 {strides = array<i32>} : memref<4x362xbf16, #tpu.memory_space<vmem>>, vector<4x18xbf16>,
    %23 = vector.extract_strided_slice %5 {offsets = [0, 18], sizes = [4, 18], strides = [1, 1]} : vector<4x144xbf16> to vector<4x18xbf16>
    %c0_24 = arith.constant 0 : index
    %c73 = arith.constant 73 : index
    %24 = vector.load %arg9[%c0_24, %c73] : memref<4x362xbf16, #tpu.memory_space<vmem>>, vector<4x18xbf16>
    tpu.vector_store %arg9[%c0_24, %c73], %23 {strides = array<i32>} : memref<4x362xbf16, #tpu.memory_space<vmem>>, vector<4x18xbf16>,
    %25 = vector.extract_strided_slice %9 {offsets = [0, 18], sizes = [4, 18], strides = [1, 1]} : vector<4x144xbf16> to vector<4x18xbf16>
    %c0_25 = arith.constant 0 : index
    %c91 = arith.constant 91 : index
    %26 = vector.load %arg9[%c0_25, %c91] : memref<4x362xbf16, #tpu.memory_space<vmem>>, vector<4x18xbf16>
    tpu.vector_store %arg9[%c0_25, %c91], %25 {strides = array<i32>} : memref<4x362xbf16, #tpu.memory_space<vmem>>, vector<4x18xbf16>,
    %27 = vector.extract_strided_slice %5 {offsets = [0, 36], sizes = [4, 18], strides = [1, 1]} : vector<4x144xbf16> to vector<4x18xbf16>
    %c0_26 = arith.constant 0 : index
    %c109 = arith.constant 109 : index
    %28 = vector.load %arg9[%c0_26, %c109] : memref<4x362xbf16, #tpu.memory_space<vmem>>, vector<4x18xbf16>
    tpu.vector_store %arg9[%c0_26, %c109], %27 {strides = array<i32>} : memref<4x362xbf16, #tpu.memory_space<vmem>>, vector<4x18xbf16>,
    %29 = vector.extract_strided_slice %9 {offsets = [0, 36], sizes = [4, 18], strides = [1, 1]} : vector<4x144xbf16> to vector<4x18xbf16>
    %c0_27 = arith.constant 0 : index
    %c127 = arith.constant 127 : index
    %30 = vector.load %arg9[%c0_27, %c127] : memref<4x362xbf16, #tpu.memory_space<vmem>>, vector<4x18xbf16>
    tpu.vector_store %arg9[%c0_27, %c127], %29 {strides = array<i32>} : memref<4x362xbf16, #tpu.memory_space<vmem>>, vector<4x18xbf16>,
    %31 = vector.extract_strided_slice %5 {offsets = [0, 54], sizes = [4, 18], strides = [1, 1]} : vector<4x144xbf16> to vector<4x18xbf16>
    %c0_28 = arith.constant 0 : index
    %c145 = arith.constant 145 : index
    %32 = vector.load %arg9[%c0_28, %c145] : memref<4x362xbf16, #tpu.memory_space<vmem>>, vector<4x18xbf16>
    tpu.vector_store %arg9[%c0_28, %c145], %31 {strides = array<i32>} : memref<4x362xbf16, #tpu.memory_space<vmem>>, vector<4x18xbf16>,
    %33 = vector.extract_strided_slice %9 {offsets = [0, 54], sizes = [4, 18], strides = [1, 1]} : vector<4x144xbf16> to vector<4x18xbf16>
    %c0_29 = arith.constant 0 : index
    %c163 = arith.constant 163 : index
    %34 = vector.load %arg9[%c0_29, %c163] : memref<4x362xbf16, #tpu.memory_space<vmem>>, vector<4x18xbf16>
    tpu.vector_store %arg9[%c0_29, %c163], %33 {strides = array<i32>} : memref<4x362xbf16, #tpu.memory_space<vmem>>, vector<4x18xbf16>,
    %35 = vector.extract_strided_slice %5 {offsets = [0, 72], sizes = [4, 18], strides = [1, 1]} : vector<4x144xbf16> to vector<4x18xbf16>
    %c0_30 = arith.constant 0 : index
    %c181 = arith.constant 181 : index
    %36 = vector.load %arg9[%c0_30, %c181] : memref<4x362xbf16, #tpu.memory_space<vmem>>, vector<4x18xbf16>
    tpu.vector_store %arg9[%c0_30, %c181], %35 {strides = array<i32>} : memref<4x362xbf16, #tpu.memory_space<vmem>>, vector<4x18xbf16>,
    %37 = vector.extract_strided_slice %9 {offsets = [0, 72], sizes = [4, 18], strides = [1, 1]} : vector<4x144xbf16> to vector<4x18xbf16>
    %c0_31 = arith.constant 0 : index
    %c199 = arith.constant 199 : index
    %38 = vector.load %arg9[%c0_31, %c199] : memref<4x362xbf16, #tpu.memory_space<vmem>>, vector<4x18xbf16>
    tpu.vector_store %arg9[%c0_31, %c199], %37 {strides = array<i32>} : memref<4x362xbf16, #tpu.memory_space<vmem>>, vector<4x18xbf16>,
    %39 = vector.extract_strided_slice %5 {offsets = [0, 90], sizes = [4, 18], strides = [1, 1]} : vector<4x144xbf16> to vector<4x18xbf16>
    %c0_32 = arith.constant 0 : index
    %c217 = arith.constant 217 : index
    %40 = vector.load %arg9[%c0_32, %c217] : memref<4x362xbf16, #tpu.memory_space<vmem>>, vector<4x18xbf16>
    tpu.vector_store %arg9[%c0_32, %c217], %39 {strides = array<i32>} : memref<4x362xbf16, #tpu.memory_space<vmem>>, vector<4x18xbf16>,
    %41 = vector.extract_strided_slice %9 {offsets = [0, 90], sizes = [4, 18], strides = [1, 1]} : vector<4x144xbf16> to vector<4x18xbf16>
    %c0_33 = arith.constant 0 : index
    %c235 = arith.constant 235 : index
    %42 = vector.load %arg9[%c0_33, %c235] : memref<4x362xbf16, #tpu.memory_space<vmem>>, vector<4x18xbf16>
    tpu.vector_store %arg9[%c0_33, %c235], %41 {strides = array<i32>} : memref<4x362xbf16, #tpu.memory_space<vmem>>, vector<4x18xbf16>,
    %43 = vector.extract_strided_slice %5 {offsets = [0, 108], sizes = [4, 18], strides = [1, 1]} : vector<4x144xbf16> to vector<4x18xbf16>
    %c0_34 = arith.constant 0 : index
    %c253 = arith.constant 253 : index
    %44 = vector.load %arg9[%c0_34, %c253] : memref<4x362xbf16, #tpu.memory_space<vmem>>, vector<4x18xbf16>
    tpu.vector_store %arg9[%c0_34, %c253], %43 {strides = array<i32>} : memref<4x362xbf16, #tpu.memory_space<vmem>>, vector<4x18xbf16>,
    %45 = vector.extract_strided_slice %9 {offsets = [0, 108], sizes = [4, 18], strides = [1, 1]} : vector<4x144xbf16> to vector<4x18xbf16>
    %c0_35 = arith.constant 0 : index
    %c271 = arith.constant 271 : index
    %46 = vector.load %arg9[%c0_35, %c271] : memref<4x362xbf16, #tpu.memory_space<vmem>>, vector<4x18xbf16>
    tpu.vector_store %arg9[%c0_35, %c271], %45 {strides = array<i32>} : memref<4x362xbf16, #tpu.memory_space<vmem>>, vector<4x18xbf16>,
    %47 = vector.extract_strided_slice %5 {offsets = [0, 126], sizes = [4, 18], strides = [1, 1]} : vector<4x144xbf16> to vector<4x18xbf16>
    %c0_36 = arith.constant 0 : index
    %c289 = arith.constant 289 : index
    %48 = vector.load %arg9[%c0_36, %c289] : memref<4x362xbf16, #tpu.memory_space<vmem>>, vector<4x18xbf16>
    tpu.vector_store %arg9[%c0_36, %c289], %47 {strides = array<i32>} : memref<4x362xbf16, #tpu.memory_space<vmem>>, vector<4x18xbf16>,
    %49 = vector.extract_strided_slice %9 {offsets = [0, 126], sizes = [4, 18], strides = [1, 1]} : vector<4x144xbf16> to vector<4x18xbf16>
    %c0_37 = arith.constant 0 : index
    %c307 = arith.constant 307 : index
    %50 = vector.load %arg9[%c0_37, %c307] : memref<4x362xbf16, #tpu.memory_space<vmem>>, vector<4x18xbf16>
    tpu.vector_store %arg9[%c0_37, %c307], %49 {strides = array<i32>} : memref<4x362xbf16, #tpu.memory_space<vmem>>, vector<4x18xbf16>,
    %cst_38 = arith.constant 0.000000e+00 : f32
    %51 = vector.broadcast %cst_38 : f32 to vector<4x324xf32>
    %c0_39 = arith.constant 0 : index
    %c0_40 = arith.constant 0 : index
    %c0_41 = arith.constant 0 : index
    %52 = vector.load %arg4[%c0_39, %c0_40, %c0_41] : memref<9x4x4xbf16, #tpu.memory_space<vmem>>, vector<1x4x4xbf16>
    %53 = vector.shape_cast %52 : vector<1x4x4xbf16> to vector<4x4xbf16>
    %c0_42 = arith.constant 0 : index
    %c0_43 = arith.constant 0 : index
    %54 = vector.load %arg9[%c0_42, %c0_43] : memref<4x362xbf16, #tpu.memory_space<vmem>>, vector<4x324xbf16>
    %cst_44 = arith.constant dense<0.000000e+00> : vector<4x324xf32>
    %55 = tpu.matmul %53, %54, %cst_44 {dimension_numbers = #tpu.dot_dimension_numbers<[1], [0], [0], [1], [0, 0, 1, 1], [], []>} : vector<4x4xbf16>, vector<4x324xbf16>, vector<4x324xf32> -> vector<4x324xf32>
    %56 = arith.addf %51, %55 : vector<4x324xf32>
    %c0_45 = arith.constant 0 : index
    %c0_46 = arith.constant 0 : index
    %c0_47 = arith.constant 0 : index
    %57 = vector.load %arg5[%c0_45, %c0_46, %c0_47] : memref<9x4x4xbf16, #tpu.memory_space<vmem>>, vector<1x4x4xbf16>
    %58 = vector.shape_cast %57 : vector<1x4x4xbf16> to vector<4x4xbf16>
    %c0_48 = arith.constant 0 : index
    %c0_49 = arith.constant 0 : index
    %59 = vector.load %arg10[%c0_48, %c0_49] : memref<4x362xbf16, #tpu.memory_space<vmem>>, vector<4x324xbf16>
    %cst_50 = arith.constant dense<0.000000e+00> : vector<4x324xf32>
    %60 = tpu.matmul %58, %59, %cst_50 {dimension_numbers = #tpu.dot_dimension_numbers<[1], [0], [0], [1], [0, 0, 1, 1], [], []>} : vector<4x4xbf16>, vector<4x324xbf16>, vector<4x324xf32> -> vector<4x324xf32>
    %61 = arith.addf %56, %60 : vector<4x324xf32>
    %c1_51 = arith.constant 1 : index
    %c0_52 = arith.constant 0 : index
    %c0_53 = arith.constant 0 : index
    %62 = vector.load %arg4[%c1_51, %c0_52, %c0_53] : memref<9x4x4xbf16, #tpu.memory_space<vmem>>, vector<1x4x4xbf16>
    %63 = vector.shape_cast %62 : vector<1x4x4xbf16> to vector<4x4xbf16>
    %c0_54 = arith.constant 0 : index
    %c1_55 = arith.constant 1 : index
    %64 = vector.load %arg9[%c0_54, %c1_55] : memref<4x362xbf16, #tpu.memory_space<vmem>>, vector<4x324xbf16>
    %cst_56 = arith.constant dense<0.000000e+00> : vector<4x324xf32>
    %65 = tpu.matmul %63, %64, %cst_56 {dimension_numbers = #tpu.dot_dimension_numbers<[1], [0], [0], [1], [0, 0, 1, 1], [], []>} : vector<4x4xbf16>, vector<4x324xbf16>, vector<4x324xf32> -> vector<4x324xf32>
    %66 = arith.addf %61, %65 : vector<4x324xf32>
    %c1_57 = arith.constant 1 : index
    %c0_58 = arith.constant 0 : index
    %c0_59 = arith.constant 0 : index
    %67 = vector.load %arg5[%c1_57, %c0_58, %c0_59] : memref<9x4x4xbf16, #tpu.memory_space<vmem>>, vector<1x4x4xbf16>
    %68 = vector.shape_cast %67 : vector<1x4x4xbf16> to vector<4x4xbf16>
    %c0_60 = arith.constant 0 : index
    %c1_61 = arith.constant 1 : index
    %69 = vector.load %arg10[%c0_60, %c1_61] : memref<4x362xbf16, #tpu.memory_space<vmem>>, vector<4x324xbf16>
    %cst_62 = arith.constant dense<0.000000e+00> : vector<4x324xf32>
    %70 = tpu.matmul %68, %69, %cst_62 {dimension_numbers = #tpu.dot_dimension_numbers<[1], [0], [0], [1], [0, 0, 1, 1], [], []>} : vector<4x4xbf16>, vector<4x324xbf16>, vector<4x324xf32> -> vector<4x324xf32>
    %71 = arith.addf %66, %70 : vector<4x324xf32>
    %c2 = arith.constant 2 : index
    %c0_63 = arith.constant 0 : index
    %c0_64 = arith.constant 0 : index
    %72 = vector.load %arg4[%c2, %c0_63, %c0_64] : memref<9x4x4xbf16, #tpu.memory_space<vmem>>, vector<1x4x4xbf16>
    %73 = vector.shape_cast %72 : vector<1x4x4xbf16> to vector<4x4xbf16>
    %c0_65 = arith.constant 0 : index
    %c2_66 = arith.constant 2 : index
    %74 = vector.load %arg9[%c0_65, %c2_66] : memref<4x362xbf16, #tpu.memory_space<vmem>>, vector<4x324xbf16>
    %cst_67 = arith.constant dense<0.000000e+00> : vector<4x324xf32>
    %75 = tpu.matmul %73, %74, %cst_67 {dimension_numbers = #tpu.dot_dimension_numbers<[1], [0], [0], [1], [0, 0, 1, 1], [], []>} : vector<4x4xbf16>, vector<4x324xbf16>, vector<4x324xf32> -> vector<4x324xf32>
    %76 = arith.addf %71, %75 : vector<4x324xf32>
    %c2_68 = arith.constant 2 : index
    %c0_69 = arith.constant 0 : index
    %c0_70 = arith.constant 0 : index
    %77 = vector.load %arg5[%c2_68, %c0_69, %c0_70] : memref<9x4x4xbf16, #tpu.memory_space<vmem>>, vector<1x4x4xbf16>
    %78 = vector.shape_cast %77 : vector<1x4x4xbf16> to vector<4x4xbf16>
    %c0_71 = arith.constant 0 : index
    %c2_72 = arith.constant 2 : index
    %79 = vector.load %arg10[%c0_71, %c2_72] : memref<4x362xbf16, #tpu.memory_space<vmem>>, vector<4x324xbf16>
    %cst_73 = arith.constant dense<0.000000e+00> : vector<4x324xf32>
    %80 = tpu.matmul %78, %79, %cst_73 {dimension_numbers = #tpu.dot_dimension_numbers<[1], [0], [0], [1], [0, 0, 1, 1], [], []>} : vector<4x4xbf16>, vector<4x324xbf16>, vector<4x324xf32> -> vector<4x324xf32>
    %81 = arith.addf %76, %80 : vector<4x324xf32>
    %c3 = arith.constant 3 : index
    %c0_74 = arith.constant 0 : index
    %c0_75 = arith.constant 0 : index
    %82 = vector.load %arg4[%c3, %c0_74, %c0_75] : memref<9x4x4xbf16, #tpu.memory_space<vmem>>, vector<1x4x4xbf16>
    %83 = vector.shape_cast %82 : vector<1x4x4xbf16> to vector<4x4xbf16>
    %c0_76 = arith.constant 0 : index
    %c18 = arith.constant 18 : index
    %84 = vector.load %arg9[%c0_76, %c18] : memref<4x362xbf16, #tpu.memory_space<vmem>>, vector<4x324xbf16>
    %cst_77 = arith.constant dense<0.000000e+00> : vector<4x324xf32>
    %85 = tpu.matmul %83, %84, %cst_77 {dimension_numbers = #tpu.dot_dimension_numbers<[1], [0], [0], [1], [0, 0, 1, 1], [], []>} : vector<4x4xbf16>, vector<4x324xbf16>, vector<4x324xf32> -> vector<4x324xf32>
    %86 = arith.addf %81, %85 : vector<4x324xf32>
    %c3_78 = arith.constant 3 : index
    %c0_79 = arith.constant 0 : index
    %c0_80 = arith.constant 0 : index
    %87 = vector.load %arg5[%c3_78, %c0_79, %c0_80] : memref<9x4x4xbf16, #tpu.memory_space<vmem>>, vector<1x4x4xbf16>
    %88 = vector.shape_cast %87 : vector<1x4x4xbf16> to vector<4x4xbf16>
    %c0_81 = arith.constant 0 : index
    %c18_82 = arith.constant 18 : index
    %89 = vector.load %arg10[%c0_81, %c18_82] : memref<4x362xbf16, #tpu.memory_space<vmem>>, vector<4x324xbf16>
    %cst_83 = arith.constant dense<0.000000e+00> : vector<4x324xf32>
    %90 = tpu.matmul %88, %89, %cst_83 {dimension_numbers = #tpu.dot_dimension_numbers<[1], [0], [0], [1], [0, 0, 1, 1], [], []>} : vector<4x4xbf16>, vector<4x324xbf16>, vector<4x324xf32> -> vector<4x324xf32>
    %91 = arith.addf %86, %90 : vector<4x324xf32>
    %c4 = arith.constant 4 : index
    %c0_84 = arith.constant 0 : index
    %c0_85 = arith.constant 0 : index
    %92 = vector.load %arg4[%c4, %c0_84, %c0_85] : memref<9x4x4xbf16, #tpu.memory_space<vmem>>, vector<1x4x4xbf16>
    %93 = vector.shape_cast %92 : vector<1x4x4xbf16> to vector<4x4xbf16>
    %c0_86 = arith.constant 0 : index
    %c19 = arith.constant 19 : index
    %94 = vector.load %arg9[%c0_86, %c19] : memref<4x362xbf16, #tpu.memory_space<vmem>>, vector<4x324xbf16>
    %cst_87 = arith.constant dense<0.000000e+00> : vector<4x324xf32>
    %95 = tpu.matmul %93, %94, %cst_87 {dimension_numbers = #tpu.dot_dimension_numbers<[1], [0], [0], [1], [0, 0, 1, 1], [], []>} : vector<4x4xbf16>, vector<4x324xbf16>, vector<4x324xf32> -> vector<4x324xf32>
    %96 = arith.addf %91, %95 : vector<4x324xf32>
    %c4_88 = arith.constant 4 : index
    %c0_89 = arith.constant 0 : index
    %c0_90 = arith.constant 0 : index
    %97 = vector.load %arg5[%c4_88, %c0_89, %c0_90] : memref<9x4x4xbf16, #tpu.memory_space<vmem>>, vector<1x4x4xbf16>
    %98 = vector.shape_cast %97 : vector<1x4x4xbf16> to vector<4x4xbf16>
    %c0_91 = arith.constant 0 : index
    %c19_92 = arith.constant 19 : index
    %99 = vector.load %arg10[%c0_91, %c19_92] : memref<4x362xbf16, #tpu.memory_space<vmem>>, vector<4x324xbf16>
    %cst_93 = arith.constant dense<0.000000e+00> : vector<4x324xf32>
    %100 = tpu.matmul %98, %99, %cst_93 {dimension_numbers = #tpu.dot_dimension_numbers<[1], [0], [0], [1], [0, 0, 1, 1], [], []>} : vector<4x4xbf16>, vector<4x324xbf16>, vector<4x324xf32> -> vector<4x324xf32>
    %101 = arith.addf %96, %100 : vector<4x324xf32>
    %c5 = arith.constant 5 : index
    %c0_94 = arith.constant 0 : index
    %c0_95 = arith.constant 0 : index
    %102 = vector.load %arg4[%c5, %c0_94, %c0_95] : memref<9x4x4xbf16, #tpu.memory_space<vmem>>, vector<1x4x4xbf16>
    %103 = vector.shape_cast %102 : vector<1x4x4xbf16> to vector<4x4xbf16>
    %c0_96 = arith.constant 0 : index
    %c20 = arith.constant 20 : index
    %104 = vector.load %arg9[%c0_96, %c20] : memref<4x362xbf16, #tpu.memory_space<vmem>>, vector<4x324xbf16>
    %cst_97 = arith.constant dense<0.000000e+00> : vector<4x324xf32>
    %105 = tpu.matmul %103, %104, %cst_97 {dimension_numbers = #tpu.dot_dimension_numbers<[1], [0], [0], [1], [0, 0, 1, 1], [], []>} : vector<4x4xbf16>, vector<4x324xbf16>, vector<4x324xf32> -> vector<4x324xf32>
    %106 = arith.addf %101, %105 : vector<4x324xf32>
    %c5_98 = arith.constant 5 : index
    %c0_99 = arith.constant 0 : index
    %c0_100 = arith.constant 0 : index
    %107 = vector.load %arg5[%c5_98, %c0_99, %c0_100] : memref<9x4x4xbf16, #tpu.memory_space<vmem>>, vector<1x4x4xbf16>
    %108 = vector.shape_cast %107 : vector<1x4x4xbf16> to vector<4x4xbf16>
    %c0_101 = arith.constant 0 : index
    %c20_102 = arith.constant 20 : index
    %109 = vector.load %arg10[%c0_101, %c20_102] : memref<4x362xbf16, #tpu.memory_space<vmem>>, vector<4x324xbf16>
    %cst_103 = arith.constant dense<0.000000e+00> : vector<4x324xf32>
    %110 = tpu.matmul %108, %109, %cst_103 {dimension_numbers = #tpu.dot_dimension_numbers<[1], [0], [0], [1], [0, 0, 1, 1], [], []>} : vector<4x4xbf16>, vector<4x324xbf16>, vector<4x324xf32> -> vector<4x324xf32>
    %111 = arith.addf %106, %110 : vector<4x324xf32>
    %c6 = arith.constant 6 : index
    %c0_104 = arith.constant 0 : index
    %c0_105 = arith.constant 0 : index
    %112 = vector.load %arg4[%c6, %c0_104, %c0_105] : memref<9x4x4xbf16, #tpu.memory_space<vmem>>, vector<1x4x4xbf16>
    %113 = vector.shape_cast %112 : vector<1x4x4xbf16> to vector<4x4xbf16>
    %c0_106 = arith.constant 0 : index
    %c36 = arith.constant 36 : index
    %114 = vector.load %arg9[%c0_106, %c36] : memref<4x362xbf16, #tpu.memory_space<vmem>>, vector<4x324xbf16>
    %cst_107 = arith.constant dense<0.000000e+00> : vector<4x324xf32>
    %115 = tpu.matmul %113, %114, %cst_107 {dimension_numbers = #tpu.dot_dimension_numbers<[1], [0], [0], [1], [0, 0, 1, 1], [], []>} : vector<4x4xbf16>, vector<4x324xbf16>, vector<4x324xf32> -> vector<4x324xf32>
    %116 = arith.addf %111, %115 : vector<4x324xf32>
    %c6_108 = arith.constant 6 : index
    %c0_109 = arith.constant 0 : index
    %c0_110 = arith.constant 0 : index
    %117 = vector.load %arg5[%c6_108, %c0_109, %c0_110] : memref<9x4x4xbf16, #tpu.memory_space<vmem>>, vector<1x4x4xbf16>
    %118 = vector.shape_cast %117 : vector<1x4x4xbf16> to vector<4x4xbf16>
    %c0_111 = arith.constant 0 : index
    %c36_112 = arith.constant 36 : index
    %119 = vector.load %arg10[%c0_111, %c36_112] : memref<4x362xbf16, #tpu.memory_space<vmem>>, vector<4x324xbf16>
    %cst_113 = arith.constant dense<0.000000e+00> : vector<4x324xf32>
    %120 = tpu.matmul %118, %119, %cst_113 {dimension_numbers = #tpu.dot_dimension_numbers<[1], [0], [0], [1], [0, 0, 1, 1], [], []>} : vector<4x4xbf16>, vector<4x324xbf16>, vector<4x324xf32> -> vector<4x324xf32>
    %121 = arith.addf %116, %120 : vector<4x324xf32>
    %c7 = arith.constant 7 : index
    %c0_114 = arith.constant 0 : index
    %c0_115 = arith.constant 0 : index
    %122 = vector.load %arg4[%c7, %c0_114, %c0_115] : memref<9x4x4xbf16, #tpu.memory_space<vmem>>, vector<1x4x4xbf16>
    %123 = vector.shape_cast %122 : vector<1x4x4xbf16> to vector<4x4xbf16>
    %c0_116 = arith.constant 0 : index
    %c37_117 = arith.constant 37 : index
    %124 = vector.load %arg9[%c0_116, %c37_117] : memref<4x362xbf16, #tpu.memory_space<vmem>>, vector<4x324xbf16>
    %cst_118 = arith.constant dense<0.000000e+00> : vector<4x324xf32>
    %125 = tpu.matmul %123, %124, %cst_118 {dimension_numbers = #tpu.dot_dimension_numbers<[1], [0], [0], [1], [0, 0, 1, 1], [], []>} : vector<4x4xbf16>, vector<4x324xbf16>, vector<4x324xf32> -> vector<4x324xf32>
    %126 = arith.addf %121, %125 : vector<4x324xf32>
    %c7_119 = arith.constant 7 : index
    %c0_120 = arith.constant 0 : index
    %c0_121 = arith.constant 0 : index
    %127 = vector.load %arg5[%c7_119, %c0_120, %c0_121] : memref<9x4x4xbf16, #tpu.memory_space<vmem>>, vector<1x4x4xbf16>
    %128 = vector.shape_cast %127 : vector<1x4x4xbf16> to vector<4x4xbf16>
    %c0_122 = arith.constant 0 : index
    %c37_123 = arith.constant 37 : index
    %129 = vector.load %arg10[%c0_122, %c37_123] : memref<4x362xbf16, #tpu.memory_space<vmem>>, vector<4x324xbf16>
    %cst_124 = arith.constant dense<0.000000e+00> : vector<4x324xf32>
    %130 = tpu.matmul %128, %129, %cst_124 {dimension_numbers = #tpu.dot_dimension_numbers<[1], [0], [0], [1], [0, 0, 1, 1], [], []>} : vector<4x4xbf16>, vector<4x324xbf16>, vector<4x324xf32> -> vector<4x324xf32>
    %131 = arith.addf %126, %130 : vector<4x324xf32>
    %c8 = arith.constant 8 : index
    %c0_125 = arith.constant 0 : index
    %c0_126 = arith.constant 0 : index
    %132 = vector.load %arg4[%c8, %c0_125, %c0_126] : memref<9x4x4xbf16, #tpu.memory_space<vmem>>, vector<1x4x4xbf16>
    %133 = vector.shape_cast %132 : vector<1x4x4xbf16> to vector<4x4xbf16>
    %c0_127 = arith.constant 0 : index
    %c38 = arith.constant 38 : index
    %134 = vector.load %arg9[%c0_127, %c38] : memref<4x362xbf16, #tpu.memory_space<vmem>>, vector<4x324xbf16>
    %cst_128 = arith.constant dense<0.000000e+00> : vector<4x324xf32>
    %135 = tpu.matmul %133, %134, %cst_128 {dimension_numbers = #tpu.dot_dimension_numbers<[1], [0], [0], [1], [0, 0, 1, 1], [], []>} : vector<4x4xbf16>, vector<4x324xbf16>, vector<4x324xf32> -> vector<4x324xf32>
    %136 = arith.addf %131, %135 : vector<4x324xf32>
    %c8_129 = arith.constant 8 : index
    %c0_130 = arith.constant 0 : index
    %c0_131 = arith.constant 0 : index
    %137 = vector.load %arg5[%c8_129, %c0_130, %c0_131] : memref<9x4x4xbf16, #tpu.memory_space<vmem>>, vector<1x4x4xbf16>
    %138 = vector.shape_cast %137 : vector<1x4x4xbf16> to vector<4x4xbf16>
    %c0_132 = arith.constant 0 : index
    %c38_133 = arith.constant 38 : index
    %139 = vector.load %arg10[%c0_132, %c38_133] : memref<4x362xbf16, #tpu.memory_space<vmem>>, vector<4x324xbf16>
    %cst_134 = arith.constant dense<0.000000e+00> : vector<4x324xf32>
    %140 = tpu.matmul %138, %139, %cst_134 {dimension_numbers = #tpu.dot_dimension_numbers<[1], [0], [0], [1], [0, 0, 1, 1], [], []>} : vector<4x4xbf16>, vector<4x324xbf16>, vector<4x324xf32> -> vector<4x324xf32>
    %141 = arith.addf %136, %140 : vector<4x324xf32>
    %c0_135 = arith.constant 0 : index
    %c0_136 = arith.constant 0 : index
    %142 = vector.load %arg6[%c0_135, %c0_136] : memref<1x324xf32, #tpu.memory_space<vmem>>, vector<1x324xf32>
    %143 = vector.broadcast %142 : vector<1x324xf32> to vector<4x324xf32>
    %144 = arith.mulf %141, %143 : vector<4x324xf32>
    %145 = arith.truncf %144 : vector<4x324xf32> to vector<4x324xbf16>
    %c0_137 = arith.constant 0 : index
    %c0_138 = arith.constant 0 : index
    %c0_139 = arith.constant 0 : index
    %146 = vector.load %arg7[%c0_137, %c0_138, %c0_139] : memref<1x4x324xbf16, #tpu.memory_space<vmem>>, vector<1x4x324xbf16>
    %147 = vector.shape_cast %146 : vector<1x4x324xbf16> to vector<4x324xbf16>
    %148 = vector.shape_cast %145 : vector<4x324xbf16> to vector<1x4x324xbf16>
    tpu.vector_store %arg7[%c0_137, %c0_138, %c0_139], %148 {strides = array<i32>} : memref<1x4x324xbf16, #tpu.memory_space<vmem>>, vector<1x4x324xbf16>,
    %149 = arith.extf %145 : vector<4x324xbf16> to vector<4x324xf32>
    %cst_140 = arith.constant dense<0.000000e+00> : vector<4xf32>
    %150 = vector.multi_reduction <add>, %149, %cst_140 [1] : vector<4x324xf32> to vector<4xf32>
    %151 = vector.shape_cast %150 : vector<4xf32> to vector<4x1xf32>
    %152 = arith.mulf %149, %149 : vector<4x324xf32>
    %cst_141 = arith.constant dense<0.000000e+00> : vector<4xf32>
    %153 = vector.multi_reduction <add>, %152, %cst_141 [1] : vector<4x324xf32> to vector<4xf32>
    %154 = vector.shape_cast %153 : vector<4xf32> to vector<4x1xf32>
    %155 = tpu.concatenate %151, %154 in 1 : vector<4x1xf32>, vector<4x1xf32> -> vector<4x2xf32>
    %c0_142 = arith.constant 0 : index
    %c0_143 = arith.constant 0 : index
    %c0_144 = arith.constant 0 : index
    %156 = vector.load %arg8[%c0_142, %c0_143, %c0_144] : memref<1x4x2xf32, #tpu.memory_space<vmem>>, vector<1x4x2xf32>
    %157 = vector.shape_cast %156 : vector<1x4x2xf32> to vector<4x2xf32>
    %158 = vector.shape_cast %155 : vector<4x2xf32> to vector<1x4x2xf32>
    tpu.vector_store %arg8[%c0_142, %c0_143, %c0_144], %158 {strides = array<i32>} : memref<1x4x2xf32, #tpu.memory_space<vmem>>, vector<1x4x2xf32>,
    return
  }
  func.func @transform_0(%arg0: i32) -> (i32, i32, i32) {
    %c0_i32 = arith.constant 0 : i32
    %c0_i32_0 = arith.constant 0 : i32
    %c0_i32_1 = arith.constant 0 : i32
    return %arg0, %c0_i32, %c0_i32_0 : i32, i32, i32
  }
  func.func @transform_1(%arg0: i32) -> (i32, i32, i32) {
    %c0_i32 = arith.constant 0 : i32
    %c0_i32_0 = arith.constant 0 : i32
    %c0_i32_1 = arith.constant 0 : i32
    return %arg0, %c0_i32, %c0_i32_0 : i32, i32, i32
  }
  func.func @transform_2(%arg0: i32) -> (i32, i32, i32) {
    %c0_i32 = arith.constant 0 : i32
    %c0_i32_0 = arith.constant 0 : i32
    %c0_i32_1 = arith.constant 0 : i32
    %c0_i32_2 = arith.constant 0 : i32
    return %c0_i32, %c0_i32_0, %c0_i32_1 : i32, i32, i32
  }
  func.func @transform_3(%arg0: i32) -> (i32, i32, i32) {
    %c0_i32 = arith.constant 0 : i32
    %c0_i32_0 = arith.constant 0 : i32
    %c0_i32_1 = arith.constant 0 : i32
    %c0_i32_2 = arith.constant 0 : i32
    return %c0_i32, %c0_i32_0, %c0_i32_1 : i32, i32, i32
  }
  func.func @transform_4(%arg0: i32) -> (i32, i32, i32) {
    %c0_i32 = arith.constant 0 : i32
    %c0_i32_0 = arith.constant 0 : i32
    %c0_i32_1 = arith.constant 0 : i32
    %c0_i32_2 = arith.constant 0 : i32
    return %c0_i32, %c0_i32_0, %c0_i32_1 : i32, i32, i32
  }
  func.func @transform_5(%arg0: i32) -> (i32, i32) {
    %c0_i32 = arith.constant 0 : i32
    %c0_i32_0 = arith.constant 0 : i32
    %c0_i32_1 = arith.constant 0 : i32
    return %c0_i32, %c0_i32_0 : i32, i32
  }
  func.func @transform_6(%arg0: i32) -> (i32, i32, i32) {
    %c0_i32 = arith.constant 0 : i32
    %c0_i32_0 = arith.constant 0 : i32
    %c0_i32_1 = arith.constant 0 : i32
    return %arg0, %c0_i32, %c0_i32_0 : i32, i32, i32
  }
  func.func @transform_7(%arg0: i32) -> (i32, i32, i32) {
    %c0_i32 = arith.constant 0 : i32
    %c0_i32_0 = arith.constant 0 : i32
    %c0_i32_1 = arith.constant 0 : i32
    return %arg0, %c0_i32, %c0_i32_0 : i32, i32, i32
  }
}

</mosaic_0001>

<llo_original>
// kernel: unet_up_forward.5
$region0: #{unet_up_forward.5}
  #allocation0 [shape = 'u32[]', space=smem, size = 0x4, offset = 0x4, fixed_abs, tag = 'smem constant byte address 0x4 - core index']
  #allocation1 [shape = 'u32[72,128]{1,0:T(1,128)}', space=vmem, size = 0x9000, scoped, tag = 'internal scratch']
  %s0 = inlined_call_operand.vmem [shape: bf16[2,4,324], index: 0, kind: input, shape index: {}]
  %s1 = inlined_call_operand.vmem [shape: f32[4,1], index: 1, kind: input, shape index: {}]
  %s2 = inlined_call_operand.vmem [shape: f32[4,1], index: 2, kind: input, shape index: {}]
  %s3 = inlined_call_operand.vmem [shape: f32[2,4,256], index: 3, kind: output, shape index: {}]
  %s4 = sld [smem:[#allocation0]]
  $region45: #{unet_up_forward.5} parent=0
    _
  %s6 = ssub.s32 1, %s4
  %s7 = scalar_select 0, %s6, %s4
  loop: start=0, step=1, limit=4
  $region2: #{unet_up_forward.5} parent=0 // loop_pre_header
    _
  $region3: #{unet_up_forward.5} parent=0 // loop_header
    %s9 = sphi 0, %s13
    %p10 = scmp.ge.s32.totalorder %s9, 4
    %s19 = sphi 0, %s21
    %s22 = sphi 0, %s19
    %s23 = sphi 0, %s22
    %s39 = sphi 0, %s23
    %s43 = sphi 0, %s43
    %s45 = sphi 0, %s43
    %s46 = sphi 0, %s45
    %s60 = sphi 0, %s46
    %s64 = sphi 0, %s64
    %s66 = sphi 0, %s64
    %s67 = sphi 0, %s66
    %s81 = sphi 0, %s67
    %s87 = sphi 0, %s89
    %s90 = sphi 0, %s87
    %s91 = sphi 0, %s90
    %s107 = sphi 0, %s91
  $region4: #{unet_up_forward.5} parent=0 // loop_header_branch
    %12 = sbr.rel (%p10) target = $region8
  $region5: #{unet_up_forward.5} parent=0 // loop_body
    %s14 = ssub.s32 %s9, 1
    %s15 = ssub.s32 %s9, 2
    %s16 = sadd.s32 %s9, 1
    %s17 = ssub.s32 %s9, %s16
    %p18 = scmp.eq.s32.totalorder %s17, 0
    %s20 = sadd.s32 %s19, 1
    %s21 = scalar_select %p18, %s19, %s20
    %p24 = pneg %p18
    %p25 = scmp.eq.s32.totalorder %s9, 1
    %p26 = por %p24, %p25
    %p27 = scmp.ne.s32.totalorder %s19, %s22
    %p28 = scmp.eq.s32.totalorder %s9, 0
    %p29 = por %p27, %p28
    %p30 = scmp.ne.s32.totalorder %s19, %s22
    %p31 = scmp.eq.s32.totalorder %s14, 1
    %p32 = por %p30, %p31
    %p33 = scmp.ne.s32.totalorder %s22, %s23
    %p34 = scmp.eq.s32.totalorder %s14, 0
    %p35 = por %p33, %p34
    %p36 = scmp.ne.s32.totalorder %s22, %s23
    %p37 = scmp.eq.s32.totalorder %s15, 1
    %p38 = por %p36, %p37
    %p40 = scmp.ne.s32.totalorder %s23, %s39
    %p41 = scmp.eq.s32.totalorder %s15, 0
    %p42 = por %p40, %p41
    %s44 = sadd.s32 %s43, 1
    %p47 = scmp.eq.s32.totalorder %s9, 1
    %p48 = scmp.ne.s32.totalorder %s43, %s45
    %p49 = scmp.eq.s32.totalorder %s9, 0
    %p50 = por %p48, %p49
    %p51 = scmp.ne.s32.totalorder %s43, %s45
    %p52 = scmp.eq.s32.totalorder %s14, 1
    %p53 = por %p51, %p52
    %p54 = scmp.ne.s32.totalorder %s45, %s46
    %p55 = scmp.eq.s32.totalorder %s14, 0
    %p56 = por %p54, %p55
    %p57 = scmp.ne.s32.totalorder %s45, %s46
    %p58 = scmp.eq.s32.totalorder %s15, 1
    %p59 = por %p57, %p58
    %p61 = scmp.ne.s32.totalorder %s46, %s60
    %p62 = scmp.eq.s32.totalorder %s15, 0
    %p63 = por %p61, %p62
    %s65 = sadd.s32 %s64, 1
    %p68 = scmp.eq.s32.totalorder %s9, 1
    %p69 = scmp.ne.s32.totalorder %s64, %s66
    %p70 = scmp.eq.s32.totalorder %s9, 0
    %p71 = por %p69, %p70
    %p72 = scmp.ne.s32.totalorder %s64, %s66
    %p73 = scmp.eq.s32.totalorder %s14, 1
    %p74 = por %p72, %p73
    %p75 = scmp.ne.s32.totalorder %s66, %s67
    %p76 = scmp.eq.s32.totalorder %s14, 0
    %p77 = por %p75, %p76
    %p78 = scmp.ne.s32.totalorder %s66, %s67
    %p79 = scmp.eq.s32.totalorder %s15, 1
    %p80 = por %p78, %p79
    %p82 = scmp.ne.s32.totalorder %s67, %s81
    %p83 = scmp.eq.s32.totalorder %s15, 0
    %p84 = por %p82, %p83
    %s85 = ssub.s32 %s9, %s16
    %p86 = scmp.eq.s32.totalorder %s85, 0
    %s88 = sadd.s32 %s87, 1
    %s89 = scalar_select %p86, %s87, %s88
    %p92 = pneg %p86
    %p93 = scmp.eq.s32.totalorder %s9, 1
    %p94 = por %p92, %p93
    %p95 = scmp.ne.s32.totalorder %s87, %s90
    %p96 = scmp.eq.s32.totalorder %s9, 0
    %p97 = por %p95, %p96
    %p98 = scmp.ne.s32.totalorder %s87, %s90
    %p99 = scmp.eq.s32.totalorder %s14, 1
    %p100 = por %p98, %p99
    %p101 = scmp.ne.s32.totalorder %s90, %s91
    %p102 = scmp.eq.s32.totalorder %s14, 0
    %p103 = por %p101, %p102
    %p104 = scmp.ne.s32.totalorder %s90, %s91
    %p105 = scmp.eq.s32.totalorder %s15, 1
    %p106 = por %p104, %p105
    %p108 = scmp.ne.s32.totalorder %s91, %s107
    %p109 = scmp.eq.s32.totalorder %s15, 0
    %p110 = por %p108, %p109
    %p111 = scmp.le.s32.totalorder 1, %s9
    %p112 = scmp.lt.s32.totalorder %s9, 3
    %p113 = pnand %p111, %p112
    %p114 = pneg %p113
    // Predicated region
    $region9: #{unet_up_forward.5} parent=5 // pred_check
      _
    $region10: #{unet_up_forward.5} parent=5 // pred_check_branch
      %116 = sbr.rel (%p113) target = $region12
    $region11: #{unet_up_forward.5} parent=5 // pred_region
      %s117 = ssub.s32 %s9, 1
      // Predicated region
      $region13: #{unet_up_forward.5} parent=11 // pred_check
        %p118 = pneg %p56
      $region14: #{unet_up_forward.5} parent=11 // pred_check_branch
        %120 = sbr.rel (%p118) target = $region16
      $region15: #{unet_up_forward.5} parent=11 // pred_region
        _
      $region16: #{unet_up_forward.5} parent=11 // pred_fallthru
        _
      // Predicated region
      $region17: #{unet_up_forward.5} parent=11 // pred_check
        %p121 = pneg %p77
      $region18: #{unet_up_forward.5} parent=11 // pred_check_branch
        %123 = sbr.rel (%p121) target = $region20
      $region19: #{unet_up_forward.5} parent=11 // pred_region
        _
      $region20: #{unet_up_forward.5} parent=11 // pred_fallthru
        _
    $region12: #{unet_up_forward.5} parent=5 // pred_fallthru
      _
    %p124 = scmp.lt.s32.totalorder %s9, 2
    // Predicated region
    $region21: #{unet_up_forward.5} parent=5 // pred_check
      %p125 = pneg %p124
    $region22: #{unet_up_forward.5} parent=5 // pred_check_branch
      %127 = sbr.rel (%p125) target = $region24
    $region23: #{unet_up_forward.5} parent=5 // pred_region
      // Predicated region
      $region25: #{unet_up_forward.5} parent=23 // pred_check
        %p128 = pneg %p29
      $region26: #{unet_up_forward.5} parent=23 // pred_check_branch
        %130 = sbr.rel (%p128) target = $region28
      $region27: #{unet_up_forward.5} parent=23 // pred_region
        %p131 = scmp.lt.s32.totalorder %s9, 1
        %s132 = scalar_select %p131, %s9, 1
        %s133 = smul.addr %s132, 3
        %s134 = smul.addr %s133, 2
        %s135 = scalar_lea.vmem %s0, %s134
      $region28: #{unet_up_forward.5} parent=23 // pred_fallthru
        _
    $region24: #{unet_up_forward.5} parent=5 // pred_fallthru
      _
    %p136 = scmp.le.s32.totalorder 1, %s9
    %p137 = scmp.lt.s32.totalorder %s9, 3
    %p138 = pnand %p136, %p137
    %p139 = pneg %p138
    // Predicated region
    $region29: #{unet_up_forward.5} parent=5 // pred_check
      _
    $region30: #{unet_up_forward.5} parent=5 // pred_check_branch
      %141 = sbr.rel (%p138) target = $region32
    $region31: #{unet_up_forward.5} parent=5 // pred_region
      %s142 = ssub.s32 %s9, 1
      %p143 = scmp.lt.s32.totalorder %s14, 1
      %s144 = scalar_select %p143, %s14, 1
      %s145 = smul.addr %s144, 3
      %s146 = smul.addr %s145, 2
      %s147 = scalar_lea.vmem %s0, %s146
      %p148 = pneg %p35
      %p149 = pneg %p32
      %p150 = pneg %p56
      %p151 = pneg %p53
      %p152 = pneg %p77
      %p153 = pneg %p74
      %p154 = pneg %p103
      %p155 = pneg %p100
      %p156 = scmp.lt.s32.totalorder %s14, 1
      %s157 = scalar_select %p156, %s14, 1
      %s158 = smul.addr %s157, 2
      %s159 = smul.addr %s158, 4
      %s160 = scalar_lea.vmem %s3, %s159
      %p161 = scmp.lt.s32.totalorder %s14, 1
      %s162 = scalar_select %p161, %s14, 1
      %s163 = smul.addr %s162, 3
      %s164 = smul.addr %s163, 2
      %s165 = scalar_lea.vmem %s0, %s164
      %p166 = scmp.lt.s32.totalorder %s14, 1
      %s167 = scalar_select %p166, %s14, 1
      %s168 = smul.addr %s167, 2
      %s169 = smul.addr %s168, 4
      %s170 = scalar_lea.vmem %s3, %s169
      %v171 = vld [vmem:[%s165] sm:$0x3f]
      %v172 = vunpack.c.l.bf16 %v171
      %v173 = vunpack.c.h.bf16 %v171
      %v174 = vld [vmem:[%s1] sm:$0xf]
      %176 = vset.pattern.permute.xlu0 0
      %177 = vperm.xlu0 %176, %v174
      %v178 = vpop.permute.xlu0 %177
      %v180 = vunpack.c.l.s4 839922192
      %v181 = vunpack.c.0.s8 %v180
      %v182 = vperm.slane %v178, %v181
      %v184 = vmul.f32 %v172, %v182
      %v185 = vmul.f32 %v173, %v182
      %v186 = vld [vmem:[%s2] sm:$0xf]
      %188 = vset.pattern.permute.xlu0 0
      %189 = vperm.xlu0 %188, %v186
      %v190 = vpop.permute.xlu0 %189
      %v192 = vunpack.c.l.s4 839922192
      %v193 = vunpack.c.0.s8 %v192
      %v194 = vperm.slane %v190, %v193
      %v196 = vadd.f32 %v184, %v194
      %v197 = vadd.f32 %v185, %v194
      %v198 = vmax.f32 %v196, 0.0
      %v199 = vmax.f32 %v197, 0.0
      %201 = vrot.lane.b32.xlu0 %v198, 109
      %v202 = vpop.permute.xlu0 %201
      %vm204 = vcmask 125952
      %205 = vst.msk [vmem:[%s170] sm:$0xf] %vm204, %v202
      %206 = vrot.lane.b32.xlu0 %v198, 107
      %v207 = vpop.permute.xlu0 %206
      %vm209 = vcmask 257152
      %210 = vst.msk [vmem:[%s170] sm:$0xf] %vm209, %v207
      %211 = vrot.lane.b32.xlu0 %v198, 105
      %v212 = vpop.permute.xlu0 %211
      %vm214 = vcmask 388352
      %215 = vst.msk [vmem:[%s170] sm:$0xf] %vm214, %v212
      %216 = vrot.lane.b32.xlu0 %v198, 103
      %v217 = vpop.permute.xlu0 %216
      %vm219 = vcmask 519552
      %220 = vst.msk [vmem:[%s170] sm:$0xf] %vm219, %v217
      %221 = vrot.lane.b32.xlu0 %v198, 101
      %v222 = vpop.permute.xlu0 %221
      %vm224 = vcmask 650752
      %225 = vst.msk [vmem:[%s170] sm:$0xf] %vm224, %v222
      %226 = vrot.lane.b32.xlu0 %v198, 99
      %v227 = vpop.permute.xlu0 %226
      %vm229 = vcmask 781952
      %230 = vst.msk [vmem:[%s170] sm:$0xf] %vm229, %v227
      %231 = vrot.lane.b32.xlu0 %v198, 97
      %v232 = vpop.permute.xlu0 %231
      %v233 = vrot.slane %v232, 4
      %vm234 = vcmask 793600
      %v235 = vsel %vm234, %v232, %v233
      %vm237 = vcmask 913152
      %238 = vst.msk [vmem:[%s170] sm:$0xf] %vm237, %v235
      %239 = vrot.lane.b32.xlu0 %v198, 111
      %v240 = vpop.permute.xlu0 %239
      %v241 = vrot.slane %v240, 4
      %242 = vrot.lane.b32.xlu0 %v241, 112
      %v243 = vpop.permute.xlu0 %242
      %vm245 = vcmask 1044352
      %246 = vst.msk [vmem:[%s170] sm:$0xf] %vm245, %v243
      %247 = vrot.lane.b32.xlu0 %v198, 93
      %v248 = vpop.permute.xlu0 %247
      %v249 = vrot.slane %v248, 4
      %251 = vst.msk [vmem:[%s170 + $0x4] sm:$0xf] %vm204, %v249
      %252 = vrot.lane.b32.xlu0 %v198, 75
      %v253 = vpop.permute.xlu0 %252
      %v254 = vrot.slane %v253, 4
      %255 = vrot.lane.b32.xlu0 %v254, 16
      %v256 = vpop.permute.xlu0 %255
      %258 = vst.msk [vmem:[%s170 + $0x4] sm:$0xf] %vm209, %v256
      %259 = vrot.lane.b32.xlu0 %v198, 57
      %v260 = vpop.permute.xlu0 %259
      %v261 = vrot.slane %v260, 4
      %262 = vrot.lane.b32.xlu0 %v261, 32
      %v263 = vpop.permute.xlu0 %262
      %265 = vst.msk [vmem:[%s170 + $0x4] sm:$0xf] %vm214, %v263
      %266 = vrot.lane.b32.xlu0 %v198, 39
      %v267 = vpop.permute.xlu0 %266
      %v268 = vrot.slane %v267, 4
      %269 = vrot.lane.b32.xlu0 %v268, 48
      %v270 = vpop.permute.xlu0 %269
      %272 = vst.msk [vmem:[%s170 + $0x4] sm:$0xf] %vm219, %v270
      %273 = vrot.lane.b32.xlu0 %v198, 21
      %v274 = vpop.permute.xlu0 %273
      %v275 = vrot.slane %v274, 4
      %276 = vrot.lane.b32.xlu0 %v275, 64
      %v277 = vpop.permute.xlu0 %276
      %279 = vst.msk [vmem:[%s170 + $0x4] sm:$0xf] %vm224, %v277
      %281 = vrot.lane.b32.xlu0 %v198, 3
      %v282 = vpop.permute.xlu0 %281
      %283 = vrot.lane.b32.xlu0 %v199, 3
      %v284 = vpop.permute.xlu0 %283
      %v285 = vrot.slane %v282, 4
      %vm286 = vcmask 23552
      %v287 = vsel %vm286, %v285, %v284
      %288 = vrot.lane.b32.xlu0 %v287, 80
      %v289 = vpop.permute.xlu0 %288
      %291 = vst.msk [vmem:[%s170 + $0x4] sm:$0xf] %vm229, %v289
      %292 = vrot.lane.b32.xlu0 %v199, 81
      %v293 = vpop.permute.xlu0 %292
      %295 = vst.msk [vmem:[%s170 + $0x4] sm:$0xf] %vm237, %v293
      %296 = vrot.lane.b32.xlu0 %v199, 79
      %v297 = vpop.permute.xlu0 %296
      %299 = vst.msk [vmem:[%s170 + $0x4] sm:$0xf] %vm245, %v297
      %p300 = scmp.lt.s32.totalorder %s14, 1
      %s301 = scalar_select %p300, %s14, 1
      %s302 = smul.addr %s301, 2
      %s303 = smul.addr %s302, 4
      %s304 = scalar_lea.vmem %s3, %s303
      // Predicated region
      $region33: #{unet_up_forward.5} parent=31 // pred_check
        %p305 = pneg %p100
      $region34: #{unet_up_forward.5} parent=31 // pred_check_branch
        %307 = sbr.rel (%p305) target = $region36
      $region35: #{unet_up_forward.5} parent=31 // pred_region
        _
      $region36: #{unet_up_forward.5} parent=31 // pred_fallthru
        _
    $region32: #{unet_up_forward.5} parent=5 // pred_fallthru
      _
    %p308 = scmp.le.s32.totalorder 2, %s9
    // Predicated region
    $region37: #{unet_up_forward.5} parent=5 // pred_check
      %p309 = pneg %p308
    $region38: #{unet_up_forward.5} parent=5 // pred_check_branch
      %311 = sbr.rel (%p309) target = $region40
    $region39: #{unet_up_forward.5} parent=5 // pred_region
      %s312 = ssub.s32 %s9, 2
      // Predicated region
      $region41: #{unet_up_forward.5} parent=39 // pred_check
        %p313 = pneg %p106
      $region42: #{unet_up_forward.5} parent=39 // pred_check_branch
        %315 = sbr.rel (%p313) target = $region44
      $region43: #{unet_up_forward.5} parent=39 // pred_region
        %p316 = scmp.lt.s32.totalorder %s15, 1
        %s317 = scalar_select %p316, %s15, 1
        %s318 = smul.addr %s317, 2
        %s319 = smul.addr %s318, 4
        %s320 = scalar_lea.vmem %s3, %s319
      $region44: #{unet_up_forward.5} parent=39 // pred_fallthru
        _
    $region40: #{unet_up_forward.5} parent=5 // pred_fallthru
      _
  $region6: #{unet_up_forward.5} parent=0 // loop_footer
    %s13 = sadd.s32 1, %s9
  $region7: #{unet_up_forward.5} parent=0 // loop_footer_branch
    %8 = sbr.rel target = $region3
  $region8: #{unet_up_forward.5} parent=0 // loop_exit
    _

// kernel: unet_up_forward.4
$region0: #{unet_up_forward.4}
  #allocation0 [shape = 'u32[]', space=smem, size = 0x4, offset = 0x4, fixed_abs, tag = 'smem constant byte address 0x4 - core index']
  #allocation1 [shape = 'u32[72,128]{1,0:T(1,128)}', space=vmem, size = 0x9000, scoped, tag = 'internal scratch']
  #allocation2 [shape = 'bf16[4,362]{1,0:T(4,128)(2,1)}', space=vmem, size = 0xc00, scoped, tag = 'scratch operand']
  %s0 = inlined_call_operand.vmem [shape: bf16[2,4,324], index: 0, kind: input, shape index: {}]
  %s1 = inlined_call_operand.vmem [shape: f32[4,1], index: 1, kind: input, shape index: {}]
  %s2 = inlined_call_operand.vmem [shape: f32[4,1], index: 2, kind: input, shape index: {}]
  %s3 = inlined_call_operand.vmem [shape: bf16[9,4,4], index: 3, kind: input, shape index: {}]
  %s4 = inlined_call_operand.vmem [shape: f32[1,324], index: 4, kind: input, shape index: {}]
  %s5 = inlined_call_operand.vmem [shape: bf16[2,4,324], index: 5, kind: output, shape index: {0}]
  %s6 = inlined_call_operand.vmem [shape: f32[2,4,2], index: 6, kind: output, shape index: {1}]
  %7 = xla_tuple %s5, %s6
  %s8 = sld [smem:[#allocation0]]
  $region61: #{unet_up_forward.4} parent=0
    _
  %s10 = ssub.s32 1, %s8
  %s11 = scalar_select 0, %s10, %s8
  loop: start=0, step=1, limit=4
  $region2: #{unet_up_forward.4} parent=0 // loop_pre_header
    _
  $region3: #{unet_up_forward.4} parent=0 // loop_header
    %s13 = sphi 0, %s17
    %p14 = scmp.ge.s32.totalorder %s13, 4
    %s23 = sphi 0, %s25
    %s26 = sphi 0, %s23
    %s27 = sphi 0, %s26
    %s43 = sphi 0, %s27
    %s47 = sphi 0, %s47
    %s49 = sphi 0, %s47
    %s50 = sphi 0, %s49
    %s64 = sphi 0, %s50
    %s68 = sphi 0, %s68
    %s70 = sphi 0, %s68
    %s71 = sphi 0, %s70
    %s85 = sphi 0, %s71
    %s89 = sphi 0, %s89
    %s91 = sphi 0, %s89
    %s92 = sphi 0, %s91
    %s106 = sphi 0, %s92
    %s110 = sphi 0, %s110
    %s112 = sphi 0, %s110
    %s113 = sphi 0, %s112
    %s127 = sphi 0, %s113
    %s133 = sphi 0, %s135
    %s136 = sphi 0, %s133
    %s137 = sphi 0, %s136
    %s153 = sphi 0, %s137
    %s159 = sphi 0, %s161
    %s162 = sphi 0, %s159
    %s163 = sphi 0, %s162
    %s179 = sphi 0, %s163
  $region4: #{unet_up_forward.4} parent=0 // loop_header_branch
    %16 = sbr.rel (%p14) target = $region8
  $region5: #{unet_up_forward.4} parent=0 // loop_body
    %s18 = ssub.s32 %s13, 1
    %s19 = ssub.s32 %s13, 2
    %s20 = sadd.s32 %s13, 1
    %s21 = ssub.s32 %s13, %s20
    %p22 = scmp.eq.s32.totalorder %s21, 0
    %s24 = sadd.s32 %s23, 1
    %s25 = scalar_select %p22, %s23, %s24
    %p28 = pneg %p22
    %p29 = scmp.eq.s32.totalorder %s13, 1
    %p30 = por %p28, %p29
    %p31 = scmp.ne.s32.totalorder %s23, %s26
    %p32 = scmp.eq.s32.totalorder %s13, 0
    %p33 = por %p31, %p32
    %p34 = scmp.ne.s32.totalorder %s23, %s26
    %p35 = scmp.eq.s32.totalorder %s18, 1
    %p36 = por %p34, %p35
    %p37 = scmp.ne.s32.totalorder %s26, %s27
    %p38 = scmp.eq.s32.totalorder %s18, 0
    %p39 = por %p37, %p38
    %p40 = scmp.ne.s32.totalorder %s26, %s27
    %p41 = scmp.eq.s32.totalorder %s19, 1
    %p42 = por %p40, %p41
    %p44 = scmp.ne.s32.totalorder %s27, %s43
    %p45 = scmp.eq.s32.totalorder %s19, 0
    %p46 = por %p44, %p45
    %s48 = sadd.s32 %s47, 1
    %p51 = scmp.eq.s32.totalorder %s13, 1
    %p52 = scmp.ne.s32.totalorder %s47, %s49
    %p53 = scmp.eq.s32.totalorder %s13, 0
    %p54 = por %p52, %p53
    %p55 = scmp.ne.s32.totalorder %s47, %s49
    %p56 = scmp.eq.s32.totalorder %s18, 1
    %p57 = por %p55, %p56
    %p58 = scmp.ne.s32.totalorder %s49, %s50
    %p59 = scmp.eq.s32.totalorder %s18, 0
    %p60 = por %p58, %p59
    %p61 = scmp.ne.s32.totalorder %s49, %s50
    %p62 = scmp.eq.s32.totalorder %s19, 1
    %p63 = por %p61, %p62
    %p65 = scmp.ne.s32.totalorder %s50, %s64
    %p66 = scmp.eq.s32.totalorder %s19, 0
    %p67 = por %p65, %p66
    %s69 = sadd.s32 %s68, 1
    %p72 = scmp.eq.s32.totalorder %s13, 1
    %p73 = scmp.ne.s32.totalorder %s68, %s70
    %p74 = scmp.eq.s32.totalorder %s13, 0
    %p75 = por %p73, %p74
    %p76 = scmp.ne.s32.totalorder %s68, %s70
    %p77 = scmp.eq.s32.totalorder %s18, 1
    %p78 = por %p76, %p77
    %p79 = scmp.ne.s32.totalorder %s70, %s71
    %p80 = scmp.eq.s32.totalorder %s18, 0
    %p81 = por %p79, %p80
    %p82 = scmp.ne.s32.totalorder %s70, %s71
    %p83 = scmp.eq.s32.totalorder %s19, 1
    %p84 = por %p82, %p83
    %p86 = scmp.ne.s32.totalorder %s71, %s85
    %p87 = scmp.eq.s32.totalorder %s19, 0
    %p88 = por %p86, %p87
    %s90 = sadd.s32 %s89, 1
    %p93 = scmp.eq.s32.totalorder %s13, 1
    %p94 = scmp.ne.s32.totalorder %s89, %s91
    %p95 = scmp.eq.s32.totalorder %s13, 0
    %p96 = por %p94, %p95
    %p97 = scmp.ne.s32.totalorder %s89, %s91
    %p98 = scmp.eq.s32.totalorder %s18, 1
    %p99 = por %p97, %p98
    %p100 = scmp.ne.s32.totalorder %s91, %s92
    %p101 = scmp.eq.s32.totalorder %s18, 0
    %p102 = por %p100, %p101
    %p103 = scmp.ne.s32.totalorder %s91, %s92
    %p104 = scmp.eq.s32.totalorder %s19, 1
    %p105 = por %p103, %p104
    %p107 = scmp.ne.s32.totalorder %s92, %s106
    %p108 = scmp.eq.s32.totalorder %s19, 0
    %p109 = por %p107, %p108
    %s111 = sadd.s32 %s110, 1
    %p114 = scmp.eq.s32.totalorder %s13, 1
    %p115 = scmp.ne.s32.totalorder %s110, %s112
    %p116 = scmp.eq.s32.totalorder %s13, 0
    %p117 = por %p115, %p116
    %p118 = scmp.ne.s32.totalorder %s110, %s112
    %p119 = scmp.eq.s32.totalorder %s18, 1
    %p120 = por %p118, %p119
    %p121 = scmp.ne.s32.totalorder %s112, %s113
    %p122 = scmp.eq.s32.totalorder %s18, 0
    %p123 = por %p121, %p122
    %p124 = scmp.ne.s32.totalorder %s112, %s113
    %p125 = scmp.eq.s32.totalorder %s19, 1
    %p126 = por %p124, %p125
    %p128 = scmp.ne.s32.totalorder %s113, %s127
    %p129 = scmp.eq.s32.totalorder %s19, 0
    %p130 = por %p128, %p129
    %s131 = ssub.s32 %s13, %s20
    %p132 = scmp.eq.s32.totalorder %s131, 0
    %s134 = sadd.s32 %s133, 1
    %s135 = scalar_select %p132, %s133, %s134
    %p138 = pneg %p132
    %p139 = scmp.eq.s32.totalorder %s13, 1
    %p140 = por %p138, %p139
    %p141 = scmp.ne.s32.totalorder %s133, %s136
    %p142 = scmp.eq.s32.totalorder %s13, 0
    %p143 = por %p141, %p142
    %p144 = scmp.ne.s32.totalorder %s133, %s136
    %p145 = scmp.eq.s32.totalorder %s18, 1
    %p146 = por %p144, %p145
    %p147 = scmp.ne.s32.totalorder %s136, %s137
    %p148 = scmp.eq.s32.totalorder %s18, 0
    %p149 = por %p147, %p148
    %p150 = scmp.ne.s32.totalorder %s136, %s137
    %p151 = scmp.eq.s32.totalorder %s19, 1
    %p152 = por %p150, %p151
    %p154 = scmp.ne.s32.totalorder %s137, %s153
    %p155 = scmp.eq.s32.totalorder %s19, 0
    %p156 = por %p154, %p155
    %s157 = ssub.s32 %s13, %s20
    %p158 = scmp.eq.s32.totalorder %s157, 0
    %s160 = sadd.s32 %s159, 1
    %s161 = scalar_select %p158, %s159, %s160
    %p164 = pneg %p158
    %p165 = scmp.eq.s32.totalorder %s13, 1
    %p166 = por %p164, %p165
    %p167 = scmp.ne.s32.totalorder %s159, %s162
    %p168 = scmp.eq.s32.totalorder %s13, 0
    %p169 = por %p167, %p168
    %p170 = scmp.ne.s32.totalorder %s159, %s162
    %p171 = scmp.eq.s32.totalorder %s18, 1
    %p172 = por %p170, %p171
    %p173 = scmp.ne.s32.totalorder %s162, %s163
    %p174 = scmp.eq.s32.totalorder %s18, 0
    %p175 = por %p173, %p174
    %p176 = scmp.ne.s32.totalorder %s162, %s163
    %p177 = scmp.eq.s32.totalorder %s19, 1
    %p178 = por %p176, %p177
    %p180 = scmp.ne.s32.totalorder %s163, %s179
    %p181 = scmp.eq.s32.totalorder %s19, 0
    %p182 = por %p180, %p181
    %p183 = scmp.le.s32.totalorder 1, %s13
    %p184 = scmp.lt.s32.totalorder %s13, 3
    %p185 = pnand %p183, %p184
    %p186 = pneg %p185
    // Predicated region
    $region9: #{unet_up_forward.4} parent=5 // pred_check
      _
    $region10: #{unet_up_forward.4} parent=5 // pred_check_branch
      %188 = sbr.rel (%p185) target = $region12
    $region11: #{unet_up_forward.4} parent=5 // pred_region
      %s189 = ssub.s32 %s13, 1
      // Predicated region
      $region13: #{unet_up_forward.4} parent=11 // pred_check
        %p190 = pneg %p60
      $region14: #{unet_up_forward.4} parent=11 // pred_check_branch
        %192 = sbr.rel (%p190) target = $region16
      $region15: #{unet_up_forward.4} parent=11 // pred_region
        _
      $region16: #{unet_up_forward.4} parent=11 // pred_fallthru
        _
      // Predicated region
      $region17: #{unet_up_forward.4} parent=11 // pred_check
        %p193 = pneg %p81
      $region18: #{unet_up_forward.4} parent=11 // pred_check_branch
        %195 = sbr.rel (%p193) target = $region20
      $region19: #{unet_up_forward.4} parent=11 // pred_region
        _
      $region20: #{unet_up_forward.4} parent=11 // pred_fallthru
        _
      // Predicated region
      $region21: #{unet_up_forward.4} parent=11 // pred_check
        %p196 = pneg %p102
      $region22: #{unet_up_forward.4} parent=11 // pred_check_branch
        %198 = sbr.rel (%p196) target = $region24
      $region23: #{unet_up_forward.4} parent=11 // pred_region
        _
      $region24: #{unet_up_forward.4} parent=11 // pred_fallthru
        _
      // Predicated region
      $region25: #{unet_up_forward.4} parent=11 // pred_check
        %p199 = pneg %p123
      $region26: #{unet_up_forward.4} parent=11 // pred_check_branch
        %201 = sbr.rel (%p199) target = $region28
      $region27: #{unet_up_forward.4} parent=11 // pred_region
        _
      $region28: #{unet_up_forward.4} parent=11 // pred_fallthru
        _
    $region12: #{unet_up_forward.4} parent=5 // pred_fallthru
      _
    %p202 = scmp.lt.s32.totalorder %s13, 2
    // Predicated region
    $region29: #{unet_up_forward.4} parent=5 // pred_check
      %p203 = pneg %p202
    $region30: #{unet_up_forward.4} parent=5 // pred_check_branch
      %205 = sbr.rel (%p203) target = $region32
    $region31: #{unet_up_forward.4} parent=5 // pred_region
      // Predicated region
      $region33: #{unet_up_forward.4} parent=31 // pred_check
        %p206 = pneg %p33
      $region34: #{unet_up_forward.4} parent=31 // pred_check_branch
        %208 = sbr.rel (%p206) target = $region36
      $region35: #{unet_up_forward.4} parent=31 // pred_region
        %p209 = scmp.lt.s32.totalorder %s13, 1
        %s210 = scalar_select %p209, %s13, 1
        %s211 = smul.addr %s210, 3
        %s212 = smul.addr %s211, 2
        %s213 = scalar_lea.vmem %s0, %s212
      $region36: #{unet_up_forward.4} parent=31 // pred_fallthru
        _
    $region32: #{unet_up_forward.4} parent=5 // pred_fallthru
      _
    %p214 = scmp.le.s32.totalorder 1, %s13
    %p215 = scmp.lt.s32.totalorder %s13, 3
    %p216 = pnand %p214, %p215
    %p217 = pneg %p216
    // Predicated region
    $region37: #{unet_up_forward.4} parent=5 // pred_check
      _
    $region38: #{unet_up_forward.4} parent=5 // pred_check_branch
      %219 = sbr.rel (%p216) target = $region40
    $region39: #{unet_up_forward.4} parent=5 // pred_region
      %s220 = ssub.s32 %s13, 1
      %p221 = scmp.lt.s32.totalorder %s18, 1
      %s222 = scalar_select %p221, %s18, 1
      %s223 = smul.addr %s222, 3
      %s224 = smul.addr %s223, 2
      %s225 = scalar_lea.vmem %s0, %s224
      %p226 = pneg %p39
      %p227 = pneg %p36
      %p228 = pneg %p60
      %p229 = pneg %p57
      %p230 = pneg %p81
      %p231 = pneg %p78
      %p232 = pneg %p102
      %p233 = pneg %p99
      %p234 = pneg %p123
      %p235 = pneg %p120
      %p236 = pneg %p149
      %p237 = pneg %p146
      %p238 = scmp.lt.s32.totalorder %s18, 1
      %s239 = scalar_select %p238, %s18, 1
      %s240 = smul.addr %s239, 3
      %s241 = smul.addr %s240, 2
      %s242 = scalar_lea.vmem %s5, %s241
      %p243 = pneg %p175
      %p244 = pneg %p172
      %p245 = scmp.lt.s32.totalorder %s18, 1
      %s246 = scalar_select %p245, %s18, 1
      %s247 = smul.addr %s246, 4
      %s248 = scalar_lea.vmem %s6, %s247
      %p249 = scmp.lt.s32.totalorder %s18, 1
      %s250 = scalar_select %p249, %s18, 1
      %s251 = smul.addr %s250, 3
      %s252 = smul.addr %s251, 2
      %s253 = scalar_lea.vmem %s0, %s252
      %p254 = scmp.lt.s32.totalorder %s18, 1
      %s255 = scalar_select %p254, %s18, 1
      %s256 = smul.addr %s255, 3
      %s257 = smul.addr %s256, 2
      %s258 = scalar_lea.vmem %s5, %s257
      %p259 = scmp.lt.s32.totalorder %s18, 1
      %s260 = scalar_select %p259, %s18, 1
      %s261 = smul.addr %s260, 4
      %s262 = scalar_lea.vmem %s6, %s261
      %v264 = vld [vmem:[%s4] sm:$0x7]
      %v265 = vld [vmem:[%s253] sm:$0x3f]
      %v266 = vunpack.c.l.bf16 %v265
      %v267 = vunpack.c.h.bf16 %v265
      %v268 = vld [vmem:[%s1] sm:$0xf]
      %270 = vset.pattern.permute.xlu0 0
      %271 = vperm.xlu0 %270, %v268
      %v272 = vpop.permute.xlu0 %271
      %v274 = vunpack.c.l.s4 839922192
      %v275 = vunpack.c.0.s8 %v274
      %v276 = vperm.slane %v272, %v275
      %v278 = vmul.f32 %v266, %v276
      %v279 = vmul.f32 %v267, %v276
      %v280 = vld [vmem:[%s2] sm:$0xf]
      %282 = vset.pattern.permute.xlu0 0
      %283 = vperm.xlu0 %282, %v280
      %v284 = vpop.permute.xlu0 %283
      %v286 = vunpack.c.l.s4 839922192
      %v287 = vunpack.c.0.s8 %v286
      %v288 = vperm.slane %v284, %v287
      %v290 = vadd.f32 %v278, %v288
      %v291 = vadd.f32 %v279, %v288
      %v292 = vmax.f32 %v290, 0.0
      %v293 = vmax.f32 %v291, 0.0
      %v295 = vperm.slane %v264, 0
      %v296 = vperm.slane %v264, 1
      %v297 = vperm.slane %v264, 2
      %v301 = vrot.slane %v296, 4
      %vm302 = vcmask 1043456
      %v303 = vsel %vm302, %v295, %v301
      %v305 = vmul.f32 %v292, %v303
      %v306 = vmul.f32 %v293, %v297
      %vm307 = vcmask 148480
      %308 = vst.msk [vmem:[#allocation2] sm:$0x3] %vm307, 0
      %vm309 = vcmask 861880
      %310 = vst.msk [vmem:[#allocation2 + $0x4] sm:$0x3] %vm309, 0
      %313 = vst [vmem:[#allocation1] ss:$2 sm:$0xff] %v305
      %s314 = scalar_lea.vmem [#allocation1], 16
      %315 = vst [vmem:[%s314] ss:$2 sm:$0xff] %v306
      %v316 = vld.sshfl [vmem:[#allocation1] sm:$0xff pattern:$0x75316420]
      %v317 = vld.sshfl [vmem:[#allocation1 + $0x8] sm:$0xff pattern:$0x75316420]
      %v318 = vld.sshfl [vmem:[#allocation1 + $0x10] sm:$0xff pattern:$0x75316420]
      %v322 = vpack.c.bf16 %v317, %v316
      %v323 = vpack.c.bf16 %v318, %v318
      %v326 = vrot.slane %v322, 2
      %v327 = vrot.slane %v323, 4
      %v328 = vrot.slane %v323, 6
      %vm329 = vcmask 1041408
      %v332 = vsel %vm329, %v322, %v326
      %vm333 = vcmask 1045508
      %v336 = vsel %vm333, %v327, %v328
      %v337 = vsel %vm302, %v332, %v336
      %339 = vrot.lane.b32.xlu0 %v337, 19
      %v340 = vpop.permute.xlu0 %339
      %v341 = vrot.slane %v340, 6
      %vm342 = vcmask 154624
      %v343 = vsel %vm342, %v341, %v340
      %vm345 = vcmask 1041560
      %vm346 = vcmask 1043458
      %vm347 = vmor %vm346, %vm345
      %vm348 = vcmask 709636
      %vm349 = vmor %vm348, %vm347
      %350 = vst.msk [vmem:[#allocation2] sm:$0x3f] %vm349, %v343
      %v351 = vld [vmem:[%s3] sm:$0x3]
      %v352 = vld [vmem:[#allocation2] sm:$0x3f]
      %s353 = scalar_lea.vmem %s3, 2
      %v354 = vld [vmem:[%s353] sm:$0x3]
      %356 = vst [vmem:[#allocation1] ss:$4 sm:$0xff] %v352
      %v357 = vld.sshfl [vmem:[#allocation1] sm:$0xff pattern:$0x73625140]
      %v359 = vld.sshfl [vmem:[#allocation1 + $0x8] sm:$0xff pattern:$0x73625140]
      %v361 = vld.sshfl [vmem:[#allocation1 + $0x10] sm:$0xff pattern:$0x73625140]
      %363 = vrot.lane.b32.xlu0 %v357, 127
      %v364 = vpop.permute.xlu0 %363
      %365 = vrot.lane.b32.xlu0 %v359, 127
      %v366 = vpop.permute.xlu0 %365
      %367 = vrot.lane.b32.xlu0 %v361, 127
      %v368 = vpop.permute.xlu0 %367
      %vm369 = vcmask 1039360
      %v370 = vsel %vm369, %v364, %v366
      %v371 = vsel %vm369, %v366, %v368
      %vm372 = vcmask 31744
      %v374 = vsel %vm372, %v354, 0
      %v377 = vsel %vm329, %v370, 0
      %v380 = vsel %vm329, %v371, 0
      %v383 = vsel %vm329, %v368, 0
      %385 = vmatpush.bf16.msra.mxu0 0
      %386 = vmatpush.bf16.msra.mxu0 0
      %387 = vmatpush.bf16.msra.mxu0 0
      %388 = vmatpush.bf16.msra.mxu0 0
      %389 = vmatpush.bf16.msra.mxu0 0
      %390 = vmatpush.bf16.msra.mxu0 0
      %391 = vmatpush.bf16.msra.mxu0 0
      %392 = vmatpush.bf16.msra.mxu0 %v377
      %393 = vmatmul.bf16.gmra.mxu0 %v374
      %v394 = vpop.f32.mrf.mxu0
      %v395 = vadd.f32 0.0, %v394
      %v396 = vpop.f32.mrf.mxu0
      %397 = vdwg.mxu0
      %398 = vmatpush.bf16.msra.mxu0 0
      %399 = vmatpush.bf16.msra.mxu0 0
      %400 = vmatpush.bf16.msra.mxu0 0
      %401 = vmatpush.bf16.msra.mxu0 0
      %402 = vmatpush.bf16.msra.mxu0 0
      %403 = vmatpush.bf16.msra.mxu0 0
      %404 = vmatpush.bf16.msra.mxu0 0
      %405 = vmatpush.bf16.msra.mxu0 %v380
      %406 = vmatmul.bf16.gmra.mxu0 %v374
      %v407 = vpop.f32.mrf.mxu0
      %v408 = vadd.f32 0.0, %v407
      %v409 = vpop.f32.mrf.mxu0
      %410 = vdwg.mxu0
      %411 = vmatpush.bf16.msra.mxu0 0
      %412 = vmatpush.bf16.msra.mxu0 0
      %413 = vmatpush.bf16.msra.mxu0 0
      %414 = vmatpush.bf16.msra.mxu0 0
      %415 = vmatpush.bf16.msra.mxu0 0
      %416 = vmatpush.bf16.msra.mxu0 0
      %417 = vmatpush.bf16.msra.mxu0 0
      %418 = vmatpush.bf16.msra.mxu0 %v383
      %419 = vmatmul.bf16.gmra.mxu0 %v374
      %v420 = vpop.f32.mrf.mxu0
      %v421 = vadd.f32 0.0, %v420
      %v422 = vpop.f32.mrf.mxu0
      %423 = vdwg.mxu0
      %424 = vst [vmem:[#allocation1] ss:$4 sm:$0xff] %v352
      %v425 = vld.sshfl [vmem:[#allocation1] sm:$0xff pattern:$0x73625140]
      %v426 = vld.sshfl [vmem:[#allocation1 + $0x8] sm:$0xff pattern:$0x73625140]
      %v427 = vld.sshfl [vmem:[#allocation1 + $0x10] sm:$0xff pattern:$0x73625140]
      %v429 = vsel %vm372, %v351, 0
      %v431 = vsel %vm329, %v425, 0
      %v433 = vsel %vm329, %v426, 0
      %v435 = vsel %vm329, %v427, 0
      %437 = vmatpush.bf16.msra.mxu0 0
      %438 = vmatpush.bf16.msra.mxu0 0
      %439 = vmatpush.bf16.msra.mxu0 0
      %440 = vmatpush.bf16.msra.mxu0 0
      %441 = vmatpush.bf16.msra.mxu0 0
      %442 = vmatpush.bf16.msra.mxu0 0
      %443 = vmatpush.bf16.msra.mxu0 0
      %444 = vmatpush.bf16.msra.mxu0 %v431
      %445 = vmatmul.bf16.gmra.mxu0 %v429
      %v446 = vpop.f32.mrf.mxu0
      %v447 = vadd.f32 %v395, %v446
      %v448 = vpop.f32.mrf.mxu0
      %449 = vdwg.mxu0
      %450 = vmatpush.bf16.msra.mxu0 0
      %451 = vmatpush.bf16.msra.mxu0 0
      %452 = vmatpush.bf16.msra.mxu0 0
      %453 = vmatpush.bf16.msra.mxu0 0
      %454 = vmatpush.bf16.msra.mxu0 0
      %455 = vmatpush.bf16.msra.mxu0 0
      %456 = vmatpush.bf16.msra.mxu0 0
      %457 = vmatpush.bf16.msra.mxu0 %v433
      %458 = vmatmul.bf16.gmra.mxu0 %v429
      %v459 = vpop.f32.mrf.mxu0
      %v460 = vadd.f32 %v408, %v459
      %v461 = vpop.f32.mrf.mxu0
      %462 = vdwg.mxu0
      %463 = vmatpush.bf16.msra.mxu0 0
      %464 = vmatpush.bf16.msra.mxu0 0
      %465 = vmatpush.bf16.msra.mxu0 0
      %466 = vmatpush.bf16.msra.mxu0 0
      %467 = vmatpush.bf16.msra.mxu0 0
      %468 = vmatpush.bf16.msra.mxu0 0
      %469 = vmatpush.bf16.msra.mxu0 0
      %470 = vmatpush.bf16.msra.mxu0 %v435
      %471 = vmatmul.bf16.gmra.mxu0 %v429
      %v472 = vpop.f32.mrf.mxu0
      %v473 = vadd.f32 %v421, %v472
      %v474 = vpop.f32.mrf.mxu0
      %475 = vdwg.mxu0
      %s476 = scalar_lea.vmem %s3, 4
      %v477 = vld [vmem:[%s476] sm:$0x3]
      %v478 = vld [vmem:[#allocation2] sm:$0x3f]
      %480 = vst [vmem:[#allocation1] ss:$4 sm:$0xff] %v478
      %v481 = vld.sshfl [vmem:[#allocation1] sm:$0xff pattern:$0x73625140]
      %v483 = vld.sshfl [vmem:[#allocation1 + $0x8] sm:$0xff pattern:$0x73625140]
      %v485 = vld.sshfl [vmem:[#allocation1 + $0x10] sm:$0xff pattern:$0x73625140]
      %487 = vrot.lane.b32.xlu0 %v481, 126
      %v488 = vpop.permute.xlu0 %487
      %489 = vrot.lane.b32.xlu0 %v483, 126
      %v490 = vpop.permute.xlu0 %489
      %491 = vrot.lane.b32.xlu0 %v485, 126
      %v492 = vpop.permute.xlu0 %491
      %vm493 = vcmask 1031168
      %v494 = vsel %vm493, %v488, %v490
      %v495 = vsel %vm493, %v490, %v492
      %v497 = vsel %vm372, %v477, 0
      %v500 = vsel %vm329, %v494, 0
      %v503 = vsel %vm329, %v495, 0
      %v506 = vsel %vm329, %v492, 0
      %508 = vmatpush.bf16.msra.mxu0 0
      %509 = vmatpush.bf16.msra.mxu0 0
      %510 = vmatpush.bf16.msra.mxu0 0
      %511 = vmatpush.bf16.msra.mxu0 0
      %512 = vmatpush.bf16.msra.mxu0 0
      %513 = vmatpush.bf16.msra.mxu0 0
      %514 = vmatpush.bf16.msra.mxu0 0
      %515 = vmatpush.bf16.msra.mxu0 %v500
      %516 = vmatmul.bf16.gmra.mxu0 %v497
      %v517 = vpop.f32.mrf.mxu0
      %v518 = vadd.f32 0.0, %v517
      %v519 = vpop.f32.mrf.mxu0
      %520 = vdwg.mxu0
      %521 = vmatpush.bf16.msra.mxu0 0
      %522 = vmatpush.bf16.msra.mxu0 0
      %523 = vmatpush.bf16.msra.mxu0 0
      %524 = vmatpush.bf16.msra.mxu0 0
      %525 = vmatpush.bf16.msra.mxu0 0
      %526 = vmatpush.bf16.msra.mxu0 0
      %527 = vmatpush.bf16.msra.mxu0 0
      %528 = vmatpush.bf16.msra.mxu0 %v503
      %529 = vmatmul.bf16.gmra.mxu0 %v497
      %v530 = vpop.f32.mrf.mxu0
      %v531 = vadd.f32 0.0, %v530
      %v532 = vpop.f32.mrf.mxu0
      %533 = vdwg.mxu0
      %534 = vmatpush.bf16.msra.mxu0 0
      %535 = vmatpush.bf16.msra.mxu0 0
      %536 = vmatpush.bf16.msra.mxu0 0
      %537 = vmatpush.bf16.msra.mxu0 0
      %538 = vmatpush.bf16.msra.mxu0 0
      %539 = vmatpush.bf16.msra.mxu0 0
      %540 = vmatpush.bf16.msra.mxu0 0
      %541 = vmatpush.bf16.msra.mxu0 %v506
      %542 = vmatmul.bf16.gmra.mxu0 %v497
      %v543 = vpop.f32.mrf.mxu0
      %v544 = vadd.f32 0.0, %v543
      %v545 = vpop.f32.mrf.mxu0
      %546 = vdwg.mxu0
      %v547 = vadd.f32 %v447, %v518
      %v548 = vadd.f32 %v460, %v531
      %v549 = vadd.f32 %v473, %v544
      %s550 = scalar_lea.vmem %s3, 6
      %v551 = vld [vmem:[%s550] sm:$0x3]
      %v552 = vld [vmem:[#allocation2] sm:$0x3f]
      %554 = vst [vmem:[#allocation1] ss:$4 sm:$0xff] %v552
      %v555 = vld.sshfl [vmem:[#allocation1] sm:$0xff pattern:$0x73625140]
      %v557 = vld.sshfl [vmem:[#allocation1 + $0x8] sm:$0xff pattern:$0x73625140]
      %v559 = vld.sshfl [vmem:[#allocation1 + $0x10] sm:$0xff pattern:$0x73625140]
      %561 = vrot.lane.b32.xlu0 %v555, 110
      %v562 = vpop.permute.xlu0 %561
      %563 = vrot.lane.b32.xlu0 %v557, 110
      %v564 = vpop.permute.xlu0 %563
      %565 = vrot.lane.b32.xlu0 %v559, 110
      %v566 = vpop.permute.xlu0 %565
      %vm567 = vcmask 900096
      %v568 = vsel %vm567, %v562, %v564
      %v569 = vsel %vm567, %v564, %v566
      %v571 = vsel %vm372, %v551, 0
      %v574 = vsel %vm329, %v568, 0
      %v577 = vsel %vm329, %v569, 0
      %v580 = vsel %vm329, %v566, 0
      %582 = vmatpush.bf16.msra.mxu0 0
      %583 = vmatpush.bf16.msra.mxu0 0
      %584 = vmatpush.bf16.msra.mxu0 0
      %585 = vmatpush.bf16.msra.mxu0 0
      %586 = vmatpush.bf16.msra.mxu0 0
      %587 = vmatpush.bf16.msra.mxu0 0
      %588 = vmatpush.bf16.msra.mxu0 0
      %589 = vmatpush.bf16.msra.mxu0 %v574
      %590 = vmatmul.bf16.gmra.mxu0 %v571
      %v591 = vpop.f32.mrf.mxu0
      %v592 = vadd.f32 0.0, %v591
      %v593 = vpop.f32.mrf.mxu0
      %594 = vdwg.mxu0
      %595 = vmatpush.bf16.msra.mxu0 0
      %596 = vmatpush.bf16.msra.mxu0 0
      %597 = vmatpush.bf16.msra.mxu0 0
      %598 = vmatpush.bf16.msra.mxu0 0
      %599 = vmatpush.bf16.msra.mxu0 0
      %600 = vmatpush.bf16.msra.mxu0 0
      %601 = vmatpush.bf16.msra.mxu0 0
      %602 = vmatpush.bf16.msra.mxu0 %v577
      %603 = vmatmul.bf16.gmra.mxu0 %v571
      %v604 = vpop.f32.mrf.mxu0
      %v605 = vadd.f32 0.0, %v604
      %v606 = vpop.f32.mrf.mxu0
      %607 = vdwg.mxu0
      %608 = vmatpush.bf16.msra.mxu0 0
      %609 = vmatpush.bf16.msra.mxu0 0
      %610 = vmatpush.bf16.msra.mxu0 0
      %611 = vmatpush.bf16.msra.mxu0 0
      %612 = vmatpush.bf16.msra.mxu0 0
      %613 = vmatpush.bf16.msra.mxu0 0
      %614 = vmatpush.bf16.msra.mxu0 0
      %615 = vmatpush.bf16.msra.mxu0 %v580
      %616 = vmatmul.bf16.gmra.mxu0 %v571
      %v617 = vpop.f32.mrf.mxu0
      %v618 = vadd.f32 0.0, %v617
      %v619 = vpop.f32.mrf.mxu0
      %620 = vdwg.mxu0
      %v621 = vadd.f32 %v547, %v592
      %v622 = vadd.f32 %v548, %v605
      %v623 = vadd.f32 %v549, %v618
      %s624 = scalar_lea.vmem %s3, 8
      %v625 = vld [vmem:[%s624] sm:$0x3]
      %v626 = vld [vmem:[#allocation2] sm:$0x3f]
      %628 = vst [vmem:[#allocation1] ss:$4 sm:$0xff] %v626
      %v629 = vld.sshfl [vmem:[#allocation1] sm:$0xff pattern:$0x73625140]
      %v631 = vld.sshfl [vmem:[#allocation1 + $0x8] sm:$0xff pattern:$0x73625140]
      %v633 = vld.sshfl [vmem:[#allocation1 + $0x10] sm:$0xff pattern:$0x73625140]
      %635 = vrot.lane.b32.xlu0 %v629, 109
      %v636 = vpop.permute.xlu0 %635
      %637 = vrot.lane.b32.xlu0 %v631, 109
      %v638 = vpop.permute.xlu0 %637
      %639 = vrot.lane.b32.xlu0 %v633, 109
      %v640 = vpop.permute.xlu0 %639
      %vm641 = vcmask 891904
      %v642 = vsel %vm641, %v636, %v638
      %v643 = vsel %vm641, %v638, %v640
      %v645 = vsel %vm372, %v625, 0
      %v648 = vsel %vm329, %v642, 0
      %v651 = vsel %vm329, %v643, 0
      %v654 = vsel %vm329, %v640, 0
      %656 = vmatpush.bf16.msra.mxu0 0
      %657 = vmatpush.bf16.msra.mxu0 0
      %658 = vmatpush.bf16.msra.mxu0 0
      %659 = vmatpush.bf16.msra.mxu0 0
      %660 = vmatpush.bf16.msra.mxu0 0
      %661 = vmatpush.bf16.msra.mxu0 0
      %662 = vmatpush.bf16.msra.mxu0 0
      %663 = vmatpush.bf16.msra.mxu0 %v648
      %664 = vmatmul.bf16.gmra.mxu0 %v645
      %v665 = vpop.f32.mrf.mxu0
      %v666 = vadd.f32 0.0, %v665
      %v667 = vpop.f32.mrf.mxu0
      %668 = vdwg.mxu0
      %669 = vmatpush.bf16.msra.mxu0 0
      %670 = vmatpush.bf16.msra.mxu0 0
      %671 = vmatpush.bf16.msra.mxu0 0
      %672 = vmatpush.bf16.msra.mxu0 0
      %673 = vmatpush.bf16.msra.mxu0 0
      %674 = vmatpush.bf16.msra.mxu0 0
      %675 = vmatpush.bf16.msra.mxu0 0
      %676 = vmatpush.bf16.msra.mxu0 %v651
      %677 = vmatmul.bf16.gmra.mxu0 %v645
      %v678 = vpop.f32.mrf.mxu0
      %v679 = vadd.f32 0.0, %v678
      %v680 = vpop.f32.mrf.mxu0
      %681 = vdwg.mxu0
      %682 = vmatpush.bf16.msra.mxu0 0
      %683 = vmatpush.bf16.msra.mxu0 0
      %684 = vmatpush.bf16.msra.mxu0 0
      %685 = vmatpush.bf16.msra.mxu0 0
      %686 = vmatpush.bf16.msra.mxu0 0
      %687 = vmatpush.bf16.msra.mxu0 0
      %688 = vmatpush.bf16.msra.mxu0 0
      %689 = vmatpush.bf16.msra.mxu0 %v654
      %690 = vmatmul.bf16.gmra.mxu0 %v645
      %v691 = vpop.f32.mrf.mxu0
      %v692 = vadd.f32 0.0, %v691
      %v693 = vpop.f32.mrf.mxu0
      %694 = vdwg.mxu0
      %v695 = vadd.f32 %v621, %v666
      %v696 = vadd.f32 %v622, %v679
      %v697 = vadd.f32 %v623, %v692
      %s698 = scalar_lea.vmem %s3, 10
      %v699 = vld [vmem:[%s698] sm:$0x3]
      %v700 = vld [vmem:[#allocation2] sm:$0x3f]
      %702 = vst [vmem:[#allocation1] ss:$4 sm:$0xff] %v700
      %v703 = vld.sshfl [vmem:[#allocation1] sm:$0xff pattern:$0x73625140]
      %v705 = vld.sshfl [vmem:[#allocation1 + $0x8] sm:$0xff pattern:$0x73625140]
      %v707 = vld.sshfl [vmem:[#allocation1 + $0x10] sm:$0xff pattern:$0x73625140]
      %709 = vrot.lane.b32.xlu0 %v703, 108
      %v710 = vpop.permute.xlu0 %709
      %711 = vrot.lane.b32.xlu0 %v705, 108
      %v712 = vpop.permute.xlu0 %711
      %713 = vrot.lane.b32.xlu0 %v707, 108
      %v714 = vpop.permute.xlu0 %713
      %vm715 = vcmask 883712
      %v716 = vsel %vm715, %v710, %v712
      %v717 = vsel %vm715, %v712, %v714
      %v719 = vsel %vm372, %v699, 0
      %v722 = vsel %vm329, %v716, 0
      %v725 = vsel %vm329, %v717, 0
      %v728 = vsel %vm329, %v714, 0
      %730 = vmatpush.bf16.msra.mxu0 0
      %731 = vmatpush.bf16.msra.mxu0 0
      %732 = vmatpush.bf16.msra.mxu0 0
      %733 = vmatpush.bf16.msra.mxu0 0
      %734 = vmatpush.bf16.msra.mxu0 0
      %735 = vmatpush.bf16.msra.mxu0 0
      %736 = vmatpush.bf16.msra.mxu0 0
      %737 = vmatpush.bf16.msra.mxu0 %v722
      %738 = vmatmul.bf16.gmra.mxu0 %v719
      %v739 = vpop.f32.mrf.mxu0
      %v740 = vadd.f32 0.0, %v739
      %v741 = vpop.f32.mrf.mxu0
      %742 = vdwg.mxu0
      %743 = vmatpush.bf16.msra.mxu0 0
      %744 = vmatpush.bf16.msra.mxu0 0
      %745 = vmatpush.bf16.msra.mxu0 0
      %746 = vmatpush.bf16.msra.mxu0 0
      %747 = vmatpush.bf16.msra.mxu0 0
      %748 = vmatpush.bf16.msra.mxu0 0
      %749 = vmatpush.bf16.msra.mxu0 0
      %750 = vmatpush.bf16.msra.mxu0 %v725
      %751 = vmatmul.bf16.gmra.mxu0 %v719
      %v752 = vpop.f32.mrf.mxu0
      %v753 = vadd.f32 0.0, %v752
      %v754 = vpop.f32.mrf.mxu0
      %755 = vdwg.mxu0
      %756 = vmatpush.bf16.msra.mxu0 0
      %757 = vmatpush.bf16.msra.mxu0 0
      %758 = vmatpush.bf16.msra.mxu0 0
      %759 = vmatpush.bf16.msra.mxu0 0
      %760 = vmatpush.bf16.msra.mxu0 0
      %761 = vmatpush.bf16.msra.mxu0 0
      %762 = vmatpush.bf16.msra.mxu0 0
      %763 = vmatpush.bf16.msra.mxu0 %v728
      %764 = vmatmul.bf16.gmra.mxu0 %v719
      %v765 = vpop.f32.mrf.mxu0
      %v766 = vadd.f32 0.0, %v765
      %v767 = vpop.f32.mrf.mxu0
      %768 = vdwg.mxu0
      %v769 = vadd.f32 %v695, %v740
      %v770 = vadd.f32 %v696, %v753
      %v771 = vadd.f32 %v697, %v766
      %s772 = scalar_lea.vmem %s3, 12
      %v773 = vld [vmem:[%s772] sm:$0x3]
      %v774 = vld [vmem:[#allocation2] sm:$0x3f]
      %776 = vst [vmem:[#allocation1] ss:$4 sm:$0xff] %v774
      %v777 = vld.sshfl [vmem:[#allocation1] sm:$0xff pattern:$0x73625140]
      %v779 = vld.sshfl [vmem:[#allocation1 + $0x8] sm:$0xff pattern:$0x73625140]
      %v781 = vld.sshfl [vmem:[#allocation1 + $0x10] sm:$0xff pattern:$0x73625140]
      %783 = vrot.lane.b32.xlu0 %v777, 92
      %v784 = vpop.permute.xlu0 %783
      %785 = vrot.lane.b32.xlu0 %v779, 92
      %v786 = vpop.permute.xlu0 %785
      %787 = vrot.lane.b32.xlu0 %v781, 92
      %v788 = vpop.permute.xlu0 %787
      %vm789 = vcmask 752640
      %v790 = vsel %vm789, %v784, %v786
      %v791 = vsel %vm789, %v786, %v788
      %v793 = vsel %vm372, %v773, 0
      %v796 = vsel %vm329, %v790, 0
      %v799 = vsel %vm329, %v791, 0
      %v802 = vsel %vm329, %v788, 0
      %804 = vmatpush.bf16.msra.mxu0 0
      %805 = vmatpush.bf16.msra.mxu0 0
      %806 = vmatpush.bf16.msra.mxu0 0
      %807 = vmatpush.bf16.msra.mxu0 0
      %808 = vmatpush.bf16.msra.mxu0 0
      %809 = vmatpush.bf16.msra.mxu0 0
      %810 = vmatpush.bf16.msra.mxu0 0
      %811 = vmatpush.bf16.msra.mxu0 %v796
      %812 = vmatmul.bf16.gmra.mxu0 %v793
      %v813 = vpop.f32.mrf.mxu0
      %v814 = vadd.f32 0.0, %v813
      %v815 = vpop.f32.mrf.mxu0
      %816 = vdwg.mxu0
      %817 = vmatpush.bf16.msra.mxu0 0
      %818 = vmatpush.bf16.msra.mxu0 0
      %819 = vmatpush.bf16.msra.mxu0 0
      %820 = vmatpush.bf16.msra.mxu0 0
      %821 = vmatpush.bf16.msra.mxu0 0
      %822 = vmatpush.bf16.msra.mxu0 0
      %823 = vmatpush.bf16.msra.mxu0 0
      %824 = vmatpush.bf16.msra.mxu0 %v799
      %825 = vmatmul.bf16.gmra.mxu0 %v793
      %v826 = vpop.f32.mrf.mxu0
      %v827 = vadd.f32 0.0, %v826
      %v828 = vpop.f32.mrf.mxu0
      %829 = vdwg.mxu0
      %830 = vmatpush.bf16.msra.mxu0 0
      %831 = vmatpush.bf16.msra.mxu0 0
      %832 = vmatpush.bf16.msra.mxu0 0
      %833 = vmatpush.bf16.msra.mxu0 0
      %834 = vmatpush.bf16.msra.mxu0 0
      %835 = vmatpush.bf16.msra.mxu0 0
      %836 = vmatpush.bf16.msra.mxu0 0
      %837 = vmatpush.bf16.msra.mxu0 %v802
      %838 = vmatmul.bf16.gmra.mxu0 %v793
      %v839 = vpop.f32.mrf.mxu0
      %v840 = vadd.f32 0.0, %v839
      %v841 = vpop.f32.mrf.mxu0
      %842 = vdwg.mxu0
      %v843 = vadd.f32 %v769, %v814
      %v844 = vadd.f32 %v770, %v827
      %v845 = vadd.f32 %v771, %v840
      %s846 = scalar_lea.vmem %s3, 14
      %v847 = vld [vmem:[%s846] sm:$0x3]
      %v848 = vld [vmem:[#allocation2] sm:$0x3f]
      %850 = vst [vmem:[#allocation1] ss:$4 sm:$0xff] %v848
      %v851 = vld.sshfl [vmem:[#allocation1] sm:$0xff pattern:$0x73625140]
      %v853 = vld.sshfl [vmem:[#allocation1 + $0x8] sm:$0xff pattern:$0x73625140]
      %v855 = vld.sshfl [vmem:[#allocation1 + $0x10] sm:$0xff pattern:$0x73625140]
      %857 = vrot.lane.b32.xlu0 %v851, 91
      %v858 = vpop.permute.xlu0 %857
      %859 = vrot.lane.b32.xlu0 %v853, 91
      %v860 = vpop.permute.xlu0 %859
      %861 = vrot.lane.b32.xlu0 %v855, 91
      %v862 = vpop.permute.xlu0 %861
      %vm863 = vcmask 744448
      %v864 = vsel %vm863, %v858, %v860
      %v865 = vsel %vm863, %v860, %v862
      %v867 = vsel %vm372, %v847, 0
      %v870 = vsel %vm329, %v864, 0
      %v873 = vsel %vm329, %v865, 0
      %v876 = vsel %vm329, %v862, 0
      %878 = vmatpush.bf16.msra.mxu0 0
      %879 = vmatpush.bf16.msra.mxu0 0
      %880 = vmatpush.bf16.msra.mxu0 0
      %881 = vmatpush.bf16.msra.mxu0 0
      %882 = vmatpush.bf16.msra.mxu0 0
      %883 = vmatpush.bf16.msra.mxu0 0
      %884 = vmatpush.bf16.msra.mxu0 0
      %885 = vmatpush.bf16.msra.mxu0 %v870
      %886 = vmatmul.bf16.gmra.mxu0 %v867
      %v887 = vpop.f32.mrf.mxu0
      %v888 = vadd.f32 0.0, %v887
      %v889 = vpop.f32.mrf.mxu0
      %890 = vdwg.mxu0
      %891 = vmatpush.bf16.msra.mxu0 0
      %892 = vmatpush.bf16.msra.mxu0 0
      %893 = vmatpush.bf16.msra.mxu0 0
      %894 = vmatpush.bf16.msra.mxu0 0
      %895 = vmatpush.bf16.msra.mxu0 0
      %896 = vmatpush.bf16.msra.mxu0 0
      %897 = vmatpush.bf16.msra.mxu0 0
      %898 = vmatpush.bf16.msra.mxu0 %v873
      %899 = vmatmul.bf16.gmra.mxu0 %v867
      %v900 = vpop.f32.mrf.mxu0
      %v901 = vadd.f32 0.0, %v900
      %v902 = vpop.f32.mrf.mxu0
      %903 = vdwg.mxu0
      %904 = vmatpush.bf16.msra.mxu0 0
      %905 = vmatpush.bf16.msra.mxu0 0
      %906 = vmatpush.bf16.msra.mxu0 0
      %907 = vmatpush.bf16.msra.mxu0 0
      %908 = vmatpush.bf16.msra.mxu0 0
      %909 = vmatpush.bf16.msra.mxu0 0
      %910 = vmatpush.bf16.msra.mxu0 0
      %911 = vmatpush.bf16.msra.mxu0 %v876
      %912 = vmatmul.bf16.gmra.mxu0 %v867
      %v913 = vpop.f32.mrf.mxu0
      %v914 = vadd.f32 0.0, %v913
      %v915 = vpop.f32.mrf.mxu0
      %916 = vdwg.mxu0
      %v917 = vadd.f32 %v843, %v888
      %v918 = vadd.f32 %v844, %v901
      %v919 = vadd.f32 %v845, %v914
      %s920 = scalar_lea.vmem %s3, 16
      %v921 = vld [vmem:[%s920] sm:$0x3]
      %v922 = vld [vmem:[#allocation2] sm:$0x3f]
      %924 = vst [vmem:[#allocation1] ss:$4 sm:$0xff] %v922
      %v925 = vld.sshfl [vmem:[#allocation1] sm:$0xff pattern:$0x73625140]
      %v927 = vld.sshfl [vmem:[#allocation1 + $0x8] sm:$0xff pattern:$0x73625140]
      %v929 = vld.sshfl [vmem:[#allocation1 + $0x10] sm:$0xff pattern:$0x73625140]
      %931 = vrot.lane.b32.xlu0 %v925, 90
      %v932 = vpop.permute.xlu0 %931
      %933 = vrot.lane.b32.xlu0 %v927, 90
      %v934 = vpop.permute.xlu0 %933
      %935 = vrot.lane.b32.xlu0 %v929, 90
      %v936 = vpop.permute.xlu0 %935
      %vm937 = vcmask 736256
      %v938 = vsel %vm937, %v932, %v934
      %v939 = vsel %vm937, %v934, %v936
      %v941 = vsel %vm372, %v921, 0
      %v944 = vsel %vm329, %v938, 0
      %v947 = vsel %vm329, %v939, 0
      %v950 = vsel %vm329, %v936, 0
      %952 = vmatpush.bf16.msra.mxu0 0
      %953 = vmatpush.bf16.msra.mxu0 0
      %954 = vmatpush.bf16.msra.mxu0 0
      %955 = vmatpush.bf16.msra.mxu0 0
      %956 = vmatpush.bf16.msra.mxu0 0
      %957 = vmatpush.bf16.msra.mxu0 0
      %958 = vmatpush.bf16.msra.mxu0 0
      %959 = vmatpush.bf16.msra.mxu0 %v944
      %960 = vmatmul.bf16.gmra.mxu0 %v941
      %v961 = vpop.f32.mrf.mxu0
      %v962 = vadd.f32 0.0, %v961
      %v963 = vpop.f32.mrf.mxu0
      %964 = vdwg.mxu0
      %965 = vmatpush.bf16.msra.mxu0 0
      %966 = vmatpush.bf16.msra.mxu0 0
      %967 = vmatpush.bf16.msra.mxu0 0
      %968 = vmatpush.bf16.msra.mxu0 0
      %969 = vmatpush.bf16.msra.mxu0 0
      %970 = vmatpush.bf16.msra.mxu0 0
      %971 = vmatpush.bf16.msra.mxu0 0
      %972 = vmatpush.bf16.msra.mxu0 %v947
      %973 = vmatmul.bf16.gmra.mxu0 %v941
      %v974 = vpop.f32.mrf.mxu0
      %v975 = vadd.f32 0.0, %v974
      %v976 = vpop.f32.mrf.mxu0
      %977 = vdwg.mxu0
      %978 = vmatpush.bf16.msra.mxu0 0
      %979 = vmatpush.bf16.msra.mxu0 0
      %980 = vmatpush.bf16.msra.mxu0 0
      %981 = vmatpush.bf16.msra.mxu0 0
      %982 = vmatpush.bf16.msra.mxu0 0
      %983 = vmatpush.bf16.msra.mxu0 0
      %984 = vmatpush.bf16.msra.mxu0 0
      %985 = vmatpush.bf16.msra.mxu0 %v950
      %986 = vmatmul.bf16.gmra.mxu0 %v941
      %v987 = vpop.f32.mrf.mxu0
      %v988 = vadd.f32 0.0, %v987
      %v989 = vpop.f32.mrf.mxu0
      %990 = vdwg.mxu0
      %v991 = vadd.f32 %v917, %v962
      %v992 = vadd.f32 %v918, %v975
      %v993 = vadd.f32 %v919, %v988
      %v994 = vmul.f32 %v991, %v295
      %v995 = vmul.f32 %v992, %v296
      %v996 = vmul.f32 %v993, %v297
      %v997 = vpack.c.bf16 %v995, %v994
      %v998 = vpack.c.bf16 %v996, %v996
      %v1001 = vrot.slane %v997, 2
      %v1002 = vrot.slane %v998, 4
      %v1003 = vrot.slane %v998, 6
      %v1006 = vsel %vm329, %v997, %v1001
      %v1009 = vsel %vm333, %v1002, %v1003
      %v1010 = vsel %vm302, %v1006, %v1009
      %vm1012 = vmor %vm346, %vm329
      %vm1013 = vcmask 553988
      %vm1014 = vmor %vm1013, %vm1012
      %1015 = vst.msk [vmem:[%s258] sm:$0x3f] %vm1014, %v1010
      %v1016 = vunpack.c.l.bf16 %v997
      %v1017 = vunpack.c.h.bf16 %v997
      %v1018 = vunpack.c.l.bf16 %v998
      %v1019 = vsel %vm302, %v1016, 0.0
      %v1020 = vsel %vm302, %v1017, 0.0
      %v1021 = vadd.f32 %v1019, %v1020
      %vm1022 = vcmask 551936
      %v1023 = vsel %vm1022, %v1018, 0.0
      %v1024 = vadd.f32 %v1021, %v1023
      %1025 = vadd.xlane.f32.xlu0 %v1024
      %v1026 = vpop.xlane.xlu0 %1025
      %v1027 = vmul.f32 %v1016, %v1016
      %v1028 = vmul.f32 %v1017, %v1017
      %v1029 = vmul.f32 %v1018, %v1018
      %v1030 = vsel %vm302, %v1027, 0.0
      %v1031 = vsel %vm302, %v1028, 0.0
      %v1032 = vadd.f32 %v1030, %v1031
      %v1033 = vsel %vm1022, %v1029, 0.0
      %v1034 = vadd.f32 %v1032, %v1033
      %1035 = vadd.xlane.f32.xlu0 %v1034
      %v1036 = vpop.xlane.xlu0 %1035
      %vm1037 = vcmask 7168
      %v1038 = vsel %vm1037, %v1026, %v1036
      %vm1039 = vcmask 11264
      %1040 = vst.msk [vmem:[%s262] sm:$0xf] %vm1039, %v1038
      %p1041 = scmp.lt.s32.totalorder %s18, 1
      %s1042 = scalar_select %p1041, %s18, 1
      %s1043 = smul.addr %s1042, 3
      %s1044 = smul.addr %s1043, 2
      %s1045 = scalar_lea.vmem %s5, %s1044
      %p1046 = scmp.lt.s32.totalorder %s18, 1
      %s1047 = scalar_select %p1046, %s18, 1
      %s1048 = smul.addr %s1047, 4
      %s1049 = scalar_lea.vmem %s6, %s1048
      // Predicated region
      $region41: #{unet_up_forward.4} parent=39 // pred_check
        %p1050 = pneg %p146
      $region42: #{unet_up_forward.4} parent=39 // pred_check_branch
        %1052 = sbr.rel (%p1050) target = $region44
      $region43: #{unet_up_forward.4} parent=39 // pred_region
        _
      $region44: #{unet_up_forward.4} parent=39 // pred_fallthru
        _
      // Predicated region
      $region45: #{unet_up_forward.4} parent=39 // pred_check
        %p1053 = pneg %p172
      $region46: #{unet_up_forward.4} parent=39 // pred_check_branch
        %1055 = sbr.rel (%p1053) target = $region48
      $region47: #{unet_up_forward.4} parent=39 // pred_region
        _
      $region48: #{unet_up_forward.4} parent=39 // pred_fallthru
        _
    $region40: #{unet_up_forward.4} parent=5 // pred_fallthru
      _
    %p1056 = scmp.le.s32.totalorder 2, %s13
    // Predicated region
    $region49: #{unet_up_forward.4} parent=5 // pred_check
      %p1057 = pneg %p1056
    $region50: #{unet_up_forward.4} parent=5 // pred_check_branch
      %1059 = sbr.rel (%p1057) target = $region52
    $region51: #{unet_up_forward.4} parent=5 // pred_region
      %s1060 = ssub.s32 %s13, 2
      // Predicated region
      $region53: #{unet_up_forward.4} parent=51 // pred_check
        %p1061 = pneg %p152
      $region54: #{unet_up_forward.4} parent=51 // pred_check_branch
        %1063 = sbr.rel (%p1061) target = $region56
      $region55: #{unet_up_forward.4} parent=51 // pred_region
        %p1064 = scmp.lt.s32.totalorder %s19, 1
        %s1065 = scalar_select %p1064, %s19, 1
        %s1066 = smul.addr %s1065, 3
        %s1067 = smul.addr %s1066, 2
        %s1068 = scalar_lea.vmem %s5, %s1067
      $region56: #{unet_up_forward.4} parent=51 // pred_fallthru
        _
      // Predicated region
      $region57: #{unet_up_forward.4} parent=51 // pred_check
        %p1069 = pneg %p178
      $region58: #{unet_up_forward.4} parent=51 // pred_check_branch
        %1071 = sbr.rel (%p1069) target = $region60
      $region59: #{unet_up_forward.4} parent=51 // pred_region
        %p1072 = scmp.lt.s32.totalorder %s19, 1
        %s1073 = scalar_select %p1072, %s19, 1
        %s1074 = smul.addr %s1073, 4
        %s1075 = scalar_lea.vmem %s6, %s1074
      $region60: #{unet_up_forward.4} parent=51 // pred_fallthru
        _
    $region52: #{unet_up_forward.4} parent=5 // pred_fallthru
      _
  $region6: #{unet_up_forward.4} parent=0 // loop_footer
    %s17 = sadd.s32 1, %s13
  $region7: #{unet_up_forward.4} parent=0 // loop_footer_branch
    %12 = sbr.rel target = $region3
  $region8: #{unet_up_forward.4} parent=0 // loop_exit
    _

// kernel: unet_up_forward.3
$region0: #{unet_up_forward.3}
  #allocation0 [shape = 'u32[]', space=smem, size = 0x4, offset = 0x4, fixed_abs, tag = 'smem constant byte address 0x4 - core index']
  #allocation1 [shape = 'u32[72,128]{1,0:T(1,128)}', space=vmem, size = 0x9000, scoped, tag = 'internal scratch']
  #allocation2 [shape = 'bf16[4,362]{1,0:T(4,128)(2,1)}', space=vmem, size = 0xc00, scoped, tag = 'scratch operand']
  #allocation3 [shape = 'bf16[4,362]{1,0:T(4,128)(2,1)}', space=vmem, size = 0xc00, scoped, tag = 'scratch operand']
  %s0 = inlined_call_operand.vmem [shape: bf16[2,16,144], index: 0, kind: input, shape index: {}]
  %s1 = inlined_call_operand.vmem [shape: bf16[2,4,288], index: 1, kind: input, shape index: {}]
  %s2 = inlined_call_operand.vmem [shape: bf16[2,4,16], index: 2, kind: input, shape index: {}]
  %s3 = inlined_call_operand.vmem [shape: bf16[9,4,4], index: 3, kind: input, shape index: {}]
  %s4 = inlined_call_operand.vmem [shape: bf16[9,4,4], index: 4, kind: input, shape index: {}]
  %s5 = inlined_call_operand.vmem [shape: f32[1,324], index: 5, kind: input, shape index: {}]
  %s6 = inlined_call_operand.vmem [shape: bf16[2,4,324], index: 6, kind: output, shape index: {0}]
  %s7 = inlined_call_operand.vmem [shape: f32[2,4,2], index: 7, kind: output, shape index: {1}]
  %8 = xla_tuple %s6, %s7
  %s9 = sld [smem:[#allocation0]]
  $region65: #{unet_up_forward.3} parent=0
    _
  %s11 = ssub.s32 1, %s9
  %s12 = scalar_select 0, %s11, %s9
  loop: start=0, step=1, limit=4
  $region2: #{unet_up_forward.3} parent=0 // loop_pre_header
    _
  $region3: #{unet_up_forward.3} parent=0 // loop_header
    %s14 = sphi 0, %s18
    %p15 = scmp.ge.s32.totalorder %s14, 4
    %s24 = sphi 0, %s26
    %s27 = sphi 0, %s24
    %s28 = sphi 0, %s27
    %s44 = sphi 0, %s28
    %s50 = sphi 0, %s52
    %s53 = sphi 0, %s50
    %s54 = sphi 0, %s53
    %s70 = sphi 0, %s54
    %s74 = sphi 0, %s74
    %s76 = sphi 0, %s74
    %s77 = sphi 0, %s76
    %s91 = sphi 0, %s77
    %s95 = sphi 0, %s95
    %s97 = sphi 0, %s95
    %s98 = sphi 0, %s97
    %s112 = sphi 0, %s98
    %s116 = sphi 0, %s116
    %s118 = sphi 0, %s116
    %s119 = sphi 0, %s118
    %s133 = sphi 0, %s119
    %s137 = sphi 0, %s137
    %s139 = sphi 0, %s137
    %s140 = sphi 0, %s139
    %s154 = sphi 0, %s140
    %s160 = sphi 0, %s162
    %s163 = sphi 0, %s160
    %s164 = sphi 0, %s163
    %s180 = sphi 0, %s164
    %s186 = sphi 0, %s188
    %s189 = sphi 0, %s186
    %s190 = sphi 0, %s189
    %s206 = sphi 0, %s190
  $region4: #{unet_up_forward.3} parent=0 // loop_header_branch
    %17 = sbr.rel (%p15) target = $region8
  $region5: #{unet_up_forward.3} parent=0 // loop_body
    %s19 = ssub.s32 %s14, 1
    %s20 = ssub.s32 %s14, 2
    %s21 = sadd.s32 %s14, 1
    %s22 = ssub.s32 %s14, %s21
    %p23 = scmp.eq.s32.totalorder %s22, 0
    %s25 = sadd.s32 %s24, 1
    %s26 = scalar_select %p23, %s24, %s25
    %p29 = pneg %p23
    %p30 = scmp.eq.s32.totalorder %s14, 1
    %p31 = por %p29, %p30
    %p32 = scmp.ne.s32.totalorder %s24, %s27
    %p33 = scmp.eq.s32.totalorder %s14, 0
    %p34 = por %p32, %p33
    %p35 = scmp.ne.s32.totalorder %s24, %s27
    %p36 = scmp.eq.s32.totalorder %s19, 1
    %p37 = por %p35, %p36
    %p38 = scmp.ne.s32.totalorder %s27, %s28
    %p39 = scmp.eq.s32.totalorder %s19, 0
    %p40 = por %p38, %p39
    %p41 = scmp.ne.s32.totalorder %s27, %s28
    %p42 = scmp.eq.s32.totalorder %s20, 1
    %p43 = por %p41, %p42
    %p45 = scmp.ne.s32.totalorder %s28, %s44
    %p46 = scmp.eq.s32.totalorder %s20, 0
    %p47 = por %p45, %p46
    %s48 = ssub.s32 %s14, %s21
    %p49 = scmp.eq.s32.totalorder %s48, 0
    %s51 = sadd.s32 %s50, 1
    %s52 = scalar_select %p49, %s50, %s51
    %p55 = pneg %p49
    %p56 = scmp.eq.s32.totalorder %s14, 1
    %p57 = por %p55, %p56
    %p58 = scmp.ne.s32.totalorder %s50, %s53
    %p59 = scmp.eq.s32.totalorder %s14, 0
    %p60 = por %p58, %p59
    %p61 = scmp.ne.s32.totalorder %s50, %s53
    %p62 = scmp.eq.s32.totalorder %s19, 1
    %p63 = por %p61, %p62
    %p64 = scmp.ne.s32.totalorder %s53, %s54
    %p65 = scmp.eq.s32.totalorder %s19, 0
    %p66 = por %p64, %p65
    %p67 = scmp.ne.s32.totalorder %s53, %s54
    %p68 = scmp.eq.s32.totalorder %s20, 1
    %p69 = por %p67, %p68
    %p71 = scmp.ne.s32.totalorder %s54, %s70
    %p72 = scmp.eq.s32.totalorder %s20, 0
    %p73 = por %p71, %p72
    %s75 = sadd.s32 %s74, 1
    %p78 = scmp.eq.s32.totalorder %s14, 1
    %p79 = scmp.ne.s32.totalorder %s74, %s76
    %p80 = scmp.eq.s32.totalorder %s14, 0
    %p81 = por %p79, %p80
    %p82 = scmp.ne.s32.totalorder %s74, %s76
    %p83 = scmp.eq.s32.totalorder %s19, 1
    %p84 = por %p82, %p83
    %p85 = scmp.ne.s32.totalorder %s76, %s77
    %p86 = scmp.eq.s32.totalorder %s19, 0
    %p87 = por %p85, %p86
    %p88 = scmp.ne.s32.totalorder %s76, %s77
    %p89 = scmp.eq.s32.totalorder %s20, 1
    %p90 = por %p88, %p89
    %p92 = scmp.ne.s32.totalorder %s77, %s91
    %p93 = scmp.eq.s32.totalorder %s20, 0
    %p94 = por %p92, %p93
    %s96 = sadd.s32 %s95, 1
    %p99 = scmp.eq.s32.totalorder %s14, 1
    %p100 = scmp.ne.s32.totalorder %s95, %s97
    %p101 = scmp.eq.s32.totalorder %s14, 0
    %p102 = por %p100, %p101
    %p103 = scmp.ne.s32.totalorder %s95, %s97
    %p104 = scmp.eq.s32.totalorder %s19, 1
    %p105 = por %p103, %p104
    %p106 = scmp.ne.s32.totalorder %s97, %s98
    %p107 = scmp.eq.s32.totalorder %s19, 0
    %p108 = por %p106, %p107
    %p109 = scmp.ne.s32.totalorder %s97, %s98
    %p110 = scmp.eq.s32.totalorder %s20, 1
    %p111 = por %p109, %p110
    %p113 = scmp.ne.s32.totalorder %s98, %s112
    %p114 = scmp.eq.s32.totalorder %s20, 0
    %p115 = por %p113, %p114
    %s117 = sadd.s32 %s116, 1
    %p120 = scmp.eq.s32.totalorder %s14, 1
    %p121 = scmp.ne.s32.totalorder %s116, %s118
    %p122 = scmp.eq.s32.totalorder %s14, 0
    %p123 = por %p121, %p122
    %p124 = scmp.ne.s32.totalorder %s116, %s118
    %p125 = scmp.eq.s32.totalorder %s19, 1
    %p126 = por %p124, %p125
    %p127 = scmp.ne.s32.totalorder %s118, %s119
    %p128 = scmp.eq.s32.totalorder %s19, 0
    %p129 = por %p127, %p128
    %p130 = scmp.ne.s32.totalorder %s118, %s119
    %p131 = scmp.eq.s32.totalorder %s20, 1
    %p132 = por %p130, %p131
    %p134 = scmp.ne.s32.totalorder %s119, %s133
    %p135 = scmp.eq.s32.totalorder %s20, 0
    %p136 = por %p134, %p135
    %s138 = sadd.s32 %s137, 1
    %p141 = scmp.eq.s32.totalorder %s14, 1
    %p142 = scmp.ne.s32.totalorder %s137, %s139
    %p143 = scmp.eq.s32.totalorder %s14, 0
    %p144 = por %p142, %p143
    %p145 = scmp.ne.s32.totalorder %s137, %s139
    %p146 = scmp.eq.s32.totalorder %s19, 1
    %p147 = por %p145, %p146
    %p148 = scmp.ne.s32.totalorder %s139, %s140
    %p149 = scmp.eq.s32.totalorder %s19, 0
    %p150 = por %p148, %p149
    %p151 = scmp.ne.s32.totalorder %s139, %s140
    %p152 = scmp.eq.s32.totalorder %s20, 1
    %p153 = por %p151, %p152
    %p155 = scmp.ne.s32.totalorder %s140, %s154
    %p156 = scmp.eq.s32.totalorder %s20, 0
    %p157 = por %p155, %p156
    %s158 = ssub.s32 %s14, %s21
    %p159 = scmp.eq.s32.totalorder %s158, 0
    %s161 = sadd.s32 %s160, 1
    %s162 = scalar_select %p159, %s160, %s161
    %p165 = pneg %p159
    %p166 = scmp.eq.s32.totalorder %s14, 1
    %p167 = por %p165, %p166
    %p168 = scmp.ne.s32.totalorder %s160, %s163
    %p169 = scmp.eq.s32.totalorder %s14, 0
    %p170 = por %p168, %p169
    %p171 = scmp.ne.s32.totalorder %s160, %s163
    %p172 = scmp.eq.s32.totalorder %s19, 1
    %p173 = por %p171, %p172
    %p174 = scmp.ne.s32.totalorder %s163, %s164
    %p175 = scmp.eq.s32.totalorder %s19, 0
    %p176 = por %p174, %p175
    %p177 = scmp.ne.s32.totalorder %s163, %s164
    %p178 = scmp.eq.s32.totalorder %s20, 1
    %p179 = por %p177, %p178
    %p181 = scmp.ne.s32.totalorder %s164, %s180
    %p182 = scmp.eq.s32.totalorder %s20, 0
    %p183 = por %p181, %p182
    %s184 = ssub.s32 %s14, %s21
    %p185 = scmp.eq.s32.totalorder %s184, 0
    %s187 = sadd.s32 %s186, 1
    %s188 = scalar_select %p185, %s186, %s187
    %p191 = pneg %p185
    %p192 = scmp.eq.s32.totalorder %s14, 1
    %p193 = por %p191, %p192
    %p194 = scmp.ne.s32.totalorder %s186, %s189
    %p195 = scmp.eq.s32.totalorder %s14, 0
    %p196 = por %p194, %p195
    %p197 = scmp.ne.s32.totalorder %s186, %s189
    %p198 = scmp.eq.s32.totalorder %s19, 1
    %p199 = por %p197, %p198
    %p200 = scmp.ne.s32.totalorder %s189, %s190
    %p201 = scmp.eq.s32.totalorder %s19, 0
    %p202 = por %p200, %p201
    %p203 = scmp.ne.s32.totalorder %s189, %s190
    %p204 = scmp.eq.s32.totalorder %s20, 1
    %p205 = por %p203, %p204
    %p207 = scmp.ne.s32.totalorder %s190, %s206
    %p208 = scmp.eq.s32.totalorder %s20, 0
    %p209 = por %p207, %p208
    %p210 = scmp.le.s32.totalorder 1, %s14
    %p211 = scmp.lt.s32.totalorder %s14, 3
    %p212 = pnand %p210, %p211
    %p213 = pneg %p212
    // Predicated region
    $region9: #{unet_up_forward.3} parent=5 // pred_check
      _
    $region10: #{unet_up_forward.3} parent=5 // pred_check_branch
      %215 = sbr.rel (%p212) target = $region12
    $region11: #{unet_up_forward.3} parent=5 // pred_region
      %s216 = ssub.s32 %s14, 1
      // Predicated region
      $region13: #{unet_up_forward.3} parent=11 // pred_check
        %p217 = pneg %p87
      $region14: #{unet_up_forward.3} parent=11 // pred_check_branch
        %219 = sbr.rel (%p217) target = $region16
      $region15: #{unet_up_forward.3} parent=11 // pred_region
        _
      $region16: #{unet_up_forward.3} parent=11 // pred_fallthru
        _
      // Predicated region
      $region17: #{unet_up_forward.3} parent=11 // pred_check
        %p220 = pneg %p108
      $region18: #{unet_up_forward.3} parent=11 // pred_check_branch
        %222 = sbr.rel (%p220) target = $region20
      $region19: #{unet_up_forward.3} parent=11 // pred_region
        _
      $region20: #{unet_up_forward.3} parent=11 // pred_fallthru
        _
      // Predicated region
      $region21: #{unet_up_forward.3} parent=11 // pred_check
        %p223 = pneg %p129
      $region22: #{unet_up_forward.3} parent=11 // pred_check_branch
        %225 = sbr.rel (%p223) target = $region24
      $region23: #{unet_up_forward.3} parent=11 // pred_region
        _
      $region24: #{unet_up_forward.3} parent=11 // pred_fallthru
        _
      // Predicated region
      $region25: #{unet_up_forward.3} parent=11 // pred_check
        %p226 = pneg %p150
      $region26: #{unet_up_forward.3} parent=11 // pred_check_branch
        %228 = sbr.rel (%p226) target = $region28
      $region27: #{unet_up_forward.3} parent=11 // pred_region
        _
      $region28: #{unet_up_forward.3} parent=11 // pred_fallthru
        _
    $region12: #{unet_up_forward.3} parent=5 // pred_fallthru
      _
    %p229 = scmp.lt.s32.totalorder %s14, 2
    // Predicated region
    $region29: #{unet_up_forward.3} parent=5 // pred_check
      %p230 = pneg %p229
    $region30: #{unet_up_forward.3} parent=5 // pred_check_branch
      %232 = sbr.rel (%p230) target = $region32
    $region31: #{unet_up_forward.3} parent=5 // pred_region
      // Predicated region
      $region33: #{unet_up_forward.3} parent=31 // pred_check
        %p233 = pneg %p34
      $region34: #{unet_up_forward.3} parent=31 // pred_check_branch
        %235 = sbr.rel (%p233) target = $region36
      $region35: #{unet_up_forward.3} parent=31 // pred_region
        %p236 = scmp.lt.s32.totalorder %s14, 1
        %s237 = scalar_select %p236, %s14, 1
        %s238 = smul.addr %s237, 4
        %s239 = smul.addr %s238, 4
        %s240 = scalar_lea.vmem %s0, %s239
      $region36: #{unet_up_forward.3} parent=31 // pred_fallthru
        _
      // Predicated region
      $region37: #{unet_up_forward.3} parent=31 // pred_check
        %p241 = pneg %p60
      $region38: #{unet_up_forward.3} parent=31 // pred_check_branch
        %243 = sbr.rel (%p241) target = $region40
      $region39: #{unet_up_forward.3} parent=31 // pred_region
        %p244 = scmp.lt.s32.totalorder %s14, 1
        %s245 = scalar_select %p244, %s14, 1
        %s246 = smul.addr %s245, 3
        %s247 = smul.addr %s246, 2
        %s248 = scalar_lea.vmem %s1, %s247
      $region40: #{unet_up_forward.3} parent=31 // pred_fallthru
        _
    $region32: #{unet_up_forward.3} parent=5 // pred_fallthru
      _
    %p249 = scmp.le.s32.totalorder 1, %s14
    %p250 = scmp.lt.s32.totalorder %s14, 3
    %p251 = pnand %p249, %p250
    %p252 = pneg %p251
    // Predicated region
    $region41: #{unet_up_forward.3} parent=5 // pred_check
      _
    $region42: #{unet_up_forward.3} parent=5 // pred_check_branch
      %254 = sbr.rel (%p251) target = $region44
    $region43: #{unet_up_forward.3} parent=5 // pred_region
      %s255 = ssub.s32 %s14, 1
      %p256 = scmp.lt.s32.totalorder %s19, 1
      %s257 = scalar_select %p256, %s19, 1
      %s258 = smul.addr %s257, 4
      %s259 = smul.addr %s258, 4
      %s260 = scalar_lea.vmem %s0, %s259
      %p261 = pneg %p40
      %p262 = pneg %p37
      %p263 = scmp.lt.s32.totalorder %s19, 1
      %s264 = scalar_select %p263, %s19, 1
      %s265 = smul.addr %s264, 3
      %s266 = smul.addr %s265, 2
      %s267 = scalar_lea.vmem %s1, %s266
      %p268 = pneg %p66
      %p269 = pneg %p63
      %p270 = pneg %p87
      %p271 = pneg %p84
      %p272 = pneg %p108
      %p273 = pneg %p105
      %p274 = pneg %p129
      %p275 = pneg %p126
      %p276 = pneg %p150
      %p277 = pneg %p147
      %p278 = pneg %p176
      %p279 = pneg %p173
      %p280 = scmp.lt.s32.totalorder %s19, 1
      %s281 = scalar_select %p280, %s19, 1
      %s282 = smul.addr %s281, 3
      %s283 = smul.addr %s282, 2
      %s284 = scalar_lea.vmem %s6, %s283
      %p285 = pneg %p202
      %p286 = pneg %p199
      %p287 = scmp.lt.s32.totalorder %s19, 1
      %s288 = scalar_select %p287, %s19, 1
      %s289 = smul.addr %s288, 4
      %s290 = scalar_lea.vmem %s7, %s289
      %p291 = scmp.lt.s32.totalorder %s19, 1
      %s292 = scalar_select %p291, %s19, 1
      %s293 = smul.addr %s292, 4
      %s294 = smul.addr %s293, 4
      %s295 = scalar_lea.vmem %s0, %s294
      %p296 = scmp.lt.s32.totalorder %s19, 1
      %s297 = scalar_select %p296, %s19, 1
      %s298 = smul.addr %s297, 3
      %s299 = smul.addr %s298, 2
      %s300 = scalar_lea.vmem %s1, %s299
      %p301 = scmp.lt.s32.totalorder %s19, 1
      %s302 = scalar_select %p301, %s19, 1
      %s303 = smul.addr %s302, 3
      %s304 = smul.addr %s303, 2
      %s305 = scalar_lea.vmem %s6, %s304
      %p306 = scmp.lt.s32.totalorder %s19, 1
      %s307 = scalar_select %p306, %s19, 1
      %s308 = smul.addr %s307, 4
      %s309 = scalar_lea.vmem %s7, %s308
      %v311 = vld [vmem:[%s295] sm:$0xff]
      %v312 = vld [vmem:[%s295 + $0x8] sm:$0xff]
      %v313 = vld [vmem:[%s2] sm:$0x3]
      %v316 = vunpack.c.l.b16 %v311
      %v317 = vunpack.c.h.b16 %v311
      %v318 = vunpack.c.l.b16 %v312
      %v319 = vunpack.c.h.b16 %v312
      %v320 = vpack.c.b16 %v318, %v316
      %v321 = vpack.c.b16 %v319, %v317
      %vm324 = vcmask 130048
      %v326 = vsel %vm324, %v313, 0
      %328 = vmatpush.bf16.msra.mxu0 0
      %329 = vmatpush.bf16.msra.mxu0 0
      %330 = vmatpush.bf16.msra.mxu0 0
      %331 = vmatpush.bf16.msra.mxu0 0
      %332 = vmatpush.bf16.msra.mxu0 0
      %333 = vmatpush.bf16.msra.mxu0 0
      %334 = vmatpush.bf16.msra.mxu0 0
      %335 = vmatpush.bf16.msra.mxu0 %v320
      %336 = vmatmul.bf16.gmra.mxu0 %v326
      %v337 = vpop.f32.mrf.mxu0
      %v338 = vadd.f32 0.0, %v337
      %v339 = vpop.f32.mrf.mxu0
      %340 = vdwg.mxu0
      %341 = vmatpush.bf16.msra.mxu0 0
      %342 = vmatpush.bf16.msra.mxu0 0
      %343 = vmatpush.bf16.msra.mxu0 0
      %344 = vmatpush.bf16.msra.mxu0 0
      %345 = vmatpush.bf16.msra.mxu0 0
      %346 = vmatpush.bf16.msra.mxu0 0
      %347 = vmatpush.bf16.msra.mxu0 0
      %348 = vmatpush.bf16.msra.mxu0 %v321
      %349 = vmatmul.bf16.gmra.mxu0 %v326
      %v350 = vpop.f32.mrf.mxu0
      %v351 = vadd.f32 0.0, %v350
      %v352 = vpop.f32.mrf.mxu0
      %353 = vdwg.mxu0
      %v354 = vpack.c.bf16 %v351, %v338
      %s355 = scalar_lea.vmem %s2, 2
      %v356 = vld [vmem:[%s355] sm:$0x3]
      %v358 = vsel %vm324, %v356, 0
      %360 = vmatpush.bf16.msra.mxu0 0
      %361 = vmatpush.bf16.msra.mxu0 0
      %362 = vmatpush.bf16.msra.mxu0 0
      %363 = vmatpush.bf16.msra.mxu0 0
      %364 = vmatpush.bf16.msra.mxu0 0
      %365 = vmatpush.bf16.msra.mxu0 0
      %366 = vmatpush.bf16.msra.mxu0 0
      %367 = vmatpush.bf16.msra.mxu0 %v320
      %368 = vmatmul.bf16.gmra.mxu0 %v358
      %v369 = vpop.f32.mrf.mxu0
      %v370 = vadd.f32 0.0, %v369
      %v371 = vpop.f32.mrf.mxu0
      %372 = vdwg.mxu0
      %373 = vmatpush.bf16.msra.mxu0 0
      %374 = vmatpush.bf16.msra.mxu0 0
      %375 = vmatpush.bf16.msra.mxu0 0
      %376 = vmatpush.bf16.msra.mxu0 0
      %377 = vmatpush.bf16.msra.mxu0 0
      %378 = vmatpush.bf16.msra.mxu0 0
      %379 = vmatpush.bf16.msra.mxu0 0
      %380 = vmatpush.bf16.msra.mxu0 %v321
      %381 = vmatmul.bf16.gmra.mxu0 %v358
      %v382 = vpop.f32.mrf.mxu0
      %v383 = vadd.f32 0.0, %v382
      %v384 = vpop.f32.mrf.mxu0
      %385 = vdwg.mxu0
      %v386 = vpack.c.bf16 %v383, %v370
      %vm387 = vcmask 295936
      %388 = vst.msk [vmem:[#allocation2] sm:$0x3] %vm387, 0
      %vm389 = vcmask 861736
      %390 = vst.msk [vmem:[#allocation2 + $0x4] sm:$0x3] %vm389, 0
      %391 = vst.msk [vmem:[#allocation3] sm:$0x3] %vm387, 0
      %392 = vst.msk [vmem:[#allocation3 + $0x4] sm:$0x3] %vm389, 0
      %v393 = vld [vmem:[%s300] sm:$0x3f]
      %395 = vrot.lane.b32.xlu0 %v393, 37
      %v396 = vpop.permute.xlu0 %395
      %v397 = vrot.slane %v396, 6
      %vm398 = vcmask 302080
      %v399 = vsel %vm398, %v397, %v396
      %vm401 = vcmask 1041704
      %vm402 = vcmask 1043458
      %vm403 = vmor %vm402, %vm401
      %vm404 = vcmask 562180
      %vm405 = vmor %vm404, %vm403
      %406 = vst.msk [vmem:[#allocation3] sm:$0x3f] %vm405, %v399
      %v408 = vrot.slane %v354, 2
      %vm409 = vcmask 1041408
      %v412 = vsel %vm409, %v354, %v408
      %414 = vrot.lane.b32.xlu0 %v412, 37
      %v415 = vpop.permute.xlu0 %414
      %vm417 = vcmask 443688
      %418 = vst.msk [vmem:[#allocation2] sm:$0x3] %vm417, %v415
      %v420 = vrot.slane %v386, 2
      %v423 = vsel %vm409, %v386, %v420
      %425 = vrot.lane.b32.xlu0 %v423, 55
      %v426 = vpop.permute.xlu0 %425
      %vm428 = vcmask 591288
      %429 = vst.msk [vmem:[#allocation2] sm:$0x3] %vm428, %v426
      %430 = vrot.lane.b32.xlu0 %v412, 55
      %v431 = vpop.permute.xlu0 %430
      %vm433 = vcmask 738888
      %434 = vst.msk [vmem:[#allocation2] sm:$0x3] %vm433, %v431
      %435 = vrot.lane.b32.xlu0 %v423, 73
      %v436 = vpop.permute.xlu0 %435
      %vm438 = vcmask 886488
      %439 = vst.msk [vmem:[#allocation2] sm:$0x3] %vm438, %v436
      %440 = vrot.lane.b32.xlu0 %v412, 73
      %v441 = vpop.permute.xlu0 %440
      %vm443 = vcmask 1034088
      %444 = vst.msk [vmem:[#allocation2] sm:$0x3] %vm443, %v441
      %445 = vrot.lane.b32.xlu0 %v423, 91
      %v446 = vpop.permute.xlu0 %445
      %v447 = vrot.slane %v446, 6
      %vm448 = vcmask 744448
      %v449 = vsel %vm448, %v447, %v446
      %vm451 = vcmask 1042424
      %vm452 = vcmask 134146
      %vm453 = vmor %vm452, %vm451
      %454 = vst.msk [vmem:[#allocation2] sm:$0xf] %vm453, %v449
      %455 = vrot.lane.b32.xlu0 %v412, 91
      %v456 = vpop.permute.xlu0 %455
      %vm458 = vcmask 279688
      %459 = vst.msk [vmem:[#allocation2 + $0x2] sm:$0x3] %vm458, %v456
      %460 = vrot.lane.b32.xlu0 %v423, 109
      %v461 = vpop.permute.xlu0 %460
      %vm463 = vcmask 427288
      %464 = vst.msk [vmem:[#allocation2 + $0x2] sm:$0x3] %vm463, %v461
      %465 = vrot.lane.b32.xlu0 %v412, 109
      %v466 = vpop.permute.xlu0 %465
      %vm468 = vcmask 574888
      %469 = vst.msk [vmem:[#allocation2 + $0x2] sm:$0x3] %vm468, %v466
      %470 = vrot.lane.b32.xlu0 %v423, 127
      %v471 = vpop.permute.xlu0 %470
      %vm473 = vcmask 722488
      %474 = vst.msk [vmem:[#allocation2 + $0x2] sm:$0x3] %vm473, %v471
      %475 = vrot.lane.b32.xlu0 %v412, 127
      %v476 = vpop.permute.xlu0 %475
      %vm478 = vcmask 870088
      %479 = vst.msk [vmem:[#allocation2 + $0x2] sm:$0x3] %vm478, %v476
      %480 = vrot.lane.b32.xlu0 %v423, 17
      %v481 = vpop.permute.xlu0 %480
      %vm483 = vcmask 1017688
      %484 = vst.msk [vmem:[#allocation2 + $0x2] sm:$0x3] %vm483, %v481
      %485 = vrot.lane.b32.xlu0 %v412, 17
      %v486 = vpop.permute.xlu0 %485
      %v487 = vrot.slane %v486, 6
      %vm488 = vcmask 138240
      %v489 = vsel %vm488, %v487, %v486
      %vm491 = vcmask 1042408
      %vm492 = vcmask 117762
      %vm493 = vmor %vm492, %vm491
      %494 = vst.msk [vmem:[#allocation2 + $0x2] sm:$0xf] %vm493, %v489
      %495 = vrot.lane.b32.xlu0 %v423, 35
      %v496 = vpop.permute.xlu0 %495
      %vm498 = vcmask 263288
      %499 = vst.msk [vmem:[#allocation2 + $0x4] sm:$0x3] %vm498, %v496
      %500 = vrot.lane.b32.xlu0 %v412, 35
      %v501 = vpop.permute.xlu0 %500
      %v502 = vrot.slane %v501, 2
      %vm503 = vcmask 285696
      %v504 = vsel %vm503, %v501, %v502
      %vm506 = vcmask 410888
      %507 = vst.msk [vmem:[#allocation2 + $0x4] sm:$0x3] %vm506, %v504
      %508 = vrot.lane.b32.xlu0 %v423, 53
      %v509 = vpop.permute.xlu0 %508
      %v510 = vrot.slane %v509, 2
      %vm511 = vcmask 433152
      %v512 = vsel %vm511, %v509, %v510
      %vm514 = vcmask 558488
      %515 = vst.msk [vmem:[#allocation2 + $0x4] sm:$0x3] %vm514, %v512
      %v516 = vld [vmem:[%s3] sm:$0x3]
      %v517 = vld [vmem:[#allocation2] sm:$0x3f]
      %v518 = vld [vmem:[%s4] sm:$0x3]
      %v519 = vld [vmem:[#allocation3] sm:$0x3f]
      %521 = vst [vmem:[#allocation1] ss:$4 sm:$0xff] %v519
      %v522 = vld.sshfl [vmem:[#allocation1] sm:$0xff pattern:$0x73625140]
      %v523 = vld.sshfl [vmem:[#allocation1 + $0x8] sm:$0xff pattern:$0x73625140]
      %v524 = vld.sshfl [vmem:[#allocation1 + $0x10] sm:$0xff pattern:$0x73625140]
      %vm525 = vcmask 31744
      %v527 = vsel %vm525, %v518, 0
      %v529 = vsel %vm409, %v522, 0
      %v531 = vsel %vm409, %v523, 0
      %v533 = vsel %vm409, %v524, 0
      %535 = vmatpush.bf16.msra.mxu0 0
      %536 = vmatpush.bf16.msra.mxu0 0
      %537 = vmatpush.bf16.msra.mxu0 0
      %538 = vmatpush.bf16.msra.mxu0 0
      %539 = vmatpush.bf16.msra.mxu0 0
      %540 = vmatpush.bf16.msra.mxu0 0
      %541 = vmatpush.bf16.msra.mxu0 0
      %542 = vmatpush.bf16.msra.mxu0 %v529
      %543 = vmatmul.bf16.gmra.mxu0 %v527
      %v544 = vpop.f32.mrf.mxu0
      %v545 = vadd.f32 0.0, %v544
      %v546 = vpop.f32.mrf.mxu0
      %547 = vdwg.mxu0
      %548 = vmatpush.bf16.msra.mxu0 0
      %549 = vmatpush.bf16.msra.mxu0 0
      %550 = vmatpush.bf16.msra.mxu0 0
      %551 = vmatpush.bf16.msra.mxu0 0
      %552 = vmatpush.bf16.msra.mxu0 0
      %553 = vmatpush.bf16.msra.mxu0 0
      %554 = vmatpush.bf16.msra.mxu0 0
      %555 = vmatpush.bf16.msra.mxu0 %v531
      %556 = vmatmul.bf16.gmra.mxu0 %v527
      %v557 = vpop.f32.mrf.mxu0
      %v558 = vadd.f32 0.0, %v557
      %v559 = vpop.f32.mrf.mxu0
      %560 = vdwg.mxu0
      %561 = vmatpush.bf16.msra.mxu0 0
      %562 = vmatpush.bf16.msra.mxu0 0
      %563 = vmatpush.bf16.msra.mxu0 0
      %564 = vmatpush.bf16.msra.mxu0 0
      %565 = vmatpush.bf16.msra.mxu0 0
      %566 = vmatpush.bf16.msra.mxu0 0
      %567 = vmatpush.bf16.msra.mxu0 0
      %568 = vmatpush.bf16.msra.mxu0 %v533
      %569 = vmatmul.bf16.gmra.mxu0 %v527
      %v570 = vpop.f32.mrf.mxu0
      %v571 = vadd.f32 0.0, %v570
      %v572 = vpop.f32.mrf.mxu0
      %573 = vdwg.mxu0
      %575 = vst [vmem:[#allocation1] ss:$4 sm:$0xff] %v517
      %v576 = vld.sshfl [vmem:[#allocation1] sm:$0xff pattern:$0x73625140]
      %v577 = vld.sshfl [vmem:[#allocation1 + $0x8] sm:$0xff pattern:$0x73625140]
      %v578 = vld.sshfl [vmem:[#allocation1 + $0x10] sm:$0xff pattern:$0x73625140]
      %v580 = vsel %vm525, %v516, 0
      %v582 = vsel %vm409, %v576, 0
      %v584 = vsel %vm409, %v577, 0
      %v586 = vsel %vm409, %v578, 0
      %588 = vmatpush.bf16.msra.mxu0 0
      %589 = vmatpush.bf16.msra.mxu0 0
      %590 = vmatpush.bf16.msra.mxu0 0
      %591 = vmatpush.bf16.msra.mxu0 0
      %592 = vmatpush.bf16.msra.mxu0 0
      %593 = vmatpush.bf16.msra.mxu0 0
      %594 = vmatpush.bf16.msra.mxu0 0
      %595 = vmatpush.bf16.msra.mxu0 %v582
      %596 = vmatmul.bf16.gmra.mxu0 %v580
      %v597 = vpop.f32.mrf.mxu0
      %v598 = vadd.f32 %v545, %v597
      %v599 = vpop.f32.mrf.mxu0
      %600 = vdwg.mxu0
      %601 = vmatpush.bf16.msra.mxu0 0
      %602 = vmatpush.bf16.msra.mxu0 0
      %603 = vmatpush.bf16.msra.mxu0 0
      %604 = vmatpush.bf16.msra.mxu0 0
      %605 = vmatpush.bf16.msra.mxu0 0
      %606 = vmatpush.bf16.msra.mxu0 0
      %607 = vmatpush.bf16.msra.mxu0 0
      %608 = vmatpush.bf16.msra.mxu0 %v584
      %609 = vmatmul.bf16.gmra.mxu0 %v580
      %v610 = vpop.f32.mrf.mxu0
      %v611 = vadd.f32 %v558, %v610
      %v612 = vpop.f32.mrf.mxu0
      %613 = vdwg.mxu0
      %614 = vmatpush.bf16.msra.mxu0 0
      %615 = vmatpush.bf16.msra.mxu0 0
      %616 = vmatpush.bf16.msra.mxu0 0
      %617 = vmatpush.bf16.msra.mxu0 0
      %618 = vmatpush.bf16.msra.mxu0 0
      %619 = vmatpush.bf16.msra.mxu0 0
      %620 = vmatpush.bf16.msra.mxu0 0
      %621 = vmatpush.bf16.msra.mxu0 %v586
      %622 = vmatmul.bf16.gmra.mxu0 %v580
      %v623 = vpop.f32.mrf.mxu0
      %v624 = vadd.f32 %v571, %v623
      %v625 = vpop.f32.mrf.mxu0
      %626 = vdwg.mxu0
      %s627 = scalar_lea.vmem %s3, 2
      %v628 = vld [vmem:[%s627] sm:$0x3]
      %v629 = vld [vmem:[#allocation2] sm:$0x3f]
      %631 = vst [vmem:[#allocation1] ss:$4 sm:$0xff] %v629
      %v632 = vld.sshfl [vmem:[#allocation1] sm:$0xff pattern:$0x73625140]
      %v634 = vld.sshfl [vmem:[#allocation1 + $0x8] sm:$0xff pattern:$0x73625140]
      %v636 = vld.sshfl [vmem:[#allocation1 + $0x10] sm:$0xff pattern:$0x73625140]
      %638 = vrot.lane.b32.xlu0 %v632, 127
      %v639 = vpop.permute.xlu0 %638
      %640 = vrot.lane.b32.xlu0 %v634, 127
      %v641 = vpop.permute.xlu0 %640
      %642 = vrot.lane.b32.xlu0 %v636, 127
      %v643 = vpop.permute.xlu0 %642
      %vm644 = vcmask 1039360
      %v645 = vsel %vm644, %v639, %v641
      %v646 = vsel %vm644, %v641, %v643
      %v648 = vsel %vm525, %v628, 0
      %v651 = vsel %vm409, %v645, 0
      %v654 = vsel %vm409, %v646, 0
      %v657 = vsel %vm409, %v643, 0
      %659 = vmatpush.bf16.msra.mxu0 0
      %660 = vmatpush.bf16.msra.mxu0 0
      %661 = vmatpush.bf16.msra.mxu0 0
      %662 = vmatpush.bf16.msra.mxu0 0
      %663 = vmatpush.bf16.msra.mxu0 0
      %664 = vmatpush.bf16.msra.mxu0 0
      %665 = vmatpush.bf16.msra.mxu0 0
      %666 = vmatpush.bf16.msra.mxu0 %v651
      %667 = vmatmul.bf16.gmra.mxu0 %v648
      %v668 = vpop.f32.mrf.mxu0
      %v669 = vadd.f32 0.0, %v668
      %v670 = vpop.f32.mrf.mxu0
      %671 = vdwg.mxu0
      %672 = vmatpush.bf16.msra.mxu0 0
      %673 = vmatpush.bf16.msra.mxu0 0
      %674 = vmatpush.bf16.msra.mxu0 0
      %675 = vmatpush.bf16.msra.mxu0 0
      %676 = vmatpush.bf16.msra.mxu0 0
      %677 = vmatpush.bf16.msra.mxu0 0
      %678 = vmatpush.bf16.msra.mxu0 0
      %679 = vmatpush.bf16.msra.mxu0 %v654
      %680 = vmatmul.bf16.gmra.mxu0 %v648
      %v681 = vpop.f32.mrf.mxu0
      %v682 = vadd.f32 0.0, %v681
      %v683 = vpop.f32.mrf.mxu0
      %684 = vdwg.mxu0
      %685 = vmatpush.bf16.msra.mxu0 0
      %686 = vmatpush.bf16.msra.mxu0 0
      %687 = vmatpush.bf16.msra.mxu0 0
      %688 = vmatpush.bf16.msra.mxu0 0
      %689 = vmatpush.bf16.msra.mxu0 0
      %690 = vmatpush.bf16.msra.mxu0 0
      %691 = vmatpush.bf16.msra.mxu0 0
      %692 = vmatpush.bf16.msra.mxu0 %v657
      %693 = vmatmul.bf16.gmra.mxu0 %v648
      %v694 = vpop.f32.mrf.mxu0
      %v695 = vadd.f32 0.0, %v694
      %v696 = vpop.f32.mrf.mxu0
      %697 = vdwg.mxu0
      %v698 = vadd.f32 %v598, %v669
      %v699 = vadd.f32 %v611, %v682
      %v700 = vadd.f32 %v624, %v695
      %s701 = scalar_lea.vmem %s4, 2
      %v702 = vld [vmem:[%s701] sm:$0x3]
      %v703 = vld [vmem:[#allocation3] sm:$0x3f]
      %705 = vst [vmem:[#allocation1] ss:$4 sm:$0xff] %v703
      %v706 = vld.sshfl [vmem:[#allocation1] sm:$0xff pattern:$0x73625140]
      %v708 = vld.sshfl [vmem:[#allocation1 + $0x8] sm:$0xff pattern:$0x73625140]
      %v710 = vld.sshfl [vmem:[#allocation1 + $0x10] sm:$0xff pattern:$0x73625140]
      %712 = vrot.lane.b32.xlu0 %v706, 127
      %v713 = vpop.permute.xlu0 %712
      %714 = vrot.lane.b32.xlu0 %v708, 127
      %v715 = vpop.permute.xlu0 %714
      %716 = vrot.lane.b32.xlu0 %v710, 127
      %v717 = vpop.permute.xlu0 %716
      %v718 = vsel %vm644, %v713, %v715
      %v719 = vsel %vm644, %v715, %v717
      %v721 = vsel %vm525, %v702, 0
      %v724 = vsel %vm409, %v718, 0
      %v727 = vsel %vm409, %v719, 0
      %v730 = vsel %vm409, %v717, 0
      %732 = vmatpush.bf16.msra.mxu0 0
      %733 = vmatpush.bf16.msra.mxu0 0
      %734 = vmatpush.bf16.msra.mxu0 0
      %735 = vmatpush.bf16.msra.mxu0 0
      %736 = vmatpush.bf16.msra.mxu0 0
      %737 = vmatpush.bf16.msra.mxu0 0
      %738 = vmatpush.bf16.msra.mxu0 0
      %739 = vmatpush.bf16.msra.mxu0 %v724
      %740 = vmatmul.bf16.gmra.mxu0 %v721
      %v741 = vpop.f32.mrf.mxu0
      %v742 = vadd.f32 0.0, %v741
      %v743 = vpop.f32.mrf.mxu0
      %744 = vdwg.mxu0
      %745 = vmatpush.bf16.msra.mxu0 0
      %746 = vmatpush.bf16.msra.mxu0 0
      %747 = vmatpush.bf16.msra.mxu0 0
      %748 = vmatpush.bf16.msra.mxu0 0
      %749 = vmatpush.bf16.msra.mxu0 0
      %750 = vmatpush.bf16.msra.mxu0 0
      %751 = vmatpush.bf16.msra.mxu0 0
      %752 = vmatpush.bf16.msra.mxu0 %v727
      %753 = vmatmul.bf16.gmra.mxu0 %v721
      %v754 = vpop.f32.mrf.mxu0
      %v755 = vadd.f32 0.0, %v754
      %v756 = vpop.f32.mrf.mxu0
      %757 = vdwg.mxu0
      %758 = vmatpush.bf16.msra.mxu0 0
      %759 = vmatpush.bf16.msra.mxu0 0
      %760 = vmatpush.bf16.msra.mxu0 0
      %761 = vmatpush.bf16.msra.mxu0 0
      %762 = vmatpush.bf16.msra.mxu0 0
      %763 = vmatpush.bf16.msra.mxu0 0
      %764 = vmatpush.bf16.msra.mxu0 0
      %765 = vmatpush.bf16.msra.mxu0 %v730
      %766 = vmatmul.bf16.gmra.mxu0 %v721
      %v767 = vpop.f32.mrf.mxu0
      %v768 = vadd.f32 0.0, %v767
      %v769 = vpop.f32.mrf.mxu0
      %770 = vdwg.mxu0
      %v771 = vadd.f32 %v698, %v742
      %v772 = vadd.f32 %v699, %v755
      %v773 = vadd.f32 %v700, %v768
      %s774 = scalar_lea.vmem %s3, 4
      %v775 = vld [vmem:[%s774] sm:$0x3]
      %v776 = vld [vmem:[#allocation2] sm:$0x3f]
      %778 = vst [vmem:[#allocation1] ss:$4 sm:$0xff] %v776
      %v779 = vld.sshfl [vmem:[#allocation1] sm:$0xff pattern:$0x73625140]
      %v781 = vld.sshfl [vmem:[#allocation1 + $0x8] sm:$0xff pattern:$0x73625140]
      %v783 = vld.sshfl [vmem:[#allocation1 + $0x10] sm:$0xff pattern:$0x73625140]
      %785 = vrot.lane.b32.xlu0 %v779, 126
      %v786 = vpop.permute.xlu0 %785
      %787 = vrot.lane.b32.xlu0 %v781, 126
      %v788 = vpop.permute.xlu0 %787
      %789 = vrot.lane.b32.xlu0 %v783, 126
      %v790 = vpop.permute.xlu0 %789
      %vm791 = vcmask 1031168
      %v792 = vsel %vm791, %v786, %v788
      %v793 = vsel %vm791, %v788, %v790
      %v795 = vsel %vm525, %v775, 0
      %v798 = vsel %vm409, %v792, 0
      %v801 = vsel %vm409, %v793, 0
      %v804 = vsel %vm409, %v790, 0
      %806 = vmatpush.bf16.msra.mxu0 0
      %807 = vmatpush.bf16.msra.mxu0 0
      %808 = vmatpush.bf16.msra.mxu0 0
      %809 = vmatpush.bf16.msra.mxu0 0
      %810 = vmatpush.bf16.msra.mxu0 0
      %811 = vmatpush.bf16.msra.mxu0 0
      %812 = vmatpush.bf16.msra.mxu0 0
      %813 = vmatpush.bf16.msra.mxu0 %v798
      %814 = vmatmul.bf16.gmra.mxu0 %v795
      %v815 = vpop.f32.mrf.mxu0
      %v816 = vadd.f32 0.0, %v815
      %v817 = vpop.f32.mrf.mxu0
      %818 = vdwg.mxu0
      %819 = vmatpush.bf16.msra.mxu0 0
      %820 = vmatpush.bf16.msra.mxu0 0
      %821 = vmatpush.bf16.msra.mxu0 0
      %822 = vmatpush.bf16.msra.mxu0 0
      %823 = vmatpush.bf16.msra.mxu0 0
      %824 = vmatpush.bf16.msra.mxu0 0
      %825 = vmatpush.bf16.msra.mxu0 0
      %826 = vmatpush.bf16.msra.mxu0 %v801
      %827 = vmatmul.bf16.gmra.mxu0 %v795
      %v828 = vpop.f32.mrf.mxu0
      %v829 = vadd.f32 0.0, %v828
      %v830 = vpop.f32.mrf.mxu0
      %831 = vdwg.mxu0
      %832 = vmatpush.bf16.msra.mxu0 0
      %833 = vmatpush.bf16.msra.mxu0 0
      %834 = vmatpush.bf16.msra.mxu0 0
      %835 = vmatpush.bf16.msra.mxu0 0
      %836 = vmatpush.bf16.msra.mxu0 0
      %837 = vmatpush.bf16.msra.mxu0 0
      %838 = vmatpush.bf16.msra.mxu0 0
      %839 = vmatpush.bf16.msra.mxu0 %v804
      %840 = vmatmul.bf16.gmra.mxu0 %v795
      %v841 = vpop.f32.mrf.mxu0
      %v842 = vadd.f32 0.0, %v841
      %v843 = vpop.f32.mrf.mxu0
      %844 = vdwg.mxu0
      %v845 = vadd.f32 %v771, %v816
      %v846 = vadd.f32 %v772, %v829
      %v847 = vadd.f32 %v773, %v842
      %s848 = scalar_lea.vmem %s4, 4
      %v849 = vld [vmem:[%s848] sm:$0x3]
      %v850 = vld [vmem:[#allocation3] sm:$0x3f]
      %852 = vst [vmem:[#allocation1] ss:$4 sm:$0xff] %v850
      %v853 = vld.sshfl [vmem:[#allocation1] sm:$0xff pattern:$0x73625140]
      %v855 = vld.sshfl [vmem:[#allocation1 + $0x8] sm:$0xff pattern:$0x73625140]
      %v857 = vld.sshfl [vmem:[#allocation1 + $0x10] sm:$0xff pattern:$0x73625140]
      %859 = vrot.lane.b32.xlu0 %v853, 126
      %v860 = vpop.permute.xlu0 %859
      %861 = vrot.lane.b32.xlu0 %v855, 126
      %v862 = vpop.permute.xlu0 %861
      %863 = vrot.lane.b32.xlu0 %v857, 126
      %v864 = vpop.permute.xlu0 %863
      %v865 = vsel %vm791, %v860, %v862
      %v866 = vsel %vm791, %v862, %v864
      %v868 = vsel %vm525, %v849, 0
      %v871 = vsel %vm409, %v865, 0
      %v874 = vsel %vm409, %v866, 0
      %v877 = vsel %vm409, %v864, 0
      %879 = vmatpush.bf16.msra.mxu0 0
      %880 = vmatpush.bf16.msra.mxu0 0
      %881 = vmatpush.bf16.msra.mxu0 0
      %882 = vmatpush.bf16.msra.mxu0 0
      %883 = vmatpush.bf16.msra.mxu0 0
      %884 = vmatpush.bf16.msra.mxu0 0
      %885 = vmatpush.bf16.msra.mxu0 0
      %886 = vmatpush.bf16.msra.mxu0 %v871
      %887 = vmatmul.bf16.gmra.mxu0 %v868
      %v888 = vpop.f32.mrf.mxu0
      %v889 = vadd.f32 0.0, %v888
      %v890 = vpop.f32.mrf.mxu0
      %891 = vdwg.mxu0
      %892 = vmatpush.bf16.msra.mxu0 0
      %893 = vmatpush.bf16.msra.mxu0 0
      %894 = vmatpush.bf16.msra.mxu0 0
      %895 = vmatpush.bf16.msra.mxu0 0
      %896 = vmatpush.bf16.msra.mxu0 0
      %897 = vmatpush.bf16.msra.mxu0 0
      %898 = vmatpush.bf16.msra.mxu0 0
      %899 = vmatpush.bf16.msra.mxu0 %v874
      %900 = vmatmul.bf16.gmra.mxu0 %v868
      %v901 = vpop.f32.mrf.mxu0
      %v902 = vadd.f32 0.0, %v901
      %v903 = vpop.f32.mrf.mxu0
      %904 = vdwg.mxu0
      %905 = vmatpush.bf16.msra.mxu0 0
      %906 = vmatpush.bf16.msra.mxu0 0
      %907 = vmatpush.bf16.msra.mxu0 0
      %908 = vmatpush.bf16.msra.mxu0 0
      %909 = vmatpush.bf16.msra.mxu0 0
      %910 = vmatpush.bf16.msra.mxu0 0
      %911 = vmatpush.bf16.msra.mxu0 0
      %912 = vmatpush.bf16.msra.mxu0 %v877
      %913 = vmatmul.bf16.gmra.mxu0 %v868
      %v914 = vpop.f32.mrf.mxu0
      %v915 = vadd.f32 0.0, %v914
      %v916 = vpop.f32.mrf.mxu0
      %917 = vdwg.mxu0
      %v918 = vadd.f32 %v845, %v889
      %v919 = vadd.f32 %v846, %v902
      %v920 = vadd.f32 %v847, %v915
      %s921 = scalar_lea.vmem %s3, 6
      %v922 = vld [vmem:[%s921] sm:$0x3]
      %v923 = vld [vmem:[#allocation2] sm:$0x3f]
      %925 = vst [vmem:[#allocation1] ss:$4 sm:$0xff] %v923
      %v926 = vld.sshfl [vmem:[#allocation1] sm:$0xff pattern:$0x73625140]
      %v928 = vld.sshfl [vmem:[#allocation1 + $0x8] sm:$0xff pattern:$0x73625140]
      %v930 = vld.sshfl [vmem:[#allocation1 + $0x10] sm:$0xff pattern:$0x73625140]
      %932 = vrot.lane.b32.xlu0 %v926, 110
      %v933 = vpop.permute.xlu0 %932
      %934 = vrot.lane.b32.xlu0 %v928, 110
      %v935 = vpop.permute.xlu0 %934
      %936 = vrot.lane.b32.xlu0 %v930, 110
      %v937 = vpop.permute.xlu0 %936
      %vm938 = vcmask 900096
      %v939 = vsel %vm938, %v933, %v935
      %v940 = vsel %vm938, %v935, %v937
      %v942 = vsel %vm525, %v922, 0
      %v945 = vsel %vm409, %v939, 0
      %v948 = vsel %vm409, %v940, 0
      %v951 = vsel %vm409, %v937, 0
      %953 = vmatpush.bf16.msra.mxu0 0
      %954 = vmatpush.bf16.msra.mxu0 0
      %955 = vmatpush.bf16.msra.mxu0 0
      %956 = vmatpush.bf16.msra.mxu0 0
      %957 = vmatpush.bf16.msra.mxu0 0
      %958 = vmatpush.bf16.msra.mxu0 0
      %959 = vmatpush.bf16.msra.mxu0 0
      %960 = vmatpush.bf16.msra.mxu0 %v945
      %961 = vmatmul.bf16.gmra.mxu0 %v942
      %v962 = vpop.f32.mrf.mxu0
      %v963 = vadd.f32 0.0, %v962
      %v964 = vpop.f32.mrf.mxu0
      %965 = vdwg.mxu0
      %966 = vmatpush.bf16.msra.mxu0 0
      %967 = vmatpush.bf16.msra.mxu0 0
      %968 = vmatpush.bf16.msra.mxu0 0
      %969 = vmatpush.bf16.msra.mxu0 0
      %970 = vmatpush.bf16.msra.mxu0 0
      %971 = vmatpush.bf16.msra.mxu0 0
      %972 = vmatpush.bf16.msra.mxu0 0
      %973 = vmatpush.bf16.msra.mxu0 %v948
      %974 = vmatmul.bf16.gmra.mxu0 %v942
      %v975 = vpop.f32.mrf.mxu0
      %v976 = vadd.f32 0.0, %v975
      %v977 = vpop.f32.mrf.mxu0
      %978 = vdwg.mxu0
      %979 = vmatpush.bf16.msra.mxu0 0
      %980 = vmatpush.bf16.msra.mxu0 0
      %981 = vmatpush.bf16.msra.mxu0 0
      %982 = vmatpush.bf16.msra.mxu0 0
      %983 = vmatpush.bf16.msra.mxu0 0
      %984 = vmatpush.bf16.msra.mxu0 0
      %985 = vmatpush.bf16.msra.mxu0 0
      %986 = vmatpush.bf16.msra.mxu0 %v951
      %987 = vmatmul.bf16.gmra.mxu0 %v942
      %v988 = vpop.f32.mrf.mxu0
      %v989 = vadd.f32 0.0, %v988
      %v990 = vpop.f32.mrf.mxu0
      %991 = vdwg.mxu0
      %v992 = vadd.f32 %v918, %v963
      %v993 = vadd.f32 %v919, %v976
      %v994 = vadd.f32 %v920, %v989
      %s995 = scalar_lea.vmem %s4, 6
      %v996 = vld [vmem:[%s995] sm:$0x3]
      %v997 = vld [vmem:[#allocation3] sm:$0x3f]
      %999 = vst [vmem:[#allocation1] ss:$4 sm:$0xff] %v997
      %v1000 = vld.sshfl [vmem:[#allocation1] sm:$0xff pattern:$0x73625140]
      %v1002 = vld.sshfl [vmem:[#allocation1 + $0x8] sm:$0xff pattern:$0x73625140]
      %v1004 = vld.sshfl [vmem:[#allocation1 + $0x10] sm:$0xff pattern:$0x73625140]
      %1006 = vrot.lane.b32.xlu0 %v1000, 110
      %v1007 = vpop.permute.xlu0 %1006
      %1008 = vrot.lane.b32.xlu0 %v1002, 110
      %v1009 = vpop.permute.xlu0 %1008
      %1010 = vrot.lane.b32.xlu0 %v1004, 110
      %v1011 = vpop.permute.xlu0 %1010
      %v1012 = vsel %vm938, %v1007, %v1009
      %v1013 = vsel %vm938, %v1009, %v1011
      %v1015 = vsel %vm525, %v996, 0
      %v1018 = vsel %vm409, %v1012, 0
      %v1021 = vsel %vm409, %v1013, 0
      %v1024 = vsel %vm409, %v1011, 0
      %1026 = vmatpush.bf16.msra.mxu0 0
      %1027 = vmatpush.bf16.msra.mxu0 0
      %1028 = vmatpush.bf16.msra.mxu0 0
      %1029 = vmatpush.bf16.msra.mxu0 0
      %1030 = vmatpush.bf16.msra.mxu0 0
      %1031 = vmatpush.bf16.msra.mxu0 0
      %1032 = vmatpush.bf16.msra.mxu0 0
      %1033 = vmatpush.bf16.msra.mxu0 %v1018
      %1034 = vmatmul.bf16.gmra.mxu0 %v1015
      %v1035 = vpop.f32.mrf.mxu0
      %v1036 = vadd.f32 0.0, %v1035
      %v1037 = vpop.f32.mrf.mxu0
      %1038 = vdwg.mxu0
      %1039 = vmatpush.bf16.msra.mxu0 0
      %1040 = vmatpush.bf16.msra.mxu0 0
      %1041 = vmatpush.bf16.msra.mxu0 0
      %1042 = vmatpush.bf16.msra.mxu0 0
      %1043 = vmatpush.bf16.msra.mxu0 0
      %1044 = vmatpush.bf16.msra.mxu0 0
      %1045 = vmatpush.bf16.msra.mxu0 0
      %1046 = vmatpush.bf16.msra.mxu0 %v1021
      %1047 = vmatmul.bf16.gmra.mxu0 %v1015
      %v1048 = vpop.f32.mrf.mxu0
      %v1049 = vadd.f32 0.0, %v1048
      %v1050 = vpop.f32.mrf.mxu0
      %1051 = vdwg.mxu0
      %1052 = vmatpush.bf16.msra.mxu0 0
      %1053 = vmatpush.bf16.msra.mxu0 0
      %1054 = vmatpush.bf16.msra.mxu0 0
      %1055 = vmatpush.bf16.msra.mxu0 0
      %1056 = vmatpush.bf16.msra.mxu0 0
      %1057 = vmatpush.bf16.msra.mxu0 0
      %1058 = vmatpush.bf16.msra.mxu0 0
      %1059 = vmatpush.bf16.msra.mxu0 %v1024
      %1060 = vmatmul.bf16.gmra.mxu0 %v1015
      %v1061 = vpop.f32.mrf.mxu0
      %v1062 = vadd.f32 0.0, %v1061
      %v1063 = vpop.f32.mrf.mxu0
      %1064 = vdwg.mxu0
      %v1065 = vadd.f32 %v992, %v1036
      %v1066 = vadd.f32 %v993, %v1049
      %v1067 = vadd.f32 %v994, %v1062
      %s1068 = scalar_lea.vmem %s3, 8
      %v1069 = vld [vmem:[%s1068] sm:$0x3]
      %v1070 = vld [vmem:[#allocation2] sm:$0x3f]
      %1072 = vst [vmem:[#allocation1] ss:$4 sm:$0xff] %v1070
      %v1073 = vld.sshfl [vmem:[#allocation1] sm:$0xff pattern:$0x73625140]
      %v1075 = vld.sshfl [vmem:[#allocation1 + $0x8] sm:$0xff pattern:$0x73625140]
      %v1077 = vld.sshfl [vmem:[#allocation1 + $0x10] sm:$0xff pattern:$0x73625140]
      %1079 = vrot.lane.b32.xlu0 %v1073, 109
      %v1080 = vpop.permute.xlu0 %1079
      %1081 = vrot.lane.b32.xlu0 %v1075, 109
      %v1082 = vpop.permute.xlu0 %1081
      %1083 = vrot.lane.b32.xlu0 %v1077, 109
      %v1084 = vpop.permute.xlu0 %1083
      %vm1085 = vcmask 891904
      %v1086 = vsel %vm1085, %v1080, %v1082
      %v1087 = vsel %vm1085, %v1082, %v1084
      %v1089 = vsel %vm525, %v1069, 0
      %v1092 = vsel %vm409, %v1086, 0
      %v1095 = vsel %vm409, %v1087, 0
      %v1098 = vsel %vm409, %v1084, 0
      %1100 = vmatpush.bf16.msra.mxu0 0
      %1101 = vmatpush.bf16.msra.mxu0 0
      %1102 = vmatpush.bf16.msra.mxu0 0
      %1103 = vmatpush.bf16.msra.mxu0 0
      %1104 = vmatpush.bf16.msra.mxu0 0
      %1105 = vmatpush.bf16.msra.mxu0 0
      %1106 = vmatpush.bf16.msra.mxu0 0
      %1107 = vmatpush.bf16.msra.mxu0 %v1092
      %1108 = vmatmul.bf16.gmra.mxu0 %v1089
      %v1109 = vpop.f32.mrf.mxu0
      %v1110 = vadd.f32 0.0, %v1109
      %v1111 = vpop.f32.mrf.mxu0
      %1112 = vdwg.mxu0
      %1113 = vmatpush.bf16.msra.mxu0 0
      %1114 = vmatpush.bf16.msra.mxu0 0
      %1115 = vmatpush.bf16.msra.mxu0 0
      %1116 = vmatpush.bf16.msra.mxu0 0
      %1117 = vmatpush.bf16.msra.mxu0 0
      %1118 = vmatpush.bf16.msra.mxu0 0
      %1119 = vmatpush.bf16.msra.mxu0 0
      %1120 = vmatpush.bf16.msra.mxu0 %v1095
      %1121 = vmatmul.bf16.gmra.mxu0 %v1089
      %v1122 = vpop.f32.mrf.mxu0
      %v1123 = vadd.f32 0.0, %v1122
      %v1124 = vpop.f32.mrf.mxu0
      %1125 = vdwg.mxu0
      %1126 = vmatpush.bf16.msra.mxu0 0
      %1127 = vmatpush.bf16.msra.mxu0 0
      %1128 = vmatpush.bf16.msra.mxu0 0
      %1129 = vmatpush.bf16.msra.mxu0 0
      %1130 = vmatpush.bf16.msra.mxu0 0
      %1131 = vmatpush.bf16.msra.mxu0 0
      %1132 = vmatpush.bf16.msra.mxu0 0
      %1133 = vmatpush.bf16.msra.mxu0 %v1098
      %1134 = vmatmul.bf16.gmra.mxu0 %v1089
      %v1135 = vpop.f32.mrf.mxu0
      %v1136 = vadd.f32 0.0, %v1135
      %v1137 = vpop.f32.mrf.mxu0
      %1138 = vdwg.mxu0
      %v1139 = vadd.f32 %v1065, %v1110
      %v1140 = vadd.f32 %v1066, %v1123
      %v1141 = vadd.f32 %v1067, %v1136
      %s1142 = scalar_lea.vmem %s4, 8
      %v1143 = vld [vmem:[%s1142] sm:$0x3]
      %v1144 = vld [vmem:[#allocation3] sm:$0x3f]
      %1146 = vst [vmem:[#allocation1] ss:$4 sm:$0xff] %v1144
      %v1147 = vld.sshfl [vmem:[#allocation1] sm:$0xff pattern:$0x73625140]
      %v1149 = vld.sshfl [vmem:[#allocation1 + $0x8] sm:$0xff pattern:$0x73625140]
      %v1151 = vld.sshfl [vmem:[#allocation1 + $0x10] sm:$0xff pattern:$0x73625140]
      %1153 = vrot.lane.b32.xlu0 %v1147, 109
      %v1154 = vpop.permute.xlu0 %1153
      %1155 = vrot.lane.b32.xlu0 %v1149, 109
      %v1156 = vpop.permute.xlu0 %1155
      %1157 = vrot.lane.b32.xlu0 %v1151, 109
      %v1158 = vpop.permute.xlu0 %1157
      %v1159 = vsel %vm1085, %v1154, %v1156
      %v1160 = vsel %vm1085, %v1156, %v1158
      %v1162 = vsel %vm525, %v1143, 0
      %v1165 = vsel %vm409, %v1159, 0
      %v1168 = vsel %vm409, %v1160, 0
      %v1171 = vsel %vm409, %v1158, 0
      %1173 = vmatpush.bf16.msra.mxu0 0
      %1174 = vmatpush.bf16.msra.mxu0 0
      %1175 = vmatpush.bf16.msra.mxu0 0
      %1176 = vmatpush.bf16.msra.mxu0 0
      %1177 = vmatpush.bf16.msra.mxu0 0
      %1178 = vmatpush.bf16.msra.mxu0 0
      %1179 = vmatpush.bf16.msra.mxu0 0
      %1180 = vmatpush.bf16.msra.mxu0 %v1165
      %1181 = vmatmul.bf16.gmra.mxu0 %v1162
      %v1182 = vpop.f32.mrf.mxu0
      %v1183 = vadd.f32 0.0, %v1182
      %v1184 = vpop.f32.mrf.mxu0
      %1185 = vdwg.mxu0
      %1186 = vmatpush.bf16.msra.mxu0 0
      %1187 = vmatpush.bf16.msra.mxu0 0
      %1188 = vmatpush.bf16.msra.mxu0 0
      %1189 = vmatpush.bf16.msra.mxu0 0
      %1190 = vmatpush.bf16.msra.mxu0 0
      %1191 = vmatpush.bf16.msra.mxu0 0
      %1192 = vmatpush.bf16.msra.mxu0 0
      %1193 = vmatpush.bf16.msra.mxu0 %v1168
      %1194 = vmatmul.bf16.gmra.mxu0 %v1162
      %v1195 = vpop.f32.mrf.mxu0
      %v1196 = vadd.f32 0.0, %v1195
      %v1197 = vpop.f32.mrf.mxu0
      %1198 = vdwg.mxu0
      %1199 = vmatpush.bf16.msra.mxu0 0
      %1200 = vmatpush.bf16.msra.mxu0 0
      %1201 = vmatpush.bf16.msra.mxu0 0
      %1202 = vmatpush.bf16.msra.mxu0 0
      %1203 = vmatpush.bf16.msra.mxu0 0
      %1204 = vmatpush.bf16.msra.mxu0 0
      %1205 = vmatpush.bf16.msra.mxu0 0
      %1206 = vmatpush.bf16.msra.mxu0 %v1171
      %1207 = vmatmul.bf16.gmra.mxu0 %v1162
      %v1208 = vpop.f32.mrf.mxu0
      %v1209 = vadd.f32 0.0, %v1208
      %v1210 = vpop.f32.mrf.mxu0
      %1211 = vdwg.mxu0
      %v1212 = vadd.f32 %v1139, %v1183
      %v1213 = vadd.f32 %v1140, %v1196
      %v1214 = vadd.f32 %v1141, %v1209
      %s1215 = scalar_lea.vmem %s3, 10
      %v1216 = vld [vmem:[%s1215] sm:$0x3]
      %v1217 = vld [vmem:[#allocation2] sm:$0x3f]
      %1219 = vst [vmem:[#allocation1] ss:$4 sm:$0xff] %v1217
      %v1220 = vld.sshfl [vmem:[#allocation1] sm:$0xff pattern:$0x73625140]
      %v1222 = vld.sshfl [vmem:[#allocation1 + $0x8] sm:$0xff pattern:$0x73625140]
      %v1224 = vld.sshfl [vmem:[#allocation1 + $0x10] sm:$0xff pattern:$0x73625140]
      %1226 = vrot.lane.b32.xlu0 %v1220, 108
      %v1227 = vpop.permute.xlu0 %1226
      %1228 = vrot.lane.b32.xlu0 %v1222, 108
      %v1229 = vpop.permute.xlu0 %1228
      %1230 = vrot.lane.b32.xlu0 %v1224, 108
      %v1231 = vpop.permute.xlu0 %1230
      %vm1232 = vcmask 883712
      %v1233 = vsel %vm1232, %v1227, %v1229
      %v1234 = vsel %vm1232, %v1229, %v1231
      %v1236 = vsel %vm525, %v1216, 0
      %v1239 = vsel %vm409, %v1233, 0
      %v1242 = vsel %vm409, %v1234, 0
      %v1245 = vsel %vm409, %v1231, 0
      %1247 = vmatpush.bf16.msra.mxu0 0
      %1248 = vmatpush.bf16.msra.mxu0 0
      %1249 = vmatpush.bf16.msra.mxu0 0
      %1250 = vmatpush.bf16.msra.mxu0 0
      %1251 = vmatpush.bf16.msra.mxu0 0
      %1252 = vmatpush.bf16.msra.mxu0 0
      %1253 = vmatpush.bf16.msra.mxu0 0
      %1254 = vmatpush.bf16.msra.mxu0 %v1239
      %1255 = vmatmul.bf16.gmra.mxu0 %v1236
      %v1256 = vpop.f32.mrf.mxu0
      %v1257 = vadd.f32 0.0, %v1256
      %v1258 = vpop.f32.mrf.mxu0
      %1259 = vdwg.mxu0
      %1260 = vmatpush.bf16.msra.mxu0 0
      %1261 = vmatpush.bf16.msra.mxu0 0
      %1262 = vmatpush.bf16.msra.mxu0 0
      %1263 = vmatpush.bf16.msra.mxu0 0
      %1264 = vmatpush.bf16.msra.mxu0 0
      %1265 = vmatpush.bf16.msra.mxu0 0
      %1266 = vmatpush.bf16.msra.mxu0 0
      %1267 = vmatpush.bf16.msra.mxu0 %v1242
      %1268 = vmatmul.bf16.gmra.mxu0 %v1236
      %v1269 = vpop.f32.mrf.mxu0
      %v1270 = vadd.f32 0.0, %v1269
      %v1271 = vpop.f32.mrf.mxu0
      %1272 = vdwg.mxu0
      %1273 = vmatpush.bf16.msra.mxu0 0
      %1274 = vmatpush.bf16.msra.mxu0 0
      %1275 = vmatpush.bf16.msra.mxu0 0
      %1276 = vmatpush.bf16.msra.mxu0 0
      %1277 = vmatpush.bf16.msra.mxu0 0
      %1278 = vmatpush.bf16.msra.mxu0 0
      %1279 = vmatpush.bf16.msra.mxu0 0
      %1280 = vmatpush.bf16.msra.mxu0 %v1245
      %1281 = vmatmul.bf16.gmra.mxu0 %v1236
      %v1282 = vpop.f32.mrf.mxu0
      %v1283 = vadd.f32 0.0, %v1282
      %v1284 = vpop.f32.mrf.mxu0
      %1285 = vdwg.mxu0
      %v1286 = vadd.f32 %v1212, %v1257
      %v1287 = vadd.f32 %v1213, %v1270
      %v1288 = vadd.f32 %v1214, %v1283
      %s1289 = scalar_lea.vmem %s4, 10
      %v1290 = vld [vmem:[%s1289] sm:$0x3]
      %v1291 = vld [vmem:[#allocation3] sm:$0x3f]
      %1293 = vst [vmem:[#allocation1] ss:$4 sm:$0xff] %v1291
      %v1294 = vld.sshfl [vmem:[#allocation1] sm:$0xff pattern:$0x73625140]
      %v1296 = vld.sshfl [vmem:[#allocation1 + $0x8] sm:$0xff pattern:$0x73625140]
      %v1298 = vld.sshfl [vmem:[#allocation1 + $0x10] sm:$0xff pattern:$0x73625140]
      %1300 = vrot.lane.b32.xlu0 %v1294, 108
      %v1301 = vpop.permute.xlu0 %1300
      %1302 = vrot.lane.b32.xlu0 %v1296, 108
      %v1303 = vpop.permute.xlu0 %1302
      %1304 = vrot.lane.b32.xlu0 %v1298, 108
      %v1305 = vpop.permute.xlu0 %1304
      %v1306 = vsel %vm1232, %v1301, %v1303
      %v1307 = vsel %vm1232, %v1303, %v1305
      %v1309 = vsel %vm525, %v1290, 0
      %v1312 = vsel %vm409, %v1306, 0
      %v1315 = vsel %vm409, %v1307, 0
      %v1318 = vsel %vm409, %v1305, 0
      %1320 = vmatpush.bf16.msra.mxu0 0
      %1321 = vmatpush.bf16.msra.mxu0 0
      %1322 = vmatpush.bf16.msra.mxu0 0
      %1323 = vmatpush.bf16.msra.mxu0 0
      %1324 = vmatpush.bf16.msra.mxu0 0
      %1325 = vmatpush.bf16.msra.mxu0 0
      %1326 = vmatpush.bf16.msra.mxu0 0
      %1327 = vmatpush.bf16.msra.mxu0 %v1312
      %1328 = vmatmul.bf16.gmra.mxu0 %v1309
      %v1329 = vpop.f32.mrf.mxu0
      %v1330 = vadd.f32 0.0, %v1329
      %v1331 = vpop.f32.mrf.mxu0
      %1332 = vdwg.mxu0
      %1333 = vmatpush.bf16.msra.mxu0 0
      %1334 = vmatpush.bf16.msra.mxu0 0
      %1335 = vmatpush.bf16.msra.mxu0 0
      %1336 = vmatpush.bf16.msra.mxu0 0
      %1337 = vmatpush.bf16.msra.mxu0 0
      %1338 = vmatpush.bf16.msra.mxu0 0
      %1339 = vmatpush.bf16.msra.mxu0 0
      %1340 = vmatpush.bf16.msra.mxu0 %v1315
      %1341 = vmatmul.bf16.gmra.mxu0 %v1309
      %v1342 = vpop.f32.mrf.mxu0
      %v1343 = vadd.f32 0.0, %v1342
      %v1344 = vpop.f32.mrf.mxu0
      %1345 = vdwg.mxu0
      %1346 = vmatpush.bf16.msra.mxu0 0
      %1347 = vmatpush.bf16.msra.mxu0 0
      %1348 = vmatpush.bf16.msra.mxu0 0
      %1349 = vmatpush.bf16.msra.mxu0 0
      %1350 = vmatpush.bf16.msra.mxu0 0
      %1351 = vmatpush.bf16.msra.mxu0 0
      %1352 = vmatpush.bf16.msra.mxu0 0
      %1353 = vmatpush.bf16.msra.mxu0 %v1318
      %1354 = vmatmul.bf16.gmra.mxu0 %v1309
      %v1355 = vpop.f32.mrf.mxu0
      %v1356 = vadd.f32 0.0, %v1355
      %v1357 = vpop.f32.mrf.mxu0
      %1358 = vdwg.mxu0
      %v1359 = vadd.f32 %v1286, %v1330
      %v1360 = vadd.f32 %v1287, %v1343
      %v1361 = vadd.f32 %v1288, %v1356
      %s1362 = scalar_lea.vmem %s3, 12
      %v1363 = vld [vmem:[%s1362] sm:$0x3]
      %v1364 = vld [vmem:[#allocation2] sm:$0x3f]
      %1366 = vst [vmem:[#allocation1] ss:$4 sm:$0xff] %v1364
      %v1367 = vld.sshfl [vmem:[#allocation1] sm:$0xff pattern:$0x73625140]
      %v1369 = vld.sshfl [vmem:[#allocation1 + $0x8] sm:$0xff pattern:$0x73625140]
      %v1371 = vld.sshfl [vmem:[#allocation1 + $0x10] sm:$0xff pattern:$0x73625140]
      %1373 = vrot.lane.b32.xlu0 %v1367, 92
      %v1374 = vpop.permute.xlu0 %1373
      %1375 = vrot.lane.b32.xlu0 %v1369, 92
      %v1376 = vpop.permute.xlu0 %1375
      %1377 = vrot.lane.b32.xlu0 %v1371, 92
      %v1378 = vpop.permute.xlu0 %1377
      %vm1379 = vcmask 752640
      %v1380 = vsel %vm1379, %v1374, %v1376
      %v1381 = vsel %vm1379, %v1376, %v1378
      %v1383 = vsel %vm525, %v1363, 0
      %v1386 = vsel %vm409, %v1380, 0
      %v1389 = vsel %vm409, %v1381, 0
      %v1392 = vsel %vm409, %v1378, 0
      %1394 = vmatpush.bf16.msra.mxu0 0
      %1395 = vmatpush.bf16.msra.mxu0 0
      %1396 = vmatpush.bf16.msra.mxu0 0
      %1397 = vmatpush.bf16.msra.mxu0 0
      %1398 = vmatpush.bf16.msra.mxu0 0
      %1399 = vmatpush.bf16.msra.mxu0 0
      %1400 = vmatpush.bf16.msra.mxu0 0
      %1401 = vmatpush.bf16.msra.mxu0 %v1386
      %1402 = vmatmul.bf16.gmra.mxu0 %v1383
      %v1403 = vpop.f32.mrf.mxu0
      %v1404 = vadd.f32 0.0, %v1403
      %v1405 = vpop.f32.mrf.mxu0
      %1406 = vdwg.mxu0
      %1407 = vmatpush.bf16.msra.mxu0 0
      %1408 = vmatpush.bf16.msra.mxu0 0
      %1409 = vmatpush.bf16.msra.mxu0 0
      %1410 = vmatpush.bf16.msra.mxu0 0
      %1411 = vmatpush.bf16.msra.mxu0 0
      %1412 = vmatpush.bf16.msra.mxu0 0
      %1413 = vmatpush.bf16.msra.mxu0 0
      %1414 = vmatpush.bf16.msra.mxu0 %v1389
      %1415 = vmatmul.bf16.gmra.mxu0 %v1383
      %v1416 = vpop.f32.mrf.mxu0
      %v1417 = vadd.f32 0.0, %v1416
      %v1418 = vpop.f32.mrf.mxu0
      %1419 = vdwg.mxu0
      %1420 = vmatpush.bf16.msra.mxu0 0
      %1421 = vmatpush.bf16.msra.mxu0 0
      %1422 = vmatpush.bf16.msra.mxu0 0
      %1423 = vmatpush.bf16.msra.mxu0 0
      %1424 = vmatpush.bf16.msra.mxu0 0
      %1425 = vmatpush.bf16.msra.mxu0 0
      %1426 = vmatpush.bf16.msra.mxu0 0
      %1427 = vmatpush.bf16.msra.mxu0 %v1392
      %1428 = vmatmul.bf16.gmra.mxu0 %v1383
      %v1429 = vpop.f32.mrf.mxu0
      %v1430 = vadd.f32 0.0, %v1429
      %v1431 = vpop.f32.mrf.mxu0
      %1432 = vdwg.mxu0
      %v1433 = vadd.f32 %v1359, %v1404
      %v1434 = vadd.f32 %v1360, %v1417
      %v1435 = vadd.f32 %v1361, %v1430
      %s1436 = scalar_lea.vmem %s4, 12
      %v1437 = vld [vmem:[%s1436] sm:$0x3]
      %v1438 = vld [vmem:[#allocation3] sm:$0x3f]
      %1440 = vst [vmem:[#allocation1] ss:$4 sm:$0xff] %v1438
      %v1441 = vld.sshfl [vmem:[#allocation1] sm:$0xff pattern:$0x73625140]
      %v1443 = vld.sshfl [vmem:[#allocation1 + $0x8] sm:$0xff pattern:$0x73625140]
      %v1445 = vld.sshfl [vmem:[#allocation1 + $0x10] sm:$0xff pattern:$0x73625140]
      %1447 = vrot.lane.b32.xlu0 %v1441, 92
      %v1448 = vpop.permute.xlu0 %1447
      %1449 = vrot.lane.b32.xlu0 %v1443, 92
      %v1450 = vpop.permute.xlu0 %1449
      %1451 = vrot.lane.b32.xlu0 %v1445, 92
      %v1452 = vpop.permute.xlu0 %1451
      %v1453 = vsel %vm1379, %v1448, %v1450
      %v1454 = vsel %vm1379, %v1450, %v1452
      %v1456 = vsel %vm525, %v1437, 0
      %v1459 = vsel %vm409, %v1453, 0
      %v1462 = vsel %vm409, %v1454, 0
      %v1465 = vsel %vm409, %v1452, 0
      %1467 = vmatpush.bf16.msra.mxu0 0
      %1468 = vmatpush.bf16.msra.mxu0 0
      %1469 = vmatpush.bf16.msra.mxu0 0
      %1470 = vmatpush.bf16.msra.mxu0 0
      %1471 = vmatpush.bf16.msra.mxu0 0
      %1472 = vmatpush.bf16.msra.mxu0 0
      %1473 = vmatpush.bf16.msra.mxu0 0
      %1474 = vmatpush.bf16.msra.mxu0 %v1459
      %1475 = vmatmul.bf16.gmra.mxu0 %v1456
      %v1476 = vpop.f32.mrf.mxu0
      %v1477 = vadd.f32 0.0, %v1476
      %v1478 = vpop.f32.mrf.mxu0
      %1479 = vdwg.mxu0
      %1480 = vmatpush.bf16.msra.mxu0 0
      %1481 = vmatpush.bf16.msra.mxu0 0
      %1482 = vmatpush.bf16.msra.mxu0 0
      %1483 = vmatpush.bf16.msra.mxu0 0
      %1484 = vmatpush.bf16.msra.mxu0 0
      %1485 = vmatpush.bf16.msra.mxu0 0
      %1486 = vmatpush.bf16.msra.mxu0 0
      %1487 = vmatpush.bf16.msra.mxu0 %v1462
      %1488 = vmatmul.bf16.gmra.mxu0 %v1456
      %v1489 = vpop.f32.mrf.mxu0
      %v1490 = vadd.f32 0.0, %v1489
      %v1491 = vpop.f32.mrf.mxu0
      %1492 = vdwg.mxu0
      %1493 = vmatpush.bf16.msra.mxu0 0
      %1494 = vmatpush.bf16.msra.mxu0 0
      %1495 = vmatpush.bf16.msra.mxu0 0
      %1496 = vmatpush.bf16.msra.mxu0 0
      %1497 = vmatpush.bf16.msra.mxu0 0
      %1498 = vmatpush.bf16.msra.mxu0 0
      %1499 = vmatpush.bf16.msra.mxu0 0
      %1500 = vmatpush.bf16.msra.mxu0 %v1465
      %1501 = vmatmul.bf16.gmra.mxu0 %v1456
      %v1502 = vpop.f32.mrf.mxu0
      %v1503 = vadd.f32 0.0, %v1502
      %v1504 = vpop.f32.mrf.mxu0
      %1505 = vdwg.mxu0
      %v1506 = vadd.f32 %v1433, %v1477
      %v1507 = vadd.f32 %v1434, %v1490
      %v1508 = vadd.f32 %v1435, %v1503
      %s1509 = scalar_lea.vmem %s3, 14
      %v1510 = vld [vmem:[%s1509] sm:$0x3]
      %v1511 = vld [vmem:[#allocation2] sm:$0x3f]
      %1513 = vst [vmem:[#allocation1] ss:$4 sm:$0xff] %v1511
      %v1514 = vld.sshfl [vmem:[#allocation1] sm:$0xff pattern:$0x73625140]
      %v1516 = vld.sshfl [vmem:[#allocation1 + $0x8] sm:$0xff pattern:$0x73625140]
      %v1518 = vld.sshfl [vmem:[#allocation1 + $0x10] sm:$0xff pattern:$0x73625140]
      %1520 = vrot.lane.b32.xlu0 %v1514, 91
      %v1521 = vpop.permute.xlu0 %1520
      %1522 = vrot.lane.b32.xlu0 %v1516, 91
      %v1523 = vpop.permute.xlu0 %1522
      %1524 = vrot.lane.b32.xlu0 %v1518, 91
      %v1525 = vpop.permute.xlu0 %1524
      %v1526 = vsel %vm448, %v1521, %v1523
      %v1527 = vsel %vm448, %v1523, %v1525
      %v1529 = vsel %vm525, %v1510, 0
      %v1532 = vsel %vm409, %v1526, 0
      %v1535 = vsel %vm409, %v1527, 0
      %v1538 = vsel %vm409, %v1525, 0
      %1540 = vmatpush.bf16.msra.mxu0 0
      %1541 = vmatpush.bf16.msra.mxu0 0
      %1542 = vmatpush.bf16.msra.mxu0 0
      %1543 = vmatpush.bf16.msra.mxu0 0
      %1544 = vmatpush.bf16.msra.mxu0 0
      %1545 = vmatpush.bf16.msra.mxu0 0
      %1546 = vmatpush.bf16.msra.mxu0 0
      %1547 = vmatpush.bf16.msra.mxu0 %v1532
      %1548 = vmatmul.bf16.gmra.mxu0 %v1529
      %v1549 = vpop.f32.mrf.mxu0
      %v1550 = vadd.f32 0.0, %v1549
      %v1551 = vpop.f32.mrf.mxu0
      %1552 = vdwg.mxu0
      %1553 = vmatpush.bf16.msra.mxu0 0
      %1554 = vmatpush.bf16.msra.mxu0 0
      %1555 = vmatpush.bf16.msra.mxu0 0
      %1556 = vmatpush.bf16.msra.mxu0 0
      %1557 = vmatpush.bf16.msra.mxu0 0
      %1558 = vmatpush.bf16.msra.mxu0 0
      %1559 = vmatpush.bf16.msra.mxu0 0
      %1560 = vmatpush.bf16.msra.mxu0 %v1535
      %1561 = vmatmul.bf16.gmra.mxu0 %v1529
      %v1562 = vpop.f32.mrf.mxu0
      %v1563 = vadd.f32 0.0, %v1562
      %v1564 = vpop.f32.mrf.mxu0
      %1565 = vdwg.mxu0
      %1566 = vmatpush.bf16.msra.mxu0 0
      %1567 = vmatpush.bf16.msra.mxu0 0
      %1568 = vmatpush.bf16.msra.mxu0 0
      %1569 = vmatpush.bf16.msra.mxu0 0
      %1570 = vmatpush.bf16.msra.mxu0 0
      %1571 = vmatpush.bf16.msra.mxu0 0
      %1572 = vmatpush.bf16.msra.mxu0 0
      %1573 = vmatpush.bf16.msra.mxu0 %v1538
      %1574 = vmatmul.bf16.gmra.mxu0 %v1529
      %v1575 = vpop.f32.mrf.mxu0
      %v1576 = vadd.f32 0.0, %v1575
      %v1577 = vpop.f32.mrf.mxu0
      %1578 = vdwg.mxu0
      %v1579 = vadd.f32 %v1506, %v1550
      %v1580 = vadd.f32 %v1507, %v1563
      %v1581 = vadd.f32 %v1508, %v1576
      %s1582 = scalar_lea.vmem %s4, 14
      %v1583 = vld [vmem:[%s1582] sm:$0x3]
      %v1584 = vld [vmem:[#allocation3] sm:$0x3f]
      %1586 = vst [vmem:[#allocation1] ss:$4 sm:$0xff] %v1584
      %v1587 = vld.sshfl [vmem:[#allocation1] sm:$0xff pattern:$0x73625140]
      %v1589 = vld.sshfl [vmem:[#allocation1 + $0x8] sm:$0xff pattern:$0x73625140]
      %v1591 = vld.sshfl [vmem:[#allocation1 + $0x10] sm:$0xff pattern:$0x73625140]
      %1593 = vrot.lane.b32.xlu0 %v1587, 91
      %v1594 = vpop.permute.xlu0 %1593
      %1595 = vrot.lane.b32.xlu0 %v1589, 91
      %v1596 = vpop.permute.xlu0 %1595
      %1597 = vrot.lane.b32.xlu0 %v1591, 91
      %v1598 = vpop.permute.xlu0 %1597
      %v1599 = vsel %vm448, %v1594, %v1596
      %v1600 = vsel %vm448, %v1596, %v1598
      %v1602 = vsel %vm525, %v1583, 0
      %v1605 = vsel %vm409, %v1599, 0
      %v1608 = vsel %vm409, %v1600, 0
      %v1611 = vsel %vm409, %v1598, 0
      %1613 = vmatpush.bf16.msra.mxu0 0
      %1614 = vmatpush.bf16.msra.mxu0 0
      %1615 = vmatpush.bf16.msra.mxu0 0
      %1616 = vmatpush.bf16.msra.mxu0 0
      %1617 = vmatpush.bf16.msra.mxu0 0
      %1618 = vmatpush.bf16.msra.mxu0 0
      %1619 = vmatpush.bf16.msra.mxu0 0
      %1620 = vmatpush.bf16.msra.mxu0 %v1605
      %1621 = vmatmul.bf16.gmra.mxu0 %v1602
      %v1622 = vpop.f32.mrf.mxu0
      %v1623 = vadd.f32 0.0, %v1622
      %v1624 = vpop.f32.mrf.mxu0
      %1625 = vdwg.mxu0
      %1626 = vmatpush.bf16.msra.mxu0 0
      %1627 = vmatpush.bf16.msra.mxu0 0
      %1628 = vmatpush.bf16.msra.mxu0 0
      %1629 = vmatpush.bf16.msra.mxu0 0
      %1630 = vmatpush.bf16.msra.mxu0 0
      %1631 = vmatpush.bf16.msra.mxu0 0
      %1632 = vmatpush.bf16.msra.mxu0 0
      %1633 = vmatpush.bf16.msra.mxu0 %v1608
      %1634 = vmatmul.bf16.gmra.mxu0 %v1602
      %v1635 = vpop.f32.mrf.mxu0
      %v1636 = vadd.f32 0.0, %v1635
      %v1637 = vpop.f32.mrf.mxu0
      %1638 = vdwg.mxu0
      %1639 = vmatpush.bf16.msra.mxu0 0
      %1640 = vmatpush.bf16.msra.mxu0 0
      %1641 = vmatpush.bf16.msra.mxu0 0
      %1642 = vmatpush.bf16.msra.mxu0 0
      %1643 = vmatpush.bf16.msra.mxu0 0
      %1644 = vmatpush.bf16.msra.mxu0 0
      %1645 = vmatpush.bf16.msra.mxu0 0
      %1646 = vmatpush.bf16.msra.mxu0 %v1611
      %1647 = vmatmul.bf16.gmra.mxu0 %v1602
      %v1648 = vpop.f32.mrf.mxu0
      %v1649 = vadd.f32 0.0, %v1648
      %v1650 = vpop.f32.mrf.mxu0
      %1651 = vdwg.mxu0
      %v1652 = vadd.f32 %v1579, %v1623
      %v1653 = vadd.f32 %v1580, %v1636
      %v1654 = vadd.f32 %v1581, %v1649
      %s1655 = scalar_lea.vmem %s3, 16
      %v1656 = vld [vmem:[%s1655] sm:$0x3]
      %v1657 = vld [vmem:[#allocation2] sm:$0x3f]
      %1659 = vst [vmem:[#allocation1] ss:$4 sm:$0xff] %v1657
      %v1660 = vld.sshfl [vmem:[#allocation1] sm:$0xff pattern:$0x73625140]
      %v1662 = vld.sshfl [vmem:[#allocation1 + $0x8] sm:$0xff pattern:$0x73625140]
      %v1664 = vld.sshfl [vmem:[#allocation1 + $0x10] sm:$0xff pattern:$0x73625140]
      %1666 = vrot.lane.b32.xlu0 %v1660, 90
      %v1667 = vpop.permute.xlu0 %1666
      %1668 = vrot.lane.b32.xlu0 %v1662, 90
      %v1669 = vpop.permute.xlu0 %1668
      %1670 = vrot.lane.b32.xlu0 %v1664, 90
      %v1671 = vpop.permute.xlu0 %1670
      %vm1672 = vcmask 736256
      %v1673 = vsel %vm1672, %v1667, %v1669
      %v1674 = vsel %vm1672, %v1669, %v1671
      %v1676 = vsel %vm525, %v1656, 0
      %v1679 = vsel %vm409, %v1673, 0
      %v1682 = vsel %vm409, %v1674, 0
      %v1685 = vsel %vm409, %v1671, 0
      %1687 = vmatpush.bf16.msra.mxu0 0
      %1688 = vmatpush.bf16.msra.mxu0 0
      %1689 = vmatpush.bf16.msra.mxu0 0
      %1690 = vmatpush.bf16.msra.mxu0 0
      %1691 = vmatpush.bf16.msra.mxu0 0
      %1692 = vmatpush.bf16.msra.mxu0 0
      %1693 = vmatpush.bf16.msra.mxu0 0
      %1694 = vmatpush.bf16.msra.mxu0 %v1679
      %1695 = vmatmul.bf16.gmra.mxu0 %v1676
      %v1696 = vpop.f32.mrf.mxu0
      %v1697 = vadd.f32 0.0, %v1696
      %v1698 = vpop.f32.mrf.mxu0
      %1699 = vdwg.mxu0
      %1700 = vmatpush.bf16.msra.mxu0 0
      %1701 = vmatpush.bf16.msra.mxu0 0
      %1702 = vmatpush.bf16.msra.mxu0 0
      %1703 = vmatpush.bf16.msra.mxu0 0
      %1704 = vmatpush.bf16.msra.mxu0 0
      %1705 = vmatpush.bf16.msra.mxu0 0
      %1706 = vmatpush.bf16.msra.mxu0 0
      %1707 = vmatpush.bf16.msra.mxu0 %v1682
      %1708 = vmatmul.bf16.gmra.mxu0 %v1676
      %v1709 = vpop.f32.mrf.mxu0
      %v1710 = vadd.f32 0.0, %v1709
      %v1711 = vpop.f32.mrf.mxu0
      %1712 = vdwg.mxu0
      %1713 = vmatpush.bf16.msra.mxu0 0
      %1714 = vmatpush.bf16.msra.mxu0 0
      %1715 = vmatpush.bf16.msra.mxu0 0
      %1716 = vmatpush.bf16.msra.mxu0 0
      %1717 = vmatpush.bf16.msra.mxu0 0
      %1718 = vmatpush.bf16.msra.mxu0 0
      %1719 = vmatpush.bf16.msra.mxu0 0
      %1720 = vmatpush.bf16.msra.mxu0 %v1685
      %1721 = vmatmul.bf16.gmra.mxu0 %v1676
      %v1722 = vpop.f32.mrf.mxu0
      %v1723 = vadd.f32 0.0, %v1722
      %v1724 = vpop.f32.mrf.mxu0
      %1725 = vdwg.mxu0
      %v1726 = vadd.f32 %v1652, %v1697
      %v1727 = vadd.f32 %v1653, %v1710
      %v1728 = vadd.f32 %v1654, %v1723
      %s1729 = scalar_lea.vmem %s4, 16
      %v1730 = vld [vmem:[%s1729] sm:$0x3]
      %v1731 = vld [vmem:[#allocation3] sm:$0x3f]
      %1733 = vst [vmem:[#allocation1] ss:$4 sm:$0xff] %v1731
      %v1734 = vld.sshfl [vmem:[#allocation1] sm:$0xff pattern:$0x73625140]
      %v1736 = vld.sshfl [vmem:[#allocation1 + $0x8] sm:$0xff pattern:$0x73625140]
      %v1738 = vld.sshfl [vmem:[#allocation1 + $0x10] sm:$0xff pattern:$0x73625140]
      %1740 = vrot.lane.b32.xlu0 %v1734, 90
      %v1741 = vpop.permute.xlu0 %1740
      %1742 = vrot.lane.b32.xlu0 %v1736, 90
      %v1743 = vpop.permute.xlu0 %1742
      %1744 = vrot.lane.b32.xlu0 %v1738, 90
      %v1745 = vpop.permute.xlu0 %1744
      %v1746 = vsel %vm1672, %v1741, %v1743
      %v1747 = vsel %vm1672, %v1743, %v1745
      %v1749 = vsel %vm525, %v1730, 0
      %v1752 = vsel %vm409, %v1746, 0
      %v1755 = vsel %vm409, %v1747, 0
      %v1758 = vsel %vm409, %v1745, 0
      %1760 = vmatpush.bf16.msra.mxu0 0
      %1761 = vmatpush.bf16.msra.mxu0 0
      %1762 = vmatpush.bf16.msra.mxu0 0
      %1763 = vmatpush.bf16.msra.mxu0 0
      %1764 = vmatpush.bf16.msra.mxu0 0
      %1765 = vmatpush.bf16.msra.mxu0 0
      %1766 = vmatpush.bf16.msra.mxu0 0
      %1767 = vmatpush.bf16.msra.mxu0 %v1752
      %1768 = vmatmul.bf16.gmra.mxu0 %v1749
      %v1769 = vpop.f32.mrf.mxu0
      %v1770 = vadd.f32 0.0, %v1769
      %v1771 = vpop.f32.mrf.mxu0
      %1772 = vdwg.mxu0
      %1773 = vmatpush.bf16.msra.mxu0 0
      %1774 = vmatpush.bf16.msra.mxu0 0
      %1775 = vmatpush.bf16.msra.mxu0 0
      %1776 = vmatpush.bf16.msra.mxu0 0
      %1777 = vmatpush.bf16.msra.mxu0 0
      %1778 = vmatpush.bf16.msra.mxu0 0
      %1779 = vmatpush.bf16.msra.mxu0 0
      %1780 = vmatpush.bf16.msra.mxu0 %v1755
      %1781 = vmatmul.bf16.gmra.mxu0 %v1749
      %v1782 = vpop.f32.mrf.mxu0
      %v1783 = vadd.f32 0.0, %v1782
      %v1784 = vpop.f32.mrf.mxu0
      %1785 = vdwg.mxu0
      %1786 = vmatpush.bf16.msra.mxu0 0
      %1787 = vmatpush.bf16.msra.mxu0 0
      %1788 = vmatpush.bf16.msra.mxu0 0
      %1789 = vmatpush.bf16.msra.mxu0 0
      %1790 = vmatpush.bf16.msra.mxu0 0
      %1791 = vmatpush.bf16.msra.mxu0 0
      %1792 = vmatpush.bf16.msra.mxu0 0
      %1793 = vmatpush.bf16.msra.mxu0 %v1758
      %1794 = vmatmul.bf16.gmra.mxu0 %v1749
      %v1795 = vpop.f32.mrf.mxu0
      %v1796 = vadd.f32 0.0, %v1795
      %v1797 = vpop.f32.mrf.mxu0
      %1798 = vdwg.mxu0
      %v1799 = vadd.f32 %v1726, %v1770
      %v1800 = vadd.f32 %v1727, %v1783
      %v1801 = vadd.f32 %v1728, %v1796
      %v1802 = vld [vmem:[%s5] sm:$0x7]
      %v1804 = vperm.slane %v1802, 0
      %v1805 = vperm.slane %v1802, 1
      %v1806 = vperm.slane %v1802, 2
      %v1810 = vmul.f32 %v1799, %v1804
      %v1811 = vmul.f32 %v1800, %v1805
      %v1812 = vmul.f32 %v1801, %v1806
      %v1813 = vpack.c.bf16 %v1811, %v1810
      %v1814 = vpack.c.bf16 %v1812, %v1812
      %v1817 = vrot.slane %v1813, 2
      %v1818 = vrot.slane %v1814, 4
      %v1819 = vrot.slane %v1814, 6
      %v1822 = vsel %vm409, %v1813, %v1817
      %vm1823 = vcmask 1045508
      %v1826 = vsel %vm1823, %v1818, %v1819
      %vm1827 = vcmask 1043456
      %v1828 = vsel %vm1827, %v1822, %v1826
      %vm1830 = vmor %vm402, %vm409
      %vm1831 = vcmask 553988
      %vm1832 = vmor %vm1831, %vm1830
      %1833 = vst.msk [vmem:[%s305] sm:$0x3f] %vm1832, %v1828
      %v1834 = vunpack.c.l.bf16 %v1813
      %v1835 = vunpack.c.h.bf16 %v1813
      %v1836 = vunpack.c.l.bf16 %v1814
      %v1837 = vsel %vm1827, %v1834, 0.0
      %v1838 = vsel %vm1827, %v1835, 0.0
      %v1839 = vadd.f32 %v1837, %v1838
      %vm1840 = vcmask 551936
      %v1841 = vsel %vm1840, %v1836, 0.0
      %v1842 = vadd.f32 %v1839, %v1841
      %1843 = vadd.xlane.f32.xlu0 %v1842
      %v1844 = vpop.xlane.xlu0 %1843
      %v1845 = vmul.f32 %v1834, %v1834
      %v1846 = vmul.f32 %v1835, %v1835
      %v1847 = vmul.f32 %v1836, %v1836
      %v1848 = vsel %vm1827, %v1845, 0.0
      %v1849 = vsel %vm1827, %v1846, 0.0
      %v1850 = vadd.f32 %v1848, %v1849
      %v1851 = vsel %vm1840, %v1847, 0.0
      %v1852 = vadd.f32 %v1850, %v1851
      %1853 = vadd.xlane.f32.xlu0 %v1852
      %v1854 = vpop.xlane.xlu0 %1853
      %vm1855 = vcmask 7168
      %v1856 = vsel %vm1855, %v1844, %v1854
      %vm1857 = vcmask 11264
      %1858 = vst.msk [vmem:[%s309] sm:$0xf] %vm1857, %v1856
      %p1859 = scmp.lt.s32.totalorder %s19, 1
      %s1860 = scalar_select %p1859, %s19, 1
      %s1861 = smul.addr %s1860, 3
      %s1862 = smul.addr %s1861, 2
      %s1863 = scalar_lea.vmem %s6, %s1862
      %p1864 = scmp.lt.s32.totalorder %s19, 1
      %s1865 = scalar_select %p1864, %s19, 1
      %s1866 = smul.addr %s1865, 4
      %s1867 = scalar_lea.vmem %s7, %s1866
      // Predicated region
      $region45: #{unet_up_forward.3} parent=43 // pred_check
        %p1868 = pneg %p173
      $region46: #{unet_up_forward.3} parent=43 // pred_check_branch
        %1870 = sbr.rel (%p1868) target = $region48
      $region47: #{unet_up_forward.3} parent=43 // pred_region
        _
      $region48: #{unet_up_forward.3} parent=43 // pred_fallthru
        _
      // Predicated region
      $region49: #{unet_up_forward.3} parent=43 // pred_check
        %p1871 = pneg %p199
      $region50: #{unet_up_forward.3} parent=43 // pred_check_branch
        %1873 = sbr.rel (%p1871) target = $region52
      $region51: #{unet_up_forward.3} parent=43 // pred_region
        _
      $region52: #{unet_up_forward.3} parent=43 // pred_fallthru
        _
    $region44: #{unet_up_forward.3} parent=5 // pred_fallthru
      _
    %p1874 = scmp.le.s32.totalorder 2, %s14
    // Predicated region
    $region53: #{unet_up_forward.3} parent=5 // pred_check
      %p1875 = pneg %p1874
    $region54: #{unet_up_forward.3} parent=5 // pred_check_branch
      %1877 = sbr.rel (%p1875) target = $region56
    $region55: #{unet_up_forward.3} parent=5 // pred_region
      %s1878 = ssub.s32 %s14, 2
      // Predicated region
      $region57: #{unet_up_forward.3} parent=55 // pred_check
        %p1879 = pneg %p179
      $region58: #{unet_up_forward.3} parent=55 // pred_check_branch
        %1881 = sbr.rel (%p1879) target = $region60
      $region59: #{unet_up_forward.3} parent=55 // pred_region
        %p1882 = scmp.lt.s32.totalorder %s20, 1
        %s1883 = scalar_select %p1882, %s20, 1
        %s1884 = smul.addr %s1883, 3
        %s1885 = smul.addr %s1884, 2
        %s1886 = scalar_lea.vmem %s6, %s1885
      $region60: #{unet_up_forward.3} parent=55 // pred_fallthru
        _
      // Predicated region
      $region61: #{unet_up_forward.3} parent=55 // pred_check
        %p1887 = pneg %p205
      $region62: #{unet_up_forward.3} parent=55 // pred_check_branch
        %1889 = sbr.rel (%p1887) target = $region64
      $region63: #{unet_up_forward.3} parent=55 // pred_region
        %p1890 = scmp.lt.s32.totalorder %s20, 1
        %s1891 = scalar_select %p1890, %s20, 1
        %s1892 = smul.addr %s1891, 4
        %s1893 = scalar_lea.vmem %s7, %s1892
      $region64: #{unet_up_forward.3} parent=55 // pred_fallthru
        _
    $region56: #{unet_up_forward.3} parent=5 // pred_fallthru
      _
  $region6: #{unet_up_forward.3} parent=0 // loop_footer
    %s18 = sadd.s32 1, %s14
  $region7: #{unet_up_forward.3} parent=0 // loop_footer_branch
    %13 = sbr.rel target = $region3
  $region8: #{unet_up_forward.3} parent=0 // loop_exit
    _

</llo_original>
